<compile_context>
chip_gen: v6e
topology: v6e:2x2x1
jax: 0.10.0
libtpu: 0.0.40
codegen_flags: <defaults>
</compile_context>

<pallas_src>
import jax
import jax.numpy as jnp
import numpy as np
from jax.experimental import pallas as pl
from jax.experimental.pallas import tpu as pltpu

BN_EPS = 1e-5
_WPAD = 8   # zero-pad of the scratch along W on each side (f32 sublane-aligned)


# ------------------------------- kernel ------------------------------------ #

def _bottleneck_kernel(x_ref, w1_ref, b1_ref, w2_ref, b2_ref, w3_ref, b3_ref,
                       o_ref, pad_ref):
    _, H, W, Cin = x_ref.shape
    HW = H * W
    width = w1_ref.shape[1]
    Cout = w3_ref.shape[1]

    x2d = x_ref[0].reshape(HW, Cin)                        # f32 (HW, Cin)

    # ---- conv1 (1x1) + folded BN1 + ReLU ---------------------------------- #
    h1 = jnp.dot(x2d.astype(jnp.bfloat16), w1_ref[...],
                 preferred_element_type=jnp.float32)
    h1 = jnp.maximum(h1 + b1_ref[...], 0.0)                # f32 (HW, width)

    # ---- conv2 (3x3, padding=1) + folded BN2 + ReLU ------------------------ #
    # Stage conv1's output into a zero-padded f32 VMEM scratch:
    #   rows    1 .. H              (one zero halo row above/below)
    #   columns _WPAD .. _WPAD+W-1  (aligned store; zero halo at _WPAD-1, _WPAD+W)
    pad_ref[...] = jnp.zeros(pad_ref.shape, pad_ref.dtype)
    pad_ref[pl.ds(1, H), pl.ds(_WPAD, W), :] = h1.reshape(H, W, width)

    acc = jnp.zeros((HW, width), jnp.float32)
    for ky in range(3):
        for kx in range(3):
            c0 = kx + _WPAD - 1
            xs = pad_ref[pl.ds(ky, H), pl.ds(c0, W), :]    # (H, W, width) f32
            acc = acc + jnp.dot(
                xs.reshape(HW, width).astype(jnp.bfloat16),
                w2_ref[ky * 3 + kx],
                preferred_element_type=jnp.float32)
    h2 = jnp.maximum(acc + b2_ref[...], 0.0).astype(jnp.bfloat16)

    # ---- conv3 (1x1) + folded BN3 + identity + ReLU ------------------------ #
    y = jnp.dot(h2, w3_ref[...], preferred_element_type=jnp.float32)
    y = y + b3_ref[...] + x2d                              # exact f32 identity
    o_ref[0] = jnp.maximum(y, 0.0).reshape(H, W, Cout).astype(o_ref.dtype)


# ------------------------------- wrapper ------------------------------------ #

def _fold_bn(gamma, beta, mean, var, eps=BN_EPS):
    scale = gamma * jax.lax.rsqrt(var + eps)
    bias = beta - mean * scale
    return scale, bias


@jax.jit
def bottleneck_pallas(x_nchw, p):
    N, Cin, H, W = x_nchw.shape
    # TODO(synk): when chaining blocks, keep activations NHWC end-to-end and
    # drop these two layout transposes (pure glue around the kernel).
    x = jnp.transpose(x_nchw, (0, 2, 3, 1)).astype(jnp.float32)

    s1, b1 = _fold_bn(*p["bn1"])
    s2, b2 = _fold_bn(*p["bn2"])
    s3, b3 = _fold_bn(*p["bn3"])

    width = p["w1"].shape[1]
    cout = p["w3"].shape[1]
    assert cout == Cin, "identity path requires inplanes == planes * expansion"

    # Fold BN scales into the conv weights; cast weights to bf16 (MXU
    # accumulates in f32 inside the kernel); keep biases in f32.
    w1 = (p["w1"] * s1[None, :]).astype(jnp.bfloat16)                    # (Cin, width)
    w2 = (p["w2"] * s2[None, None, None, :]).reshape(9, width, width)    # (9, w, w)
    w2 = w2.astype(jnp.bfloat16)
    w3 = (p["w3"] * s3[None, :]).astype(jnp.bfloat16)                    # (width, Cout)
    b1 = b1[None, :].astype(jnp.float32)
    b2 = b2[None, :].astype(jnp.float32)
    b3 = b3[None, :].astype(jnp.float32)

    out_nhwc = pl.pallas_call(
        _bottleneck_kernel,
        out_shape=jax.ShapeDtypeStruct((N, H, W, cout), jnp.float32),
        grid=(N,),
        in_specs=[
            pl.BlockSpec((1, H, W, Cin), lambda n: (n, 0, 0, 0)),
            pl.BlockSpec((Cin, width), lambda n: (0, 0)),
            pl.BlockSpec((1, width), lambda n: (0, 0)),
            pl.BlockSpec((9, width, width), lambda n: (0, 0, 0)),
            pl.BlockSpec((1, width), lambda n: (0, 0)),
            pl.BlockSpec((width, cout), lambda n: (0, 0)),
            pl.BlockSpec((1, cout), lambda n: (0, 0)),
        ],
        out_specs=pl.BlockSpec((1, H, W, cout), lambda n: (n, 0, 0, 0)),
        scratch_shapes=[
            pltpu.VMEM((H + 2, W + 2 * _WPAD, width), jnp.float32),
        ],
        compiler_params=pltpu.CompilerParams(
            # batch axis is independent -> shards across v7x's 2 TensorCores,
            # harmless on single-TC v5e/v6e.
            dimension_semantics=("parallel",)),
    )(x, w1, b1, w2, b2, w3, b3)

    return jnp.transpose(out_nhwc, (0, 3, 1, 2))


# ------------------------------ reference ----------------------------------- #

def bottleneck_ref(x_nchw, p):
    x = jnp.transpose(x_nchw, (0, 2, 3, 1)).astype(jnp.float32)

    def bn(y, bn_p):
        gamma, beta, mean, var = bn_p
        return (y - mean) * jax.lax.rsqrt(var + BN_EPS) * gamma + beta

    dn = ("NHWC", "HWIO", "NHWC")
    prec = jax.lax.Precision.HIGHEST
    y = jax.lax.conv_general_dilated(x, p["w1"][None, None], (1, 1), "VALID",
                                     dimension_numbers=dn, precision=prec)
    y = jax.nn.relu(bn(y, p["bn1"]))
    y = jax.lax.conv_general_dilated(y, p["w2"], (1, 1), "SAME",
                                     dimension_numbers=dn, precision=prec)
    y = jax.nn.relu(bn(y, p["bn2"]))
    y = jax.lax.conv_general_dilated(y, p["w3"][None, None], (1, 1), "VALID",
                                     dimension_numbers=dn, precision=prec)
    y = bn(y, p["bn3"])
    y = jax.nn.relu(y + x)
    return jnp.transpose(y, (0, 3, 1, 2))


# ---------------------------- params / init --------------------------------- #

def init_params(key, inplanes, planes, base_width=64, groups=1, expansion=4):
    width = int(planes * (base_width / 64.0)) * groups
    cout = planes * expansion
    ks = jax.random.split(key, 6)

    def bn_params(k, c):
        k1, k2, k3, k4 = jax.random.split(k, 4)
        gamma = 1.0 + 0.1 * jax.random.normal(k1, (c,), jnp.float32)
        beta = 0.1 * jax.random.normal(k2, (c,), jnp.float32)
        mean = 0.1 * jax.random.normal(k3, (c,), jnp.float32)
        var = jax.random.uniform(k4, (c,), jnp.float32, minval=0.5, maxval=1.5)
        return (gamma, beta, mean, var)

    return {
        # conv1x1 weights stored as (Cin, Cout); conv3x3 as HWIO (3,3,Cin,Cout)
        "w1": 0.1 * jax.random.normal(ks[0], (inplanes, width), jnp.float32),
        "w2": 0.1 * jax.random.normal(ks[1], (3, 3, width, width), jnp.float32),
        "w3": 0.1 * jax.random.normal(ks[2], (width, cout), jnp.float32),
        "bn1": bn_params(ks[3], width),
        "bn2": bn_params(ks[4], width),
        "bn3": bn_params(ks[5], cout),
    }


# --------------------------------- main -------------------------------------- #

if __name__ == "__main__":
    N, H, W = 2, 16, 16
    planes = 32
    inplanes = planes * 4        # identity add requires inplanes == planes*expansion

    key = jax.random.PRNGKey(0)
    kx, kp = jax.random.split(key)
    x = jax.random.normal(kx, (N, inplanes, H, W), jnp.float32)   # NCHW input
    params = init_params(kp, inplanes, planes)

    out = jax.block_until_ready(bottleneck_pallas(x, params))
    ref = jax.block_until_ready(bottleneck_ref(x, params))

    # bf16 weights / conv activations (f32 accumulation, f32 identity)
    np.testing.assert_allclose(np.asarray(out), np.asarray(ref),
                               rtol=5e-2, atol=5e-2)
    assert out.shape == (N, inplanes, H, W)
    print("KERNEL_OK")
</pallas_src>

<mosaic_0001>
module attributes {stable_mosaic.version = 11 : i64} {
  func.func @_bottleneck_kernel(%arg0: i32, %arg1: memref<1x16x16x128xf32, #tpu.memory_space<vmem>>, %arg2: memref<128x32xbf16, #tpu.memory_space<vmem>>, %arg3: memref<1x32xf32, #tpu.memory_space<vmem>>, %arg4: memref<9x32x32xbf16, #tpu.memory_space<vmem>>, %arg5: memref<1x32xf32, #tpu.memory_space<vmem>>, %arg6: memref<32x128xbf16, #tpu.memory_space<vmem>>, %arg7: memref<1x128xf32, #tpu.memory_space<vmem>>, %arg8: memref<1x16x16x128xf32, #tpu.memory_space<vmem>>, %arg9: memref<18x32x32xf32, #tpu.memory_space<vmem>>) attributes {dimension_semantics = [#tpu.dimension_semantics<parallel>], iteration_bounds = array<i64: 2>, scalar_prefetch = 0 : i64, scratch_operands = 1 : i64, tpu.core_type = #tpu.core_type<tc>, window_params = [{transform_indices = @transform_0, window_bounds = array<i64: 1, 16, 16, 128>}, {pipeline_mode = #tpu.pipeline_mode<synchronous>, transform_indices = @transform_1, window_bounds = array<i64: 128, 32>}, {pipeline_mode = #tpu.pipeline_mode<synchronous>, transform_indices = @transform_2, window_bounds = array<i64: 1, 32>}, {pipeline_mode = #tpu.pipeline_mode<synchronous>, transform_indices = @transform_3, window_bounds = array<i64: 9, 32, 32>}, {pipeline_mode = #tpu.pipeline_mode<synchronous>, transform_indices = @transform_4, window_bounds = array<i64: 1, 32>}, {pipeline_mode = #tpu.pipeline_mode<synchronous>, transform_indices = @transform_5, window_bounds = array<i64: 32, 128>}, {pipeline_mode = #tpu.pipeline_mode<synchronous>, transform_indices = @transform_6, window_bounds = array<i64: 1, 128>}, {transform_indices = @transform_7, window_bounds = array<i64: 1, 16, 16, 128>}]} {
    %c0 = arith.constant 0 : index
    %c0_0 = arith.constant 0 : index
    %c0_1 = arith.constant 0 : index
    %c0_2 = arith.constant 0 : index
    %0 = vector.load %arg1[%c0, %c0_0, %c0_1, %c0_2] : memref<1x16x16x128xf32, #tpu.memory_space<vmem>>, vector<1x16x16x128xf32>
    %1 = vector.shape_cast %0 : vector<1x16x16x128xf32> to vector<16x16x128xf32>
    %2 = vector.shape_cast %1 : vector<16x16x128xf32> to vector<256x128xf32>
    %3 = arith.truncf %2 : vector<256x128xf32> to vector<256x128xbf16>
    %c0_3 = arith.constant 0 : index
    %c0_4 = arith.constant 0 : index
    %4 = vector.load %arg2[%c0_3, %c0_4] : memref<128x32xbf16, #tpu.memory_space<vmem>>, vector<128x32xbf16>
    %cst = arith.constant dense<0.000000e+00> : vector<256x32xf32>
    %5 = tpu.matmul %3, %4, %cst {dimension_numbers = #tpu.dot_dimension_numbers<[1], [0], [0], [1], [0, 0, 1, 1], [], []>} : vector<256x128xbf16>, vector<128x32xbf16>, vector<256x32xf32> -> vector<256x32xf32>
    %c0_5 = arith.constant 0 : index
    %c0_6 = arith.constant 0 : index
    %6 = vector.load %arg3[%c0_5, %c0_6] : memref<1x32xf32, #tpu.memory_space<vmem>>, vector<1x32xf32>
    %7 = vector.broadcast %6 : vector<1x32xf32> to vector<256x32xf32>
    %8 = arith.addf %5, %7 : vector<256x32xf32>
    %cst_7 = arith.constant 0.000000e+00 : f32
    %9 = vector.broadcast %cst_7 : f32 to vector<256x32xf32>
    %10 = arith.maximumf %8, %9 : vector<256x32xf32>
    %cst_8 = arith.constant 0.000000e+00 : f32
    %11 = vector.broadcast %cst_8 : f32 to vector<18x32x32xf32>
    %c0_9 = arith.constant 0 : index
    %c0_10 = arith.constant 0 : index
    %c0_11 = arith.constant 0 : index
    %12 = vector.load %arg9[%c0_9, %c0_10, %c0_11] : memref<18x32x32xf32, #tpu.memory_space<vmem>>, vector<18x32x32xf32>
    tpu.vector_store %arg9[%c0_9, %c0_10, %c0_11], %11 {strides = array<i32>} : memref<18x32x32xf32, #tpu.memory_space<vmem>>, vector<18x32x32xf32>,
    %13 = vector.shape_cast %10 : vector<256x32xf32> to vector<16x16x32xf32>
    %c1 = arith.constant 1 : index
    %c8 = arith.constant 8 : index
    %c0_12 = arith.constant 0 : index
    %14 = vector.load %arg9[%c1, %c8, %c0_12] : memref<18x32x32xf32, #tpu.memory_space<vmem>>, vector<16x16x32xf32>
    tpu.vector_store %arg9[%c1, %c8, %c0_12], %13 {strides = array<i32>} : memref<18x32x32xf32, #tpu.memory_space<vmem>>, vector<16x16x32xf32>,
    %cst_13 = arith.constant 0.000000e+00 : f32
    %15 = vector.broadcast %cst_13 : f32 to vector<256x32xf32>
    %c0_14 = arith.constant 0 : index
    %c7 = arith.constant 7 : index
    %c0_15 = arith.constant 0 : index
    %16 = vector.load %arg9[%c0_14, %c7, %c0_15] : memref<18x32x32xf32, #tpu.memory_space<vmem>>, vector<16x16x32xf32>
    %17 = vector.shape_cast %16 : vector<16x16x32xf32> to vector<256x32xf32>
    %18 = arith.truncf %17 : vector<256x32xf32> to vector<256x32xbf16>
    %c0_16 = arith.constant 0 : index
    %c0_17 = arith.constant 0 : index
    %c0_18 = arith.constant 0 : index
    %19 = vector.load %arg4[%c0_16, %c0_17, %c0_18] : memref<9x32x32xbf16, #tpu.memory_space<vmem>>, vector<1x32x32xbf16>
    %20 = vector.shape_cast %19 : vector<1x32x32xbf16> to vector<32x32xbf16>
    %cst_19 = arith.constant dense<0.000000e+00> : vector<256x32xf32>
    %21 = tpu.matmul %18, %20, %cst_19 {dimension_numbers = #tpu.dot_dimension_numbers<[1], [0], [0], [1], [0, 0, 1, 1], [], []>} : vector<256x32xbf16>, vector<32x32xbf16>, vector<256x32xf32> -> vector<256x32xf32>
    %22 = arith.addf %15, %21 : vector<256x32xf32>
    %c0_20 = arith.constant 0 : index
    %c8_21 = arith.constant 8 : index
    %c0_22 = arith.constant 0 : index
    %23 = vector.load %arg9[%c0_20, %c8_21, %c0_22] : memref<18x32x32xf32, #tpu.memory_space<vmem>>, vector<16x16x32xf32>
    %24 = vector.shape_cast %23 : vector<16x16x32xf32> to vector<256x32xf32>
    %25 = arith.truncf %24 : vector<256x32xf32> to vector<256x32xbf16>
    %c1_23 = arith.constant 1 : index
    %c0_24 = arith.constant 0 : index
    %c0_25 = arith.constant 0 : index
    %26 = vector.load %arg4[%c1_23, %c0_24, %c0_25] : memref<9x32x32xbf16, #tpu.memory_space<vmem>>, vector<1x32x32xbf16>
    %27 = vector.shape_cast %26 : vector<1x32x32xbf16> to vector<32x32xbf16>
    %cst_26 = arith.constant dense<0.000000e+00> : vector<256x32xf32>
    %28 = tpu.matmul %25, %27, %cst_26 {dimension_numbers = #tpu.dot_dimension_numbers<[1], [0], [0], [1], [0, 0, 1, 1], [], []>} : vector<256x32xbf16>, vector<32x32xbf16>, vector<256x32xf32> -> vector<256x32xf32>
    %29 = arith.addf %22, %28 : vector<256x32xf32>
    %c0_27 = arith.constant 0 : index
    %c9 = arith.constant 9 : index
    %c0_28 = arith.constant 0 : index
    %30 = vector.load %arg9[%c0_27, %c9, %c0_28] : memref<18x32x32xf32, #tpu.memory_space<vmem>>, vector<16x16x32xf32>
    %31 = vector.shape_cast %30 : vector<16x16x32xf32> to vector<256x32xf32>
    %32 = arith.truncf %31 : vector<256x32xf32> to vector<256x32xbf16>
    %c2 = arith.constant 2 : index
    %c0_29 = arith.constant 0 : index
    %c0_30 = arith.constant 0 : index
    %33 = vector.load %arg4[%c2, %c0_29, %c0_30] : memref<9x32x32xbf16, #tpu.memory_space<vmem>>, vector<1x32x32xbf16>
    %34 = vector.shape_cast %33 : vector<1x32x32xbf16> to vector<32x32xbf16>
    %cst_31 = arith.constant dense<0.000000e+00> : vector<256x32xf32>
    %35 = tpu.matmul %32, %34, %cst_31 {dimension_numbers = #tpu.dot_dimension_numbers<[1], [0], [0], [1], [0, 0, 1, 1], [], []>} : vector<256x32xbf16>, vector<32x32xbf16>, vector<256x32xf32> -> vector<256x32xf32>
    %36 = arith.addf %29, %35 : vector<256x32xf32>
    %c1_32 = arith.constant 1 : index
    %c7_33 = arith.constant 7 : index
    %c0_34 = arith.constant 0 : index
    %37 = vector.load %arg9[%c1_32, %c7_33, %c0_34] : memref<18x32x32xf32, #tpu.memory_space<vmem>>, vector<16x16x32xf32>
    %38 = vector.shape_cast %37 : vector<16x16x32xf32> to vector<256x32xf32>
    %39 = arith.truncf %38 : vector<256x32xf32> to vector<256x32xbf16>
    %c3 = arith.constant 3 : index
    %c0_35 = arith.constant 0 : index
    %c0_36 = arith.constant 0 : index
    %40 = vector.load %arg4[%c3, %c0_35, %c0_36] : memref<9x32x32xbf16, #tpu.memory_space<vmem>>, vector<1x32x32xbf16>
    %41 = vector.shape_cast %40 : vector<1x32x32xbf16> to vector<32x32xbf16>
    %cst_37 = arith.constant dense<0.000000e+00> : vector<256x32xf32>
    %42 = tpu.matmul %39, %41, %cst_37 {dimension_numbers = #tpu.dot_dimension_numbers<[1], [0], [0], [1], [0, 0, 1, 1], [], []>} : vector<256x32xbf16>, vector<32x32xbf16>, vector<256x32xf32> -> vector<256x32xf32>
    %43 = arith.addf %36, %42 : vector<256x32xf32>
    %c1_38 = arith.constant 1 : index
    %c8_39 = arith.constant 8 : index
    %c0_40 = arith.constant 0 : index
    %44 = vector.load %arg9[%c1_38, %c8_39, %c0_40] : memref<18x32x32xf32, #tpu.memory_space<vmem>>, vector<16x16x32xf32>
    %45 = vector.shape_cast %44 : vector<16x16x32xf32> to vector<256x32xf32>
    %46 = arith.truncf %45 : vector<256x32xf32> to vector<256x32xbf16>
    %c4 = arith.constant 4 : index
    %c0_41 = arith.constant 0 : index
    %c0_42 = arith.constant 0 : index
    %47 = vector.load %arg4[%c4, %c0_41, %c0_42] : memref<9x32x32xbf16, #tpu.memory_space<vmem>>, vector<1x32x32xbf16>
    %48 = vector.shape_cast %47 : vector<1x32x32xbf16> to vector<32x32xbf16>
    %cst_43 = arith.constant dense<0.000000e+00> : vector<256x32xf32>
    %49 = tpu.matmul %46, %48, %cst_43 {dimension_numbers = #tpu.dot_dimension_numbers<[1], [0], [0], [1], [0, 0, 1, 1], [], []>} : vector<256x32xbf16>, vector<32x32xbf16>, vector<256x32xf32> -> vector<256x32xf32>
    %50 = arith.addf %43, %49 : vector<256x32xf32>
    %c1_44 = arith.constant 1 : index
    %c9_45 = arith.constant 9 : index
    %c0_46 = arith.constant 0 : index
    %51 = vector.load %arg9[%c1_44, %c9_45, %c0_46] : memref<18x32x32xf32, #tpu.memory_space<vmem>>, vector<16x16x32xf32>
    %52 = vector.shape_cast %51 : vector<16x16x32xf32> to vector<256x32xf32>
    %53 = arith.truncf %52 : vector<256x32xf32> to vector<256x32xbf16>
    %c5 = arith.constant 5 : index
    %c0_47 = arith.constant 0 : index
    %c0_48 = arith.constant 0 : index
    %54 = vector.load %arg4[%c5, %c0_47, %c0_48] : memref<9x32x32xbf16, #tpu.memory_space<vmem>>, vector<1x32x32xbf16>
    %55 = vector.shape_cast %54 : vector<1x32x32xbf16> to vector<32x32xbf16>
    %cst_49 = arith.constant dense<0.000000e+00> : vector<256x32xf32>
    %56 = tpu.matmul %53, %55, %cst_49 {dimension_numbers = #tpu.dot_dimension_numbers<[1], [0], [0], [1], [0, 0, 1, 1], [], []>} : vector<256x32xbf16>, vector<32x32xbf16>, vector<256x32xf32> -> vector<256x32xf32>
    %57 = arith.addf %50, %56 : vector<256x32xf32>
    %c2_50 = arith.constant 2 : index
    %c7_51 = arith.constant 7 : index
    %c0_52 = arith.constant 0 : index
    %58 = vector.load %arg9[%c2_50, %c7_51, %c0_52] : memref<18x32x32xf32, #tpu.memory_space<vmem>>, vector<16x16x32xf32>
    %59 = vector.shape_cast %58 : vector<16x16x32xf32> to vector<256x32xf32>
    %60 = arith.truncf %59 : vector<256x32xf32> to vector<256x32xbf16>
    %c6 = arith.constant 6 : index
    %c0_53 = arith.constant 0 : index
    %c0_54 = arith.constant 0 : index
    %61 = vector.load %arg4[%c6, %c0_53, %c0_54] : memref<9x32x32xbf16, #tpu.memory_space<vmem>>, vector<1x32x32xbf16>
    %62 = vector.shape_cast %61 : vector<1x32x32xbf16> to vector<32x32xbf16>
    %cst_55 = arith.constant dense<0.000000e+00> : vector<256x32xf32>
    %63 = tpu.matmul %60, %62, %cst_55 {dimension_numbers = #tpu.dot_dimension_numbers<[1], [0], [0], [1], [0, 0, 1, 1], [], []>} : vector<256x32xbf16>, vector<32x32xbf16>, vector<256x32xf32> -> vector<256x32xf32>
    %64 = arith.addf %57, %63 : vector<256x32xf32>
    %c2_56 = arith.constant 2 : index
    %c8_57 = arith.constant 8 : index
    %c0_58 = arith.constant 0 : index
    %65 = vector.load %arg9[%c2_56, %c8_57, %c0_58] : memref<18x32x32xf32, #tpu.memory_space<vmem>>, vector<16x16x32xf32>
    %66 = vector.shape_cast %65 : vector<16x16x32xf32> to vector<256x32xf32>
    %67 = arith.truncf %66 : vector<256x32xf32> to vector<256x32xbf16>
    %c7_59 = arith.constant 7 : index
    %c0_60 = arith.constant 0 : index
    %c0_61 = arith.constant 0 : index
    %68 = vector.load %arg4[%c7_59, %c0_60, %c0_61] : memref<9x32x32xbf16, #tpu.memory_space<vmem>>, vector<1x32x32xbf16>
    %69 = vector.shape_cast %68 : vector<1x32x32xbf16> to vector<32x32xbf16>
    %cst_62 = arith.constant dense<0.000000e+00> : vector<256x32xf32>
    %70 = tpu.matmul %67, %69, %cst_62 {dimension_numbers = #tpu.dot_dimension_numbers<[1], [0], [0], [1], [0, 0, 1, 1], [], []>} : vector<256x32xbf16>, vector<32x32xbf16>, vector<256x32xf32> -> vector<256x32xf32>
    %71 = arith.addf %64, %70 : vector<256x32xf32>
    %c2_63 = arith.constant 2 : index
    %c9_64 = arith.constant 9 : index
    %c0_65 = arith.constant 0 : index
    %72 = vector.load %arg9[%c2_63, %c9_64, %c0_65] : memref<18x32x32xf32, #tpu.memory_space<vmem>>, vector<16x16x32xf32>
    %73 = vector.shape_cast %72 : vector<16x16x32xf32> to vector<256x32xf32>
    %74 = arith.truncf %73 : vector<256x32xf32> to vector<256x32xbf16>
    %c8_66 = arith.constant 8 : index
    %c0_67 = arith.constant 0 : index
    %c0_68 = arith.constant 0 : index
    %75 = vector.load %arg4[%c8_66, %c0_67, %c0_68] : memref<9x32x32xbf16, #tpu.memory_space<vmem>>, vector<1x32x32xbf16>
    %76 = vector.shape_cast %75 : vector<1x32x32xbf16> to vector<32x32xbf16>
    %cst_69 = arith.constant dense<0.000000e+00> : vector<256x32xf32>
    %77 = tpu.matmul %74, %76, %cst_69 {dimension_numbers = #tpu.dot_dimension_numbers<[1], [0], [0], [1], [0, 0, 1, 1], [], []>} : vector<256x32xbf16>, vector<32x32xbf16>, vector<256x32xf32> -> vector<256x32xf32>
    %78 = arith.addf %71, %77 : vector<256x32xf32>
    %c0_70 = arith.constant 0 : index
    %c0_71 = arith.constant 0 : index
    %79 = vector.load %arg5[%c0_70, %c0_71] : memref<1x32xf32, #tpu.memory_space<vmem>>, vector<1x32xf32>
    %80 = vector.broadcast %79 : vector<1x32xf32> to vector<256x32xf32>
    %81 = arith.addf %78, %80 : vector<256x32xf32>
    %cst_72 = arith.constant 0.000000e+00 : f32
    %82 = vector.broadcast %cst_72 : f32 to vector<256x32xf32>
    %83 = arith.maximumf %81, %82 : vector<256x32xf32>
    %84 = arith.truncf %83 : vector<256x32xf32> to vector<256x32xbf16>
    %c0_73 = arith.constant 0 : index
    %c0_74 = arith.constant 0 : index
    %85 = vector.load %arg6[%c0_73, %c0_74] : memref<32x128xbf16, #tpu.memory_space<vmem>>, vector<32x128xbf16>
    %cst_75 = arith.constant dense<0.000000e+00> : vector<256x128xf32>
    %86 = tpu.matmul %84, %85, %cst_75 {dimension_numbers = #tpu.dot_dimension_numbers<[1], [0], [0], [1], [0, 0, 1, 1], [], []>} : vector<256x32xbf16>, vector<32x128xbf16>, vector<256x128xf32> -> vector<256x128xf32>
    %c0_76 = arith.constant 0 : index
    %c0_77 = arith.constant 0 : index
    %87 = vector.load %arg7[%c0_76, %c0_77] : memref<1x128xf32, #tpu.memory_space<vmem>>, vector<1x128xf32>
    %88 = vector.broadcast %87 : vector<1x128xf32> to vector<256x128xf32>
    %89 = arith.addf %86, %88 : vector<256x128xf32>
    %90 = arith.addf %89, %2 : vector<256x128xf32>
    %cst_78 = arith.constant 0.000000e+00 : f32
    %91 = vector.broadcast %cst_78 : f32 to vector<256x128xf32>
    %92 = arith.maximumf %90, %91 : vector<256x128xf32>
    %93 = vector.shape_cast %92 : vector<256x128xf32> to vector<16x16x128xf32>
    %c0_79 = arith.constant 0 : index
    %c0_80 = arith.constant 0 : index
    %c0_81 = arith.constant 0 : index
    %c0_82 = arith.constant 0 : index
    %94 = vector.load %arg8[%c0_79, %c0_80, %c0_81, %c0_82] : memref<1x16x16x128xf32, #tpu.memory_space<vmem>>, vector<1x16x16x128xf32>
    %95 = vector.shape_cast %94 : vector<1x16x16x128xf32> to vector<16x16x128xf32>
    %96 = vector.shape_cast %93 : vector<16x16x128xf32> to vector<1x16x16x128xf32>
    tpu.vector_store %arg8[%c0_79, %c0_80, %c0_81, %c0_82], %96 {strides = array<i32>} : memref<1x16x16x128xf32, #tpu.memory_space<vmem>>, vector<1x16x16x128xf32>,
    return
  }
  func.func @transform_0(%arg0: i32) -> (i32, i32, i32, i32) {
    %c0_i32 = arith.constant 0 : i32
    %c0_i32_0 = arith.constant 0 : i32
    %c0_i32_1 = arith.constant 0 : i32
    %c0_i32_2 = arith.constant 0 : i32
    return %arg0, %c0_i32, %c0_i32_0, %c0_i32_1 : i32, i32, i32, i32
  }
  func.func @transform_1(%arg0: i32) -> (i32, i32) {
    %c0_i32 = arith.constant 0 : i32
    %c0_i32_0 = arith.constant 0 : i32
    %c0_i32_1 = arith.constant 0 : i32
    return %c0_i32, %c0_i32_0 : i32, i32
  }
  func.func @transform_2(%arg0: i32) -> (i32, i32) {
    %c0_i32 = arith.constant 0 : i32
    %c0_i32_0 = arith.constant 0 : i32
    %c0_i32_1 = arith.constant 0 : i32
    return %c0_i32, %c0_i32_0 : i32, i32
  }
  func.func @transform_3(%arg0: i32) -> (i32, i32, i32) {
    %c0_i32 = arith.constant 0 : i32
    %c0_i32_0 = arith.constant 0 : i32
    %c0_i32_1 = arith.constant 0 : i32
    %c0_i32_2 = arith.constant 0 : i32
    return %c0_i32, %c0_i32_0, %c0_i32_1 : i32, i32, i32
  }
  func.func @transform_4(%arg0: i32) -> (i32, i32) {
    %c0_i32 = arith.constant 0 : i32
    %c0_i32_0 = arith.constant 0 : i32
    %c0_i32_1 = arith.constant 0 : i32
    return %c0_i32, %c0_i32_0 : i32, i32
  }
  func.func @transform_5(%arg0: i32) -> (i32, i32) {
    %c0_i32 = arith.constant 0 : i32
    %c0_i32_0 = arith.constant 0 : i32
    %c0_i32_1 = arith.constant 0 : i32
    return %c0_i32, %c0_i32_0 : i32, i32
  }
  func.func @transform_6(%arg0: i32) -> (i32, i32) {
    %c0_i32 = arith.constant 0 : i32
    %c0_i32_0 = arith.constant 0 : i32
    %c0_i32_1 = arith.constant 0 : i32
    return %c0_i32, %c0_i32_0 : i32, i32
  }
  func.func @transform_7(%arg0: i32) -> (i32, i32, i32, i32) {
    %c0_i32 = arith.constant 0 : i32
    %c0_i32_0 = arith.constant 0 : i32
    %c0_i32_1 = arith.constant 0 : i32
    %c0_i32_2 = arith.constant 0 : i32
    return %arg0, %c0_i32, %c0_i32_0, %c0_i32_1 : i32, i32, i32, i32
  }
}

</mosaic_0001>

<llo_original>
// kernel: bottleneck_pallas.1
$region0: #{bottleneck_pallas.1}
  #allocation0 [shape = 'u32[]', space=smem, size = 0x4, offset = 0x4, fixed_abs, tag = 'smem constant byte address 0x4 - core index']
  #allocation1 [shape = 'u32[144,128]{1,0:T(1,128)}', space=vmem, size = 0x12000, scoped, tag = 'internal scratch']
  #allocation2 [shape = 'f32[18,32,32]{2,1,0:T(8,128)}', space=vmem, size = 0x48000, scoped, tag = 'scratch operand']
  %s0 = inlined_call_operand.vmem [shape: f32[2,16,16,128], index: 0, kind: input, shape index: {}]
  %s1 = inlined_call_operand.vmem [shape: bf16[128,32], index: 1, kind: input, shape index: {}]
  %s2 = inlined_call_operand.vmem [shape: f32[1,32], index: 2, kind: input, shape index: {}]
  %s3 = inlined_call_operand.vmem [shape: bf16[9,32,32], index: 3, kind: input, shape index: {}]
  %s4 = inlined_call_operand.vmem [shape: f32[1,32], index: 4, kind: input, shape index: {}]
  %s5 = inlined_call_operand.vmem [shape: bf16[32,128], index: 5, kind: input, shape index: {}]
  %s6 = inlined_call_operand.vmem [shape: f32[1,128], index: 6, kind: input, shape index: {}]
  %s7 = inlined_call_operand.hbm [shape: f32[2,16,16,128], index: 7, kind: output, shape index: {}]
  %s8 = sld [smem:[#allocation0]]
  $region61: #{bottleneck_pallas.1} parent=0
    _
  %s10 = ssub.s32 1, %s8
  %s11 = scalar_select 0, %s10, %s8
  $region1: #{bottleneck_pallas.1} parent=0
    #allocation3 [shape = 'u8[262144]{0}', space=vmem, size = 0x40000, scoped, tag = 'output window, operand 0']
    #allocation4 [shape = 's32[2]{0}', space=sflag, size = 0x8, scoped, tag = 'scoped memory for bottleneck_pallas.1']
    %12 = vsyncpa [#allocation4], 0
    %s13 = scalar_lea.sflag [#allocation4], 1
    %14 = vsyncpa %s13, 0
    loop: start=0, step=1, limit=4
    $region2: #{bottleneck_pallas.1} parent=1 // loop_pre_header
      _
    $region3: #{bottleneck_pallas.1} parent=1 // loop_header
      %s16 = sphi 0, %s20
      %p17 = scmp.ge.s32.totalorder %s16, 4
      %s26 = sphi 0, %s28
      %s29 = sphi 0, %s26
      %s30 = sphi 0, %s29
      %s46 = sphi 0, %s30
      %s50 = sphi 0, %s50
      %s52 = sphi 0, %s50
      %s53 = sphi 0, %s52
      %s67 = sphi 0, %s53
      %s71 = sphi 0, %s71
      %s73 = sphi 0, %s71
      %s74 = sphi 0, %s73
      %s88 = sphi 0, %s74
      %s92 = sphi 0, %s92
      %s94 = sphi 0, %s92
      %s95 = sphi 0, %s94
      %s109 = sphi 0, %s95
      %s113 = sphi 0, %s113
      %s115 = sphi 0, %s113
      %s116 = sphi 0, %s115
      %s130 = sphi 0, %s116
      %s134 = sphi 0, %s134
      %s136 = sphi 0, %s134
      %s137 = sphi 0, %s136
      %s151 = sphi 0, %s137
      %s155 = sphi 0, %s155
      %s157 = sphi 0, %s155
      %s158 = sphi 0, %s157
      %s172 = sphi 0, %s158
      %s178 = sphi 0, %s180
      %s181 = sphi 0, %s178
      %s182 = sphi 0, %s181
      %s198 = sphi 0, %s182
    $region4: #{bottleneck_pallas.1} parent=1 // loop_header_branch
      %19 = sbr.rel (%p17) target = $region8
    $region5: #{bottleneck_pallas.1} parent=1 // loop_body
      %s21 = ssub.s32 %s16, 1
      %s22 = ssub.s32 %s16, 2
      %s23 = sadd.s32 %s16, 1
      %s24 = ssub.s32 %s16, %s23
      %p25 = scmp.eq.s32.totalorder %s24, 0
      %s27 = sadd.s32 %s26, 1
      %s28 = scalar_select %p25, %s26, %s27
      %p31 = pneg %p25
      %p32 = scmp.eq.s32.totalorder %s16, 1
      %p33 = por %p31, %p32
      %p34 = scmp.ne.s32.totalorder %s26, %s29
      %p35 = scmp.eq.s32.totalorder %s16, 0
      %p36 = por %p34, %p35
      %p37 = scmp.ne.s32.totalorder %s26, %s29
      %p38 = scmp.eq.s32.totalorder %s21, 1
      %p39 = por %p37, %p38
      %p40 = scmp.ne.s32.totalorder %s29, %s30
      %p41 = scmp.eq.s32.totalorder %s21, 0
      %p42 = por %p40, %p41
      %p43 = scmp.ne.s32.totalorder %s29, %s30
      %p44 = scmp.eq.s32.totalorder %s22, 1
      %p45 = por %p43, %p44
      %p47 = scmp.ne.s32.totalorder %s30, %s46
      %p48 = scmp.eq.s32.totalorder %s22, 0
      %p49 = por %p47, %p48
      %s51 = sadd.s32 %s50, 1
      %p54 = scmp.eq.s32.totalorder %s16, 1
      %p55 = scmp.ne.s32.totalorder %s50, %s52
      %p56 = scmp.eq.s32.totalorder %s16, 0
      %p57 = por %p55, %p56
      %p58 = scmp.ne.s32.totalorder %s50, %s52
      %p59 = scmp.eq.s32.totalorder %s21, 1
      %p60 = por %p58, %p59
      %p61 = scmp.ne.s32.totalorder %s52, %s53
      %p62 = scmp.eq.s32.totalorder %s21, 0
      %p63 = por %p61, %p62
      %p64 = scmp.ne.s32.totalorder %s52, %s53
      %p65 = scmp.eq.s32.totalorder %s22, 1
      %p66 = por %p64, %p65
      %p68 = scmp.ne.s32.totalorder %s53, %s67
      %p69 = scmp.eq.s32.totalorder %s22, 0
      %p70 = por %p68, %p69
      %s72 = sadd.s32 %s71, 1
      %p75 = scmp.eq.s32.totalorder %s16, 1
      %p76 = scmp.ne.s32.totalorder %s71, %s73
      %p77 = scmp.eq.s32.totalorder %s16, 0
      %p78 = por %p76, %p77
      %p79 = scmp.ne.s32.totalorder %s71, %s73
      %p80 = scmp.eq.s32.totalorder %s21, 1
      %p81 = por %p79, %p80
      %p82 = scmp.ne.s32.totalorder %s73, %s74
      %p83 = scmp.eq.s32.totalorder %s21, 0
      %p84 = por %p82, %p83
      %p85 = scmp.ne.s32.totalorder %s73, %s74
      %p86 = scmp.eq.s32.totalorder %s22, 1
      %p87 = por %p85, %p86
      %p89 = scmp.ne.s32.totalorder %s74, %s88
      %p90 = scmp.eq.s32.totalorder %s22, 0
      %p91 = por %p89, %p90
      %s93 = sadd.s32 %s92, 1
      %p96 = scmp.eq.s32.totalorder %s16, 1
      %p97 = scmp.ne.s32.totalorder %s92, %s94
      %p98 = scmp.eq.s32.totalorder %s16, 0
      %p99 = por %p97, %p98
      %p100 = scmp.ne.s32.totalorder %s92, %s94
      %p101 = scmp.eq.s32.totalorder %s21, 1
      %p102 = por %p100, %p101
      %p103 = scmp.ne.s32.totalorder %s94, %s95
      %p104 = scmp.eq.s32.totalorder %s21, 0
      %p105 = por %p103, %p104
      %p106 = scmp.ne.s32.totalorder %s94, %s95
      %p107 = scmp.eq.s32.totalorder %s22, 1
      %p108 = por %p106, %p107
      %p110 = scmp.ne.s32.totalorder %s95, %s109
      %p111 = scmp.eq.s32.totalorder %s22, 0
      %p112 = por %p110, %p111
      %s114 = sadd.s32 %s113, 1
      %p117 = scmp.eq.s32.totalorder %s16, 1
      %p118 = scmp.ne.s32.totalorder %s113, %s115
      %p119 = scmp.eq.s32.totalorder %s16, 0
      %p120 = por %p118, %p119
      %p121 = scmp.ne.s32.totalorder %s113, %s115
      %p122 = scmp.eq.s32.totalorder %s21, 1
      %p123 = por %p121, %p122
      %p124 = scmp.ne.s32.totalorder %s115, %s116
      %p125 = scmp.eq.s32.totalorder %s21, 0
      %p126 = por %p124, %p125
      %p127 = scmp.ne.s32.totalorder %s115, %s116
      %p128 = scmp.eq.s32.totalorder %s22, 1
      %p129 = por %p127, %p128
      %p131 = scmp.ne.s32.totalorder %s116, %s130
      %p132 = scmp.eq.s32.totalorder %s22, 0
      %p133 = por %p131, %p132
      %s135 = sadd.s32 %s134, 1
      %p138 = scmp.eq.s32.totalorder %s16, 1
      %p139 = scmp.ne.s32.totalorder %s134, %s136
      %p140 = scmp.eq.s32.totalorder %s16, 0
      %p141 = por %p139, %p140
      %p142 = scmp.ne.s32.totalorder %s134, %s136
      %p143 = scmp.eq.s32.totalorder %s21, 1
      %p144 = por %p142, %p143
      %p145 = scmp.ne.s32.totalorder %s136, %s137
      %p146 = scmp.eq.s32.totalorder %s21, 0
      %p147 = por %p145, %p146
      %p148 = scmp.ne.s32.totalorder %s136, %s137
      %p149 = scmp.eq.s32.totalorder %s22, 1
      %p150 = por %p148, %p149
      %p152 = scmp.ne.s32.totalorder %s137, %s151
      %p153 = scmp.eq.s32.totalorder %s22, 0
      %p154 = por %p152, %p153
      %s156 = sadd.s32 %s155, 1
      %p159 = scmp.eq.s32.totalorder %s16, 1
      %p160 = scmp.ne.s32.totalorder %s155, %s157
      %p161 = scmp.eq.s32.totalorder %s16, 0
      %p162 = por %p160, %p161
      %p163 = scmp.ne.s32.totalorder %s155, %s157
      %p164 = scmp.eq.s32.totalorder %s21, 1
      %p165 = por %p163, %p164
      %p166 = scmp.ne.s32.totalorder %s157, %s158
      %p167 = scmp.eq.s32.totalorder %s21, 0
      %p168 = por %p166, %p167
      %p169 = scmp.ne.s32.totalorder %s157, %s158
      %p170 = scmp.eq.s32.totalorder %s22, 1
      %p171 = por %p169, %p170
      %p173 = scmp.ne.s32.totalorder %s158, %s172
      %p174 = scmp.eq.s32.totalorder %s22, 0
      %p175 = por %p173, %p174
      %s176 = ssub.s32 %s16, %s23
      %p177 = scmp.eq.s32.totalorder %s176, 0
      %s179 = sadd.s32 %s178, 1
      %s180 = scalar_select %p177, %s178, %s179
      %p183 = pneg %p177
      %p184 = scmp.eq.s32.totalorder %s16, 1
      %p185 = por %p183, %p184
      %p186 = scmp.ne.s32.totalorder %s178, %s181
      %p187 = scmp.eq.s32.totalorder %s16, 0
      %p188 = por %p186, %p187
      %p189 = scmp.ne.s32.totalorder %s178, %s181
      %p190 = scmp.eq.s32.totalorder %s21, 1
      %p191 = por %p189, %p190
      %p192 = scmp.ne.s32.totalorder %s181, %s182
      %p193 = scmp.eq.s32.totalorder %s21, 0
      %p194 = por %p192, %p193
      %p195 = scmp.ne.s32.totalorder %s181, %s182
      %p196 = scmp.eq.s32.totalorder %s22, 1
      %p197 = por %p195, %p196
      %p199 = scmp.ne.s32.totalorder %s182, %s198
      %p200 = scmp.eq.s32.totalorder %s22, 0
      %p201 = por %p199, %p200
      %p202 = scmp.le.s32.totalorder 1, %s16
      %p203 = scmp.lt.s32.totalorder %s16, 3
      %p204 = pnand %p202, %p203
      %p205 = pneg %p204
      // Predicated region
      $region9: #{bottleneck_pallas.1} parent=5 // pred_check
        _
      $region10: #{bottleneck_pallas.1} parent=5 // pred_check_branch
        %207 = sbr.rel (%p204) target = $region12
      $region11: #{bottleneck_pallas.1} parent=5 // pred_region
        %s208 = ssub.s32 %s16, 1
        // Predicated region
        $region13: #{bottleneck_pallas.1} parent=11 // pred_check
          %p209 = pneg %p63
        $region14: #{bottleneck_pallas.1} parent=11 // pred_check_branch
          %211 = sbr.rel (%p209) target = $region16
        $region15: #{bottleneck_pallas.1} parent=11 // pred_region
          _
        $region16: #{bottleneck_pallas.1} parent=11 // pred_fallthru
          _
        // Predicated region
        $region17: #{bottleneck_pallas.1} parent=11 // pred_check
          %p212 = pneg %p84
        $region18: #{bottleneck_pallas.1} parent=11 // pred_check_branch
          %214 = sbr.rel (%p212) target = $region20
        $region19: #{bottleneck_pallas.1} parent=11 // pred_region
          _
        $region20: #{bottleneck_pallas.1} parent=11 // pred_fallthru
          _
        // Predicated region
        $region21: #{bottleneck_pallas.1} parent=11 // pred_check
          %p215 = pneg %p105
        $region22: #{bottleneck_pallas.1} parent=11 // pred_check_branch
          %217 = sbr.rel (%p215) target = $region24
        $region23: #{bottleneck_pallas.1} parent=11 // pred_region
          _
        $region24: #{bottleneck_pallas.1} parent=11 // pred_fallthru
          _
        // Predicated region
        $region25: #{bottleneck_pallas.1} parent=11 // pred_check
          %p218 = pneg %p126
        $region26: #{bottleneck_pallas.1} parent=11 // pred_check_branch
          %220 = sbr.rel (%p218) target = $region28
        $region27: #{bottleneck_pallas.1} parent=11 // pred_region
          _
        $region28: #{bottleneck_pallas.1} parent=11 // pred_fallthru
          _
        // Predicated region
        $region29: #{bottleneck_pallas.1} parent=11 // pred_check
          %p221 = pneg %p147
        $region30: #{bottleneck_pallas.1} parent=11 // pred_check_branch
          %223 = sbr.rel (%p221) target = $region32
        $region31: #{bottleneck_pallas.1} parent=11 // pred_region
          _
        $region32: #{bottleneck_pallas.1} parent=11 // pred_fallthru
          _
        // Predicated region
        $region33: #{bottleneck_pallas.1} parent=11 // pred_check
          %p224 = pneg %p168
        $region34: #{bottleneck_pallas.1} parent=11 // pred_check_branch
          %226 = sbr.rel (%p224) target = $region36
        $region35: #{bottleneck_pallas.1} parent=11 // pred_region
          _
        $region36: #{bottleneck_pallas.1} parent=11 // pred_fallthru
          _
      $region12: #{bottleneck_pallas.1} parent=5 // pred_fallthru
        _
      %p227 = scmp.lt.s32.totalorder %s16, 2
      // Predicated region
      $region37: #{bottleneck_pallas.1} parent=5 // pred_check
        %p228 = pneg %p227
      $region38: #{bottleneck_pallas.1} parent=5 // pred_check_branch
        %230 = sbr.rel (%p228) target = $region40
      $region39: #{bottleneck_pallas.1} parent=5 // pred_region
        // Predicated region
        $region41: #{bottleneck_pallas.1} parent=39 // pred_check
          %p231 = pneg %p36
        $region42: #{bottleneck_pallas.1} parent=39 // pred_check_branch
          %233 = sbr.rel (%p231) target = $region44
        $region43: #{bottleneck_pallas.1} parent=39 // pred_region
          %p234 = scmp.lt.s32.totalorder %s16, 1
          %s235 = scalar_select %p234, %s16, 1
          %s236 = smul.addr %s235, 32
          %s237 = smul.addr %s236, 8
          %s238 = scalar_lea.vmem %s0, %s237
        $region44: #{bottleneck_pallas.1} parent=39 // pred_fallthru
          _
      $region40: #{bottleneck_pallas.1} parent=5 // pred_fallthru
        _
      %p239 = scmp.le.s32.totalorder 1, %s16
      %p240 = scmp.lt.s32.totalorder %s16, 3
      %p241 = pnand %p239, %p240
      %p242 = pneg %p241
      // Predicated region
      $region45: #{bottleneck_pallas.1} parent=5 // pred_check
        _
      $region46: #{bottleneck_pallas.1} parent=5 // pred_check_branch
        %244 = sbr.rel (%p241) target = $region48
      $region47: #{bottleneck_pallas.1} parent=5 // pred_region
        %s245 = ssub.s32 %s16, 1
        %p246 = scmp.lt.s32.totalorder %s21, 1
        %s247 = scalar_select %p246, %s21, 1
        %s248 = smul.addr %s247, 32
        %s249 = smul.addr %s248, 8
        %s250 = scalar_lea.vmem %s0, %s249
        %p251 = pneg %p42
        %p252 = pneg %p39
        %p253 = pneg %p63
        %p254 = pneg %p60
        %p255 = pneg %p84
        %p256 = pneg %p81
        %p257 = pneg %p105
        %p258 = pneg %p102
        %p259 = pneg %p126
        %p260 = pneg %p123
        %p261 = pneg %p147
        %p262 = pneg %p144
        %p263 = pneg %p168
        %p264 = pneg %p165
        %p265 = pneg %p194
        %p266 = pneg %p191
        %s267 = sand.u32 %s181, 1
        %s268 = scalar_lea.sflag [#allocation4], %s267
        %s269 = sand.u32 %s181, 1
        %s270 = smul.addr %s269, 256
        %s271 = scalar_lea.vmem [#allocation3], %s270
        %p272 = scmp.lt.s32.totalorder %s21, 1
        %s273 = scalar_select %p272, %s21, 1
        %s274 = smul.addr %s273, 32
        %s275 = smul.addr %s274, 8
        %s276 = scalar_lea.vmem %s0, %s275
        %v278 = vld [vmem:[%s276] sm:$0xff]
        %v279 = vld [vmem:[%s276 + $0x8] sm:$0xff]
        %v280 = vld [vmem:[%s276 + $0x10] sm:$0xff]
        %v281 = vld [vmem:[%s276 + $0x18] sm:$0xff]
        %v282 = vld [vmem:[%s276 + $0x20] sm:$0xff]
        %v283 = vld [vmem:[%s276 + $0x28] sm:$0xff]
        %v284 = vld [vmem:[%s276 + $0x30] sm:$0xff]
        %v285 = vld [vmem:[%s276 + $0x38] sm:$0xff]
        %v286 = vld [vmem:[%s276 + $0x40] sm:$0xff]
        %v287 = vld [vmem:[%s276 + $0x48] sm:$0xff]
        %v288 = vld [vmem:[%s276 + $0x50] sm:$0xff]
        %v289 = vld [vmem:[%s276 + $0x58] sm:$0xff]
        %v290 = vld [vmem:[%s276 + $0x60] sm:$0xff]
        %v291 = vld [vmem:[%s276 + $0x68] sm:$0xff]
        %v292 = vld [vmem:[%s276 + $0x70] sm:$0xff]
        %v293 = vld [vmem:[%s276 + $0x78] sm:$0xff]
        %v294 = vld [vmem:[%s276 + $0x80] sm:$0xff]
        %v295 = vld [vmem:[%s276 + $0x88] sm:$0xff]
        %v296 = vld [vmem:[%s276 + $0x90] sm:$0xff]
        %v297 = vld [vmem:[%s276 + $0x98] sm:$0xff]
        %v298 = vld [vmem:[%s276 + $0xa0] sm:$0xff]
        %v299 = vld [vmem:[%s276 + $0xa8] sm:$0xff]
        %v300 = vld [vmem:[%s276 + $0xb0] sm:$0xff]
        %v301 = vld [vmem:[%s276 + $0xb8] sm:$0xff]
        %v302 = vld [vmem:[%s276 + $0xc0] sm:$0xff]
        %v303 = vld [vmem:[%s276 + $0xc8] sm:$0xff]
        %v304 = vld [vmem:[%s276 + $0xd0] sm:$0xff]
        %v305 = vld [vmem:[%s276 + $0xd8] sm:$0xff]
        %v306 = vld [vmem:[%s276 + $0xe0] sm:$0xff]
        %v307 = vld [vmem:[%s276 + $0xe8] sm:$0xff]
        %v308 = vld [vmem:[%s276 + $0xf0] sm:$0xff]
        %v309 = vld [vmem:[%s276 + $0xf8] sm:$0xff]
        %v310 = vpack.c.bf16 %v279, %v278
        %v311 = vpack.c.bf16 %v281, %v280
        %v312 = vpack.c.bf16 %v283, %v282
        %v313 = vpack.c.bf16 %v285, %v284
        %v314 = vpack.c.bf16 %v287, %v286
        %v315 = vpack.c.bf16 %v289, %v288
        %v316 = vpack.c.bf16 %v291, %v290
        %v317 = vpack.c.bf16 %v293, %v292
        %v318 = vpack.c.bf16 %v295, %v294
        %v319 = vpack.c.bf16 %v297, %v296
        %v320 = vpack.c.bf16 %v299, %v298
        %v321 = vpack.c.bf16 %v301, %v300
        %v322 = vpack.c.bf16 %v303, %v302
        %v323 = vpack.c.bf16 %v305, %v304
        %v324 = vpack.c.bf16 %v307, %v306
        %v325 = vpack.c.bf16 %v309, %v308
        %v326 = vld [vmem:[%s1] sm:$0xf]
        %v327 = vld [vmem:[%s1 + $0x4] sm:$0xf]
        %v328 = vld [vmem:[%s1 + $0x8] sm:$0xf]
        %v329 = vld [vmem:[%s1 + $0xc] sm:$0xf]
        %v330 = vld [vmem:[%s1 + $0x10] sm:$0xf]
        %v331 = vld [vmem:[%s1 + $0x14] sm:$0xf]
        %v332 = vld [vmem:[%s1 + $0x18] sm:$0xf]
        %v333 = vld [vmem:[%s1 + $0x1c] sm:$0xf]
        %v334 = vld [vmem:[%s1 + $0x20] sm:$0xf]
        %v335 = vld [vmem:[%s1 + $0x24] sm:$0xf]
        %v336 = vld [vmem:[%s1 + $0x28] sm:$0xf]
        %v337 = vld [vmem:[%s1 + $0x2c] sm:$0xf]
        %v338 = vld [vmem:[%s1 + $0x30] sm:$0xf]
        %v339 = vld [vmem:[%s1 + $0x34] sm:$0xf]
        %v340 = vld [vmem:[%s1 + $0x38] sm:$0xf]
        %v341 = vld [vmem:[%s1 + $0x3c] sm:$0xf]
        %v342 = vld [vmem:[%s2] sm:$0x1]
        %v344 = vlaneseq
        %v345 = vshrl.u32 %v344, 7
        %v346 = vsub.s32 0, %v345
        %v347 = vrot.slane %v342, %v346
        %v365 = vunpack.c.l.b16 %v326
        %v366 = vunpack.c.l.b16 %v327
        %v367 = vunpack.c.l.b16 %v328
        %v368 = vunpack.c.l.b16 %v329
        %v369 = vunpack.c.l.b16 %v330
        %v370 = vunpack.c.l.b16 %v331
        %v371 = vunpack.c.l.b16 %v332
        %v372 = vunpack.c.l.b16 %v333
        %v373 = vunpack.c.l.b16 %v334
        %v374 = vunpack.c.l.b16 %v335
        %v375 = vunpack.c.l.b16 %v336
        %v376 = vunpack.c.l.b16 %v337
        %v377 = vunpack.c.l.b16 %v338
        %v378 = vunpack.c.l.b16 %v339
        %v379 = vunpack.c.l.b16 %v340
        %v380 = vunpack.c.l.b16 %v341
        %v381 = vpack.c.b16 %v366, %v365
        %v382 = vpack.c.b16 %v368, %v367
        %v383 = vpack.c.b16 %v370, %v369
        %v384 = vpack.c.b16 %v372, %v371
        %v385 = vpack.c.b16 %v374, %v373
        %v386 = vpack.c.b16 %v376, %v375
        %v387 = vpack.c.b16 %v378, %v377
        %v388 = vpack.c.b16 %v380, %v379
        %397 = vmatprep.subr.bf16.mxu0 0
        %398 = vmatpush1.bf16.msra.mxu0 %v388
        %399 = vmatprep.subr.bf16.mxu0 0
        %400 = vmatpush1.bf16.msra.mxu0 %v387
        %401 = vmatprep.subr.bf16.mxu0 0
        %402 = vmatpush1.bf16.msra.mxu0 %v386
        %403 = vmatprep.subr.bf16.mxu0 0
        %404 = vmatpush1.bf16.msra.mxu0 %v385
        %405 = vmatprep.subr.bf16.mxu0 0
        %406 = vmatpush1.bf16.msra.mxu0 %v384
        %407 = vmatprep.subr.bf16.mxu0 0
        %408 = vmatpush1.bf16.msra.mxu0 %v383
        %409 = vmatprep.subr.bf16.mxu0 0
        %410 = vmatpush1.bf16.msra.mxu0 %v382
        %411 = vmatprep.subr.bf16.mxu0 0
        %412 = vmatpush1.bf16.msra.mxu0 %v381
        %413 = vmatprep.subr.bf16.mxu0 0
        %414 = vmatpush2.bf16.msra.mxu0 0
        %415 = vmatprep.subr.bf16.mxu0 0
        %416 = vmatpush2.bf16.msra.mxu0 0
        %417 = vmatprep.subr.bf16.mxu0 0
        %418 = vmatpush2.bf16.msra.mxu0 0
        %419 = vmatprep.subr.bf16.mxu0 0
        %420 = vmatpush2.bf16.msra.mxu0 0
        %421 = vmatprep.subr.bf16.mxu0 0
        %422 = vmatpush2.bf16.msra.mxu0 0
        %423 = vmatprep.subr.bf16.mxu0 0
        %424 = vmatpush2.bf16.msra.mxu0 0
        %425 = vmatprep.subr.bf16.mxu0 0
        %426 = vmatpush2.bf16.msra.mxu0 0
        %427 = vmatprep.subr.bf16.mxu0 0
        %428 = vmatpush2.bf16.msra.mxu0 0
        %429 = vmatprep.mubr.bf16.mxu0 0
        %430 = vmatmul.mubr.bf16.gmra.mxu0 %v310
        %v431 = vpop.f32.mrf.mxu0
        %v432 = vadd.f32 %v347, %v431
        %v433 = vpop.f32.mrf.mxu0
        %v434 = vpop.f32.mrf.mxu0
        %v435 = vadd.f32 %v347, %v434
        %v436 = vpop.f32.mrf.mxu0
        %437 = vmatprep.mubr.bf16.mxu0 0
        %438 = vmatmul.mubr.bf16.gmra.mxu0 %v311
        %v439 = vpop.f32.mrf.mxu0
        %v440 = vadd.f32 %v347, %v439
        %v441 = vpop.f32.mrf.mxu0
        %v442 = vpop.f32.mrf.mxu0
        %v443 = vadd.f32 %v347, %v442
        %v444 = vpop.f32.mrf.mxu0
        %445 = vmatprep.mubr.bf16.mxu0 0
        %446 = vmatmul.mubr.bf16.gmra.mxu0 %v312
        %v447 = vpop.f32.mrf.mxu0
        %v448 = vadd.f32 %v347, %v447
        %v449 = vpop.f32.mrf.mxu0
        %v450 = vpop.f32.mrf.mxu0
        %v451 = vadd.f32 %v347, %v450
        %v452 = vpop.f32.mrf.mxu0
        %453 = vmatprep.mubr.bf16.mxu0 0
        %454 = vmatmul.mubr.bf16.gmra.mxu0 %v313
        %v455 = vpop.f32.mrf.mxu0
        %v456 = vadd.f32 %v347, %v455
        %v457 = vpop.f32.mrf.mxu0
        %v458 = vpop.f32.mrf.mxu0
        %v459 = vadd.f32 %v347, %v458
        %v460 = vpop.f32.mrf.mxu0
        %461 = vmatprep.mubr.bf16.mxu0 0
        %462 = vmatmul.mubr.bf16.gmra.mxu0 %v314
        %v463 = vpop.f32.mrf.mxu0
        %v464 = vadd.f32 %v347, %v463
        %v465 = vpop.f32.mrf.mxu0
        %v466 = vpop.f32.mrf.mxu0
        %v467 = vadd.f32 %v347, %v466
        %v468 = vpop.f32.mrf.mxu0
        %469 = vmatprep.mubr.bf16.mxu0 0
        %470 = vmatmul.mubr.bf16.gmra.mxu0 %v315
        %v471 = vpop.f32.mrf.mxu0
        %v472 = vadd.f32 %v347, %v471
        %v473 = vpop.f32.mrf.mxu0
        %v474 = vpop.f32.mrf.mxu0
        %v475 = vadd.f32 %v347, %v474
        %v476 = vpop.f32.mrf.mxu0
        %477 = vmatprep.mubr.bf16.mxu0 0
        %478 = vmatmul.mubr.bf16.gmra.mxu0 %v316
        %v479 = vpop.f32.mrf.mxu0
        %v480 = vadd.f32 %v347, %v479
        %v481 = vpop.f32.mrf.mxu0
        %v482 = vpop.f32.mrf.mxu0
        %v483 = vadd.f32 %v347, %v482
        %v484 = vpop.f32.mrf.mxu0
        %485 = vmatprep.mubr.bf16.mxu0 0
        %486 = vmatmul.mubr.bf16.gmra.mxu0 %v317
        %v487 = vpop.f32.mrf.mxu0
        %v488 = vadd.f32 %v347, %v487
        %v489 = vpop.f32.mrf.mxu0
        %v490 = vpop.f32.mrf.mxu0
        %v491 = vadd.f32 %v347, %v490
        %v492 = vpop.f32.mrf.mxu0
        %493 = vmatprep.mubr.bf16.mxu0 0
        %494 = vmatmul.mubr.bf16.gmra.mxu0 %v318
        %v495 = vpop.f32.mrf.mxu0
        %v496 = vadd.f32 %v347, %v495
        %v497 = vpop.f32.mrf.mxu0
        %v498 = vpop.f32.mrf.mxu0
        %v499 = vadd.f32 %v347, %v498
        %v500 = vpop.f32.mrf.mxu0
        %501 = vmatprep.mubr.bf16.mxu0 0
        %502 = vmatmul.mubr.bf16.gmra.mxu0 %v319
        %v503 = vpop.f32.mrf.mxu0
        %v504 = vadd.f32 %v347, %v503
        %v505 = vpop.f32.mrf.mxu0
        %v506 = vpop.f32.mrf.mxu0
        %v507 = vadd.f32 %v347, %v506
        %v508 = vpop.f32.mrf.mxu0
        %509 = vmatprep.mubr.bf16.mxu0 0
        %510 = vmatmul.mubr.bf16.gmra.mxu0 %v320
        %v511 = vpop.f32.mrf.mxu0
        %v512 = vadd.f32 %v347, %v511
        %v513 = vpop.f32.mrf.mxu0
        %v514 = vpop.f32.mrf.mxu0
        %v515 = vadd.f32 %v347, %v514
        %v516 = vpop.f32.mrf.mxu0
        %517 = vmatprep.mubr.bf16.mxu0 0
        %518 = vmatmul.mubr.bf16.gmra.mxu0 %v321
        %v519 = vpop.f32.mrf.mxu0
        %v520 = vadd.f32 %v347, %v519
        %v521 = vpop.f32.mrf.mxu0
        %v522 = vpop.f32.mrf.mxu0
        %v523 = vadd.f32 %v347, %v522
        %v524 = vpop.f32.mrf.mxu0
        %525 = vmatprep.mubr.bf16.mxu0 0
        %526 = vmatmul.mubr.bf16.gmra.mxu0 %v322
        %v527 = vpop.f32.mrf.mxu0
        %v528 = vadd.f32 %v347, %v527
        %v529 = vpop.f32.mrf.mxu0
        %v530 = vpop.f32.mrf.mxu0
        %v531 = vadd.f32 %v347, %v530
        %v532 = vpop.f32.mrf.mxu0
        %533 = vmatprep.mubr.bf16.mxu0 0
        %534 = vmatmul.mubr.bf16.gmra.mxu0 %v323
        %v535 = vpop.f32.mrf.mxu0
        %v536 = vadd.f32 %v347, %v535
        %v537 = vpop.f32.mrf.mxu0
        %v538 = vpop.f32.mrf.mxu0
        %v539 = vadd.f32 %v347, %v538
        %v540 = vpop.f32.mrf.mxu0
        %541 = vmatprep.mubr.bf16.mxu0 0
        %542 = vmatmul.mubr.bf16.gmra.mxu0 %v324
        %v543 = vpop.f32.mrf.mxu0
        %v544 = vadd.f32 %v347, %v543
        %v545 = vpop.f32.mrf.mxu0
        %v546 = vpop.f32.mrf.mxu0
        %v547 = vadd.f32 %v347, %v546
        %v548 = vpop.f32.mrf.mxu0
        %549 = vmatprep.mubr.bf16.mxu0 0
        %550 = vmatmul.mubr.bf16.gmra.mxu0 %v325
        %v551 = vpop.f32.mrf.mxu0
        %v552 = vadd.f32 %v347, %v551
        %v553 = vpop.f32.mrf.mxu0
        %v554 = vpop.f32.mrf.mxu0
        %v555 = vadd.f32 %v347, %v554
        %v556 = vpop.f32.mrf.mxu0
        %557 = vdwg.mxu0
        %v558 = vmax.f32 %v432, 0.0
        %v559 = vmax.f32 %v435, 0.0
        %v560 = vmax.f32 %v440, 0.0
        %v561 = vmax.f32 %v443, 0.0
        %v562 = vmax.f32 %v448, 0.0
        %v563 = vmax.f32 %v451, 0.0
        %v564 = vmax.f32 %v456, 0.0
        %v565 = vmax.f32 %v459, 0.0
        %v566 = vmax.f32 %v464, 0.0
        %v567 = vmax.f32 %v467, 0.0
        %v568 = vmax.f32 %v472, 0.0
        %v569 = vmax.f32 %v475, 0.0
        %v570 = vmax.f32 %v480, 0.0
        %v571 = vmax.f32 %v483, 0.0
        %v572 = vmax.f32 %v488, 0.0
        %v573 = vmax.f32 %v491, 0.0
        %v574 = vmax.f32 %v496, 0.0
        %v575 = vmax.f32 %v499, 0.0
        %v576 = vmax.f32 %v504, 0.0
        %v577 = vmax.f32 %v507, 0.0
        %v578 = vmax.f32 %v512, 0.0
        %v579 = vmax.f32 %v515, 0.0
        %v580 = vmax.f32 %v520, 0.0
        %v581 = vmax.f32 %v523, 0.0
        %v582 = vmax.f32 %v528, 0.0
        %v583 = vmax.f32 %v531, 0.0
        %v584 = vmax.f32 %v536, 0.0
        %v585 = vmax.f32 %v539, 0.0
        %v586 = vmax.f32 %v544, 0.0
        %v587 = vmax.f32 %v547, 0.0
        %v588 = vmax.f32 %v552, 0.0
        %v589 = vmax.f32 %v555, 0.0
        %vm590 = vcmask 261120
        %591 = vst.msk [vmem:[#allocation2] sm:$0xff] %vm590, 0.0
        %592 = vst.msk [vmem:[#allocation2 + $0x8] sm:$0xff] %vm590, 0.0
        %593 = vst.msk [vmem:[#allocation2 + $0x10] sm:$0xff] %vm590, 0.0
        %594 = vst.msk [vmem:[#allocation2 + $0x18] sm:$0xff] %vm590, 0.0
        %595 = vst.msk [vmem:[#allocation2 + $0x20] sm:$0xff] %vm590, 0.0
        %596 = vst.msk [vmem:[#allocation2 + $0x28] sm:$0xff] %vm590, 0.0
        %597 = vst.msk [vmem:[#allocation2 + $0x30] sm:$0xff] %vm590, 0.0
        %598 = vst.msk [vmem:[#allocation2 + $0x38] sm:$0xff] %vm590, 0.0
        %599 = vst.msk [vmem:[#allocation2 + $0x40] sm:$0xff] %vm590, 0.0
        %600 = vst.msk [vmem:[#allocation2 + $0x48] sm:$0xff] %vm590, 0.0
        %601 = vst.msk [vmem:[#allocation2 + $0x50] sm:$0xff] %vm590, 0.0
        %602 = vst.msk [vmem:[#allocation2 + $0x58] sm:$0xff] %vm590, 0.0
        %603 = vst.msk [vmem:[#allocation2 + $0x60] sm:$0xff] %vm590, 0.0
        %604 = vst.msk [vmem:[#allocation2 + $0x68] sm:$0xff] %vm590, 0.0
        %605 = vst.msk [vmem:[#allocation2 + $0x70] sm:$0xff] %vm590, 0.0
        %606 = vst.msk [vmem:[#allocation2 + $0x78] sm:$0xff] %vm590, 0.0
        %607 = vst.msk [vmem:[#allocation2 + $0x80] sm:$0xff] %vm590, 0.0
        %608 = vst.msk [vmem:[#allocation2 + $0x88] sm:$0xff] %vm590, 0.0
        %609 = vst.msk [vmem:[#allocation2 + $0x90] sm:$0xff] %vm590, 0.0
        %610 = vst.msk [vmem:[#allocation2 + $0x98] sm:$0xff] %vm590, 0.0
        %611 = vst.msk [vmem:[#allocation2 + $0xa0] sm:$0xff] %vm590, 0.0
        %612 = vst.msk [vmem:[#allocation2 + $0xa8] sm:$0xff] %vm590, 0.0
        %613 = vst.msk [vmem:[#allocation2 + $0xb0] sm:$0xff] %vm590, 0.0
        %614 = vst.msk [vmem:[#allocation2 + $0xb8] sm:$0xff] %vm590, 0.0
        %615 = vst.msk [vmem:[#allocation2 + $0xc0] sm:$0xff] %vm590, 0.0
        %616 = vst.msk [vmem:[#allocation2 + $0xc8] sm:$0xff] %vm590, 0.0
        %617 = vst.msk [vmem:[#allocation2 + $0xd0] sm:$0xff] %vm590, 0.0
        %618 = vst.msk [vmem:[#allocation2 + $0xd8] sm:$0xff] %vm590, 0.0
        %619 = vst.msk [vmem:[#allocation2 + $0xe0] sm:$0xff] %vm590, 0.0
        %620 = vst.msk [vmem:[#allocation2 + $0xe8] sm:$0xff] %vm590, 0.0
        %621 = vst.msk [vmem:[#allocation2 + $0xf0] sm:$0xff] %vm590, 0.0
        %622 = vst.msk [vmem:[#allocation2 + $0xf8] sm:$0xff] %vm590, 0.0
        %623 = vst.msk [vmem:[#allocation2 + $0x100] sm:$0xff] %vm590, 0.0
        %624 = vst.msk [vmem:[#allocation2 + $0x108] sm:$0xff] %vm590, 0.0
        %625 = vst.msk [vmem:[#allocation2 + $0x110] sm:$0xff] %vm590, 0.0
        %626 = vst.msk [vmem:[#allocation2 + $0x118] sm:$0xff] %vm590, 0.0
        %627 = vst.msk [vmem:[#allocation2 + $0x120] sm:$0xff] %vm590, 0.0
        %628 = vst.msk [vmem:[#allocation2 + $0x128] sm:$0xff] %vm590, 0.0
        %629 = vst.msk [vmem:[#allocation2 + $0x130] sm:$0xff] %vm590, 0.0
        %630 = vst.msk [vmem:[#allocation2 + $0x138] sm:$0xff] %vm590, 0.0
        %631 = vst.msk [vmem:[#allocation2 + $0x140] sm:$0xff] %vm590, 0.0
        %632 = vst.msk [vmem:[#allocation2 + $0x148] sm:$0xff] %vm590, 0.0
        %633 = vst.msk [vmem:[#allocation2 + $0x150] sm:$0xff] %vm590, 0.0
        %634 = vst.msk [vmem:[#allocation2 + $0x158] sm:$0xff] %vm590, 0.0
        %635 = vst.msk [vmem:[#allocation2 + $0x160] sm:$0xff] %vm590, 0.0
        %636 = vst.msk [vmem:[#allocation2 + $0x168] sm:$0xff] %vm590, 0.0
        %637 = vst.msk [vmem:[#allocation2 + $0x170] sm:$0xff] %vm590, 0.0
        %638 = vst.msk [vmem:[#allocation2 + $0x178] sm:$0xff] %vm590, 0.0
        %639 = vst.msk [vmem:[#allocation2 + $0x180] sm:$0xff] %vm590, 0.0
        %640 = vst.msk [vmem:[#allocation2 + $0x188] sm:$0xff] %vm590, 0.0
        %641 = vst.msk [vmem:[#allocation2 + $0x190] sm:$0xff] %vm590, 0.0
        %642 = vst.msk [vmem:[#allocation2 + $0x198] sm:$0xff] %vm590, 0.0
        %643 = vst.msk [vmem:[#allocation2 + $0x1a0] sm:$0xff] %vm590, 0.0
        %644 = vst.msk [vmem:[#allocation2 + $0x1a8] sm:$0xff] %vm590, 0.0
        %645 = vst.msk [vmem:[#allocation2 + $0x1b0] sm:$0xff] %vm590, 0.0
        %646 = vst.msk [vmem:[#allocation2 + $0x1b8] sm:$0xff] %vm590, 0.0
        %647 = vst.msk [vmem:[#allocation2 + $0x1c0] sm:$0xff] %vm590, 0.0
        %648 = vst.msk [vmem:[#allocation2 + $0x1c8] sm:$0xff] %vm590, 0.0
        %649 = vst.msk [vmem:[#allocation2 + $0x1d0] sm:$0xff] %vm590, 0.0
        %650 = vst.msk [vmem:[#allocation2 + $0x1d8] sm:$0xff] %vm590, 0.0
        %651 = vst.msk [vmem:[#allocation2 + $0x1e0] sm:$0xff] %vm590, 0.0
        %652 = vst.msk [vmem:[#allocation2 + $0x1e8] sm:$0xff] %vm590, 0.0
        %653 = vst.msk [vmem:[#allocation2 + $0x1f0] sm:$0xff] %vm590, 0.0
        %654 = vst.msk [vmem:[#allocation2 + $0x1f8] sm:$0xff] %vm590, 0.0
        %655 = vst.msk [vmem:[#allocation2 + $0x200] sm:$0xff] %vm590, 0.0
        %656 = vst.msk [vmem:[#allocation2 + $0x208] sm:$0xff] %vm590, 0.0
        %657 = vst.msk [vmem:[#allocation2 + $0x210] sm:$0xff] %vm590, 0.0
        %658 = vst.msk [vmem:[#allocation2 + $0x218] sm:$0xff] %vm590, 0.0
        %659 = vst.msk [vmem:[#allocation2 + $0x220] sm:$0xff] %vm590, 0.0
        %660 = vst.msk [vmem:[#allocation2 + $0x228] sm:$0xff] %vm590, 0.0
        %661 = vst.msk [vmem:[#allocation2 + $0x230] sm:$0xff] %vm590, 0.0
        %662 = vst.msk [vmem:[#allocation2 + $0x238] sm:$0xff] %vm590, 0.0
        %s663 = scalar_lea.vmem [#allocation2], 32
        %664 = vst.msk [vmem:[%s663 + $0x8] sm:$0xff] %vm590, %v558
        %665 = vst.msk [vmem:[%s663 + $0x10] sm:$0xff] %vm590, %v559
        %666 = vst.msk [vmem:[%s663 + $0x28] sm:$0xff] %vm590, %v560
        %667 = vst.msk [vmem:[%s663 + $0x30] sm:$0xff] %vm590, %v561
        %668 = vst.msk [vmem:[%s663 + $0x48] sm:$0xff] %vm590, %v562
        %669 = vst.msk [vmem:[%s663 + $0x50] sm:$0xff] %vm590, %v563
        %670 = vst.msk [vmem:[%s663 + $0x68] sm:$0xff] %vm590, %v564
        %671 = vst.msk [vmem:[%s663 + $0x70] sm:$0xff] %vm590, %v565
        %672 = vst.msk [vmem:[%s663 + $0x88] sm:$0xff] %vm590, %v566
        %673 = vst.msk [vmem:[%s663 + $0x90] sm:$0xff] %vm590, %v567
        %674 = vst.msk [vmem:[%s663 + $0xa8] sm:$0xff] %vm590, %v568
        %675 = vst.msk [vmem:[%s663 + $0xb0] sm:$0xff] %vm590, %v569
        %676 = vst.msk [vmem:[%s663 + $0xc8] sm:$0xff] %vm590, %v570
        %677 = vst.msk [vmem:[%s663 + $0xd0] sm:$0xff] %vm590, %v571
        %678 = vst.msk [vmem:[%s663 + $0xe8] sm:$0xff] %vm590, %v572
        %679 = vst.msk [vmem:[%s663 + $0xf0] sm:$0xff] %vm590, %v573
        %680 = vst.msk [vmem:[%s663 + $0x108] sm:$0xff] %vm590, %v574
        %681 = vst.msk [vmem:[%s663 + $0x110] sm:$0xff] %vm590, %v575
        %682 = vst.msk [vmem:[%s663 + $0x128] sm:$0xff] %vm590, %v576
        %683 = vst.msk [vmem:[%s663 + $0x130] sm:$0xff] %vm590, %v577
        %684 = vst.msk [vmem:[%s663 + $0x148] sm:$0xff] %vm590, %v578
        %685 = vst.msk [vmem:[%s663 + $0x150] sm:$0xff] %vm590, %v579
        %686 = vst.msk [vmem:[%s663 + $0x168] sm:$0xff] %vm590, %v580
        %687 = vst.msk [vmem:[%s663 + $0x170] sm:$0xff] %vm590, %v581
        %688 = vst.msk [vmem:[%s663 + $0x188] sm:$0xff] %vm590, %v582
        %689 = vst.msk [vmem:[%s663 + $0x190] sm:$0xff] %vm590, %v583
        %690 = vst.msk [vmem:[%s663 + $0x1a8] sm:$0xff] %vm590, %v584
        %691 = vst.msk [vmem:[%s663 + $0x1b0] sm:$0xff] %vm590, %v585
        %692 = vst.msk [vmem:[%s663 + $0x1c8] sm:$0xff] %vm590, %v586
        %693 = vst.msk [vmem:[%s663 + $0x1d0] sm:$0xff] %vm590, %v587
        %694 = vst.msk [vmem:[%s663 + $0x1e8] sm:$0xff] %vm590, %v588
        %695 = vst.msk [vmem:[%s663 + $0x1f0] sm:$0xff] %vm590, %v589
        %v696 = vld [vmem:[#allocation2 + $0x7] sm:$0xff]
        %v697 = vld [vmem:[#allocation2 + $0xf] sm:$0xff]
        %v698 = vld [vmem:[#allocation2 + $0x27] sm:$0xff]
        %v699 = vld [vmem:[#allocation2 + $0x2f] sm:$0xff]
        %v700 = vld [vmem:[#allocation2 + $0x47] sm:$0xff]
        %v701 = vld [vmem:[#allocation2 + $0x4f] sm:$0xff]
        %v702 = vld [vmem:[#allocation2 + $0x67] sm:$0xff]
        %v703 = vld [vmem:[#allocation2 + $0x6f] sm:$0xff]
        %v704 = vld [vmem:[#allocation2 + $0x87] sm:$0xff]
        %v705 = vld [vmem:[#allocation2 + $0x8f] sm:$0xff]
        %v706 = vld [vmem:[#allocation2 + $0xa7] sm:$0xff]
        %v707 = vld [vmem:[#allocation2 + $0xaf] sm:$0xff]
        %v708 = vld [vmem:[#allocation2 + $0xc7] sm:$0xff]
        %v709 = vld [vmem:[#allocation2 + $0xcf] sm:$0xff]
        %v710 = vld [vmem:[#allocation2 + $0xe7] sm:$0xff]
        %v711 = vld [vmem:[#allocation2 + $0xef] sm:$0xff]
        %v712 = vld [vmem:[#allocation2 + $0x107] sm:$0xff]
        %v713 = vld [vmem:[#allocation2 + $0x10f] sm:$0xff]
        %v714 = vld [vmem:[#allocation2 + $0x127] sm:$0xff]
        %v715 = vld [vmem:[#allocation2 + $0x12f] sm:$0xff]
        %v716 = vld [vmem:[#allocation2 + $0x147] sm:$0xff]
        %v717 = vld [vmem:[#allocation2 + $0x14f] sm:$0xff]
        %v718 = vld [vmem:[#allocation2 + $0x167] sm:$0xff]
        %v719 = vld [vmem:[#allocation2 + $0x16f] sm:$0xff]
        %v720 = vld [vmem:[#allocation2 + $0x187] sm:$0xff]
        %v721 = vld [vmem:[#allocation2 + $0x18f] sm:$0xff]
        %v722 = vld [vmem:[#allocation2 + $0x1a7] sm:$0xff]
        %v723 = vld [vmem:[#allocation2 + $0x1af] sm:$0xff]
        %v724 = vld [vmem:[#allocation2 + $0x1c7] sm:$0xff]
        %v725 = vld [vmem:[#allocation2 + $0x1cf] sm:$0xff]
        %v726 = vld [vmem:[#allocation2 + $0x1e7] sm:$0xff]
        %v727 = vld [vmem:[#allocation2 + $0x1ef] sm:$0xff]
        %v728 = vpack.c.bf16 %v697, %v696
        %v729 = vpack.c.bf16 %v699, %v698
        %v730 = vpack.c.bf16 %v701, %v700
        %v731 = vpack.c.bf16 %v703, %v702
        %v732 = vpack.c.bf16 %v705, %v704
        %v733 = vpack.c.bf16 %v707, %v706
        %v734 = vpack.c.bf16 %v709, %v708
        %v735 = vpack.c.bf16 %v711, %v710
        %v736 = vpack.c.bf16 %v713, %v712
        %v737 = vpack.c.bf16 %v715, %v714
        %v738 = vpack.c.bf16 %v717, %v716
        %v739 = vpack.c.bf16 %v719, %v718
        %v740 = vpack.c.bf16 %v721, %v720
        %v741 = vpack.c.bf16 %v723, %v722
        %v742 = vpack.c.bf16 %v725, %v724
        %v743 = vpack.c.bf16 %v727, %v726
        %v744 = vld [vmem:[%s3] sm:$0xf]
        %v745 = vld [vmem:[%s3 + $0x4] sm:$0xf]
        %v746 = vld [vmem:[%s3 + $0x8] sm:$0xf]
        %v747 = vld [vmem:[%s3 + $0xc] sm:$0xf]
        %v748 = vld [vmem:[#allocation2 + $0x8] sm:$0xff]
        %v749 = vld [vmem:[#allocation2 + $0x10] sm:$0xff]
        %v750 = vld [vmem:[#allocation2 + $0x28] sm:$0xff]
        %v751 = vld [vmem:[#allocation2 + $0x30] sm:$0xff]
        %v752 = vld [vmem:[#allocation2 + $0x48] sm:$0xff]
        %v753 = vld [vmem:[#allocation2 + $0x50] sm:$0xff]
        %v754 = vld [vmem:[#allocation2 + $0x68] sm:$0xff]
        %v755 = vld [vmem:[#allocation2 + $0x70] sm:$0xff]
        %v756 = vld [vmem:[#allocation2 + $0x88] sm:$0xff]
        %v757 = vld [vmem:[#allocation2 + $0x90] sm:$0xff]
        %v758 = vld [vmem:[#allocation2 + $0xa8] sm:$0xff]
        %v759 = vld [vmem:[#allocation2 + $0xb0] sm:$0xff]
        %v760 = vld [vmem:[#allocation2 + $0xc8] sm:$0xff]
        %v761 = vld [vmem:[#allocation2 + $0xd0] sm:$0xff]
        %v762 = vld [vmem:[#allocation2 + $0xe8] sm:$0xff]
        %v763 = vld [vmem:[#allocation2 + $0xf0] sm:$0xff]
        %v764 = vld [vmem:[#allocation2 + $0x108] sm:$0xff]
        %v765 = vld [vmem:[#allocation2 + $0x110] sm:$0xff]
        %v766 = vld [vmem:[#allocation2 + $0x128] sm:$0xff]
        %v767 = vld [vmem:[#allocation2 + $0x130] sm:$0xff]
        %v768 = vld [vmem:[#allocation2 + $0x148] sm:$0xff]
        %v769 = vld [vmem:[#allocation2 + $0x150] sm:$0xff]
        %v770 = vld [vmem:[#allocation2 + $0x168] sm:$0xff]
        %v771 = vld [vmem:[#allocation2 + $0x170] sm:$0xff]
        %v772 = vld [vmem:[#allocation2 + $0x188] sm:$0xff]
        %v773 = vld [vmem:[#allocation2 + $0x190] sm:$0xff]
        %v774 = vld [vmem:[#allocation2 + $0x1a8] sm:$0xff]
        %v775 = vld [vmem:[#allocation2 + $0x1b0] sm:$0xff]
        %v776 = vld [vmem:[#allocation2 + $0x1c8] sm:$0xff]
        %v777 = vld [vmem:[#allocation2 + $0x1d0] sm:$0xff]
        %v778 = vld [vmem:[#allocation2 + $0x1e8] sm:$0xff]
        %v779 = vld [vmem:[#allocation2 + $0x1f0] sm:$0xff]
        %v780 = vpack.c.bf16 %v749, %v748
        %v781 = vpack.c.bf16 %v751, %v750
        %v782 = vpack.c.bf16 %v753, %v752
        %v783 = vpack.c.bf16 %v755, %v754
        %v784 = vpack.c.bf16 %v757, %v756
        %v785 = vpack.c.bf16 %v759, %v758
        %v786 = vpack.c.bf16 %v761, %v760
        %v787 = vpack.c.bf16 %v763, %v762
        %v788 = vpack.c.bf16 %v765, %v764
        %v789 = vpack.c.bf16 %v767, %v766
        %v790 = vpack.c.bf16 %v769, %v768
        %v791 = vpack.c.bf16 %v771, %v770
        %v792 = vpack.c.bf16 %v773, %v772
        %v793 = vpack.c.bf16 %v775, %v774
        %v794 = vpack.c.bf16 %v777, %v776
        %v795 = vpack.c.bf16 %v779, %v778
        %s796 = scalar_lea.vmem %s3, 16
        %v797 = vld [vmem:[%s796] sm:$0xf]
        %v798 = vld [vmem:[%s796 + $0x4] sm:$0xf]
        %v799 = vld [vmem:[%s796 + $0x8] sm:$0xf]
        %v800 = vld [vmem:[%s796 + $0xc] sm:$0xf]
        %v805 = vunpack.c.l.b16 %v797
        %v806 = vunpack.c.l.b16 %v798
        %v807 = vunpack.c.l.b16 %v799
        %v808 = vunpack.c.l.b16 %v800
        %v809 = vpack.c.b16 %v806, %v805
        %v810 = vpack.c.b16 %v808, %v807
        %v814 = vsel %vm590, %v780, 0
        %v817 = vsel %vm590, %v781, 0
        %v820 = vsel %vm590, %v782, 0
        %v823 = vsel %vm590, %v783, 0
        %v826 = vsel %vm590, %v784, 0
        %v829 = vsel %vm590, %v785, 0
        %v832 = vsel %vm590, %v786, 0
        %v835 = vsel %vm590, %v787, 0
        %v838 = vsel %vm590, %v788, 0
        %v841 = vsel %vm590, %v789, 0
        %v844 = vsel %vm590, %v790, 0
        %v847 = vsel %vm590, %v791, 0
        %v850 = vsel %vm590, %v792, 0
        %v853 = vsel %vm590, %v793, 0
        %v856 = vsel %vm590, %v794, 0
        %v859 = vsel %vm590, %v795, 0
        %861 = vmatprep.subr.bf16.mxu0 0
        %862 = vmatpush1.bf16.msra.mxu0 0
        %863 = vmatprep.subr.bf16.mxu0 0
        %864 = vmatpush1.bf16.msra.mxu0 0
        %865 = vmatprep.subr.bf16.mxu0 0
        %866 = vmatpush1.bf16.msra.mxu0 0
        %867 = vmatprep.subr.bf16.mxu0 0
        %868 = vmatpush1.bf16.msra.mxu0 0
        %869 = vmatprep.subr.bf16.mxu0 0
        %870 = vmatpush1.bf16.msra.mxu0 0
        %871 = vmatprep.subr.bf16.mxu0 0
        %872 = vmatpush1.bf16.msra.mxu0 0
        %873 = vmatprep.subr.bf16.mxu0 0
        %874 = vmatpush1.bf16.msra.mxu0 %v810
        %875 = vmatprep.subr.bf16.mxu0 0
        %876 = vmatpush1.bf16.msra.mxu0 %v809
        %877 = vmatprep.subr.bf16.mxu0 0
        %878 = vmatpush2.bf16.msra.mxu0 0
        %879 = vmatprep.subr.bf16.mxu0 0
        %880 = vmatpush2.bf16.msra.mxu0 0
        %881 = vmatprep.subr.bf16.mxu0 0
        %882 = vmatpush2.bf16.msra.mxu0 0
        %883 = vmatprep.subr.bf16.mxu0 0
        %884 = vmatpush2.bf16.msra.mxu0 0
        %885 = vmatprep.subr.bf16.mxu0 0
        %886 = vmatpush2.bf16.msra.mxu0 0
        %887 = vmatprep.subr.bf16.mxu0 0
        %888 = vmatpush2.bf16.msra.mxu0 0
        %889 = vmatprep.subr.bf16.mxu0 0
        %890 = vmatpush2.bf16.msra.mxu0 0
        %891 = vmatprep.subr.bf16.mxu0 0
        %892 = vmatpush2.bf16.msra.mxu0 0
        %893 = vmatprep.mubr.bf16.mxu0 0
        %894 = vmatmul.mubr.bf16.gmra.mxu0 %v814
        %v895 = vpop.f32.mrf.mxu0
        %v896 = vadd.f32 0.0, %v895
        %v897 = vpop.f32.mrf.mxu0
        %v898 = vpop.f32.mrf.mxu0
        %v899 = vadd.f32 0.0, %v898
        %v900 = vpop.f32.mrf.mxu0
        %901 = vmatprep.mubr.bf16.mxu0 0
        %902 = vmatmul.mubr.bf16.gmra.mxu0 %v817
        %v903 = vpop.f32.mrf.mxu0
        %v904 = vadd.f32 0.0, %v903
        %v905 = vpop.f32.mrf.mxu0
        %v906 = vpop.f32.mrf.mxu0
        %v907 = vadd.f32 0.0, %v906
        %v908 = vpop.f32.mrf.mxu0
        %909 = vmatprep.mubr.bf16.mxu0 0
        %910 = vmatmul.mubr.bf16.gmra.mxu0 %v820
        %v911 = vpop.f32.mrf.mxu0
        %v912 = vadd.f32 0.0, %v911
        %v913 = vpop.f32.mrf.mxu0
        %v914 = vpop.f32.mrf.mxu0
        %v915 = vadd.f32 0.0, %v914
        %v916 = vpop.f32.mrf.mxu0
        %917 = vmatprep.mubr.bf16.mxu0 0
        %918 = vmatmul.mubr.bf16.gmra.mxu0 %v823
        %v919 = vpop.f32.mrf.mxu0
        %v920 = vadd.f32 0.0, %v919
        %v921 = vpop.f32.mrf.mxu0
        %v922 = vpop.f32.mrf.mxu0
        %v923 = vadd.f32 0.0, %v922
        %v924 = vpop.f32.mrf.mxu0
        %925 = vmatprep.mubr.bf16.mxu0 0
        %926 = vmatmul.mubr.bf16.gmra.mxu0 %v826
        %v927 = vpop.f32.mrf.mxu0
        %v928 = vadd.f32 0.0, %v927
        %v929 = vpop.f32.mrf.mxu0
        %v930 = vpop.f32.mrf.mxu0
        %v931 = vadd.f32 0.0, %v930
        %v932 = vpop.f32.mrf.mxu0
        %933 = vmatprep.mubr.bf16.mxu0 0
        %934 = vmatmul.mubr.bf16.gmra.mxu0 %v829
        %v935 = vpop.f32.mrf.mxu0
        %v936 = vadd.f32 0.0, %v935
        %v937 = vpop.f32.mrf.mxu0
        %v938 = vpop.f32.mrf.mxu0
        %v939 = vadd.f32 0.0, %v938
        %v940 = vpop.f32.mrf.mxu0
        %941 = vmatprep.mubr.bf16.mxu0 0
        %942 = vmatmul.mubr.bf16.gmra.mxu0 %v832
        %v943 = vpop.f32.mrf.mxu0
        %v944 = vadd.f32 0.0, %v943
        %v945 = vpop.f32.mrf.mxu0
        %v946 = vpop.f32.mrf.mxu0
        %v947 = vadd.f32 0.0, %v946
        %v948 = vpop.f32.mrf.mxu0
        %949 = vmatprep.mubr.bf16.mxu0 0
        %950 = vmatmul.mubr.bf16.gmra.mxu0 %v835
        %v951 = vpop.f32.mrf.mxu0
        %v952 = vadd.f32 0.0, %v951
        %v953 = vpop.f32.mrf.mxu0
        %v954 = vpop.f32.mrf.mxu0
        %v955 = vadd.f32 0.0, %v954
        %v956 = vpop.f32.mrf.mxu0
        %957 = vmatprep.mubr.bf16.mxu0 0
        %958 = vmatmul.mubr.bf16.gmra.mxu0 %v838
        %v959 = vpop.f32.mrf.mxu0
        %v960 = vadd.f32 0.0, %v959
        %v961 = vpop.f32.mrf.mxu0
        %v962 = vpop.f32.mrf.mxu0
        %v963 = vadd.f32 0.0, %v962
        %v964 = vpop.f32.mrf.mxu0
        %965 = vmatprep.mubr.bf16.mxu0 0
        %966 = vmatmul.mubr.bf16.gmra.mxu0 %v841
        %v967 = vpop.f32.mrf.mxu0
        %v968 = vadd.f32 0.0, %v967
        %v969 = vpop.f32.mrf.mxu0
        %v970 = vpop.f32.mrf.mxu0
        %v971 = vadd.f32 0.0, %v970
        %v972 = vpop.f32.mrf.mxu0
        %973 = vmatprep.mubr.bf16.mxu0 0
        %974 = vmatmul.mubr.bf16.gmra.mxu0 %v844
        %v975 = vpop.f32.mrf.mxu0
        %v976 = vadd.f32 0.0, %v975
        %v977 = vpop.f32.mrf.mxu0
        %v978 = vpop.f32.mrf.mxu0
        %v979 = vadd.f32 0.0, %v978
        %v980 = vpop.f32.mrf.mxu0
        %981 = vmatprep.mubr.bf16.mxu0 0
        %982 = vmatmul.mubr.bf16.gmra.mxu0 %v847
        %v983 = vpop.f32.mrf.mxu0
        %v984 = vadd.f32 0.0, %v983
        %v985 = vpop.f32.mrf.mxu0
        %v986 = vpop.f32.mrf.mxu0
        %v987 = vadd.f32 0.0, %v986
        %v988 = vpop.f32.mrf.mxu0
        %989 = vmatprep.mubr.bf16.mxu0 0
        %990 = vmatmul.mubr.bf16.gmra.mxu0 %v850
        %v991 = vpop.f32.mrf.mxu0
        %v992 = vadd.f32 0.0, %v991
        %v993 = vpop.f32.mrf.mxu0
        %v994 = vpop.f32.mrf.mxu0
        %v995 = vadd.f32 0.0, %v994
        %v996 = vpop.f32.mrf.mxu0
        %997 = vmatprep.mubr.bf16.mxu0 0
        %998 = vmatmul.mubr.bf16.gmra.mxu0 %v853
        %v999 = vpop.f32.mrf.mxu0
        %v1000 = vadd.f32 0.0, %v999
        %v1001 = vpop.f32.mrf.mxu0
        %v1002 = vpop.f32.mrf.mxu0
        %v1003 = vadd.f32 0.0, %v1002
        %v1004 = vpop.f32.mrf.mxu0
        %1005 = vmatprep.mubr.bf16.mxu0 0
        %1006 = vmatmul.mubr.bf16.gmra.mxu0 %v856
        %v1007 = vpop.f32.mrf.mxu0
        %v1008 = vadd.f32 0.0, %v1007
        %v1009 = vpop.f32.mrf.mxu0
        %v1010 = vpop.f32.mrf.mxu0
        %v1011 = vadd.f32 0.0, %v1010
        %v1012 = vpop.f32.mrf.mxu0
        %1013 = vmatprep.mubr.bf16.mxu0 0
        %1014 = vmatmul.mubr.bf16.gmra.mxu0 %v859
        %v1015 = vpop.f32.mrf.mxu0
        %v1016 = vadd.f32 0.0, %v1015
        %v1017 = vpop.f32.mrf.mxu0
        %v1018 = vpop.f32.mrf.mxu0
        %v1019 = vadd.f32 0.0, %v1018
        %v1020 = vpop.f32.mrf.mxu0
        %1021 = vdwg.mxu0
        %v1026 = vunpack.c.l.b16 %v744
        %v1027 = vunpack.c.l.b16 %v745
        %v1028 = vunpack.c.l.b16 %v746
        %v1029 = vunpack.c.l.b16 %v747
        %v1030 = vpack.c.b16 %v1027, %v1026
        %v1031 = vpack.c.b16 %v1029, %v1028
        %v1035 = vsel %vm590, %v728, 0
        %v1038 = vsel %vm590, %v729, 0
        %v1041 = vsel %vm590, %v730, 0
        %v1044 = vsel %vm590, %v731, 0
        %v1047 = vsel %vm590, %v732, 0
        %v1050 = vsel %vm590, %v733, 0
        %v1053 = vsel %vm590, %v734, 0
        %v1056 = vsel %vm590, %v735, 0
        %v1059 = vsel %vm590, %v736, 0
        %v1062 = vsel %vm590, %v737, 0
        %v1065 = vsel %vm590, %v738, 0
        %v1068 = vsel %vm590, %v739, 0
        %v1071 = vsel %vm590, %v740, 0
        %v1074 = vsel %vm590, %v741, 0
        %v1077 = vsel %vm590, %v742, 0
        %v1080 = vsel %vm590, %v743, 0
        %1082 = vmatprep.subr.bf16.mxu0 0
        %1083 = vmatpush1.bf16.msra.mxu0 0
        %1084 = vmatprep.subr.bf16.mxu0 0
        %1085 = vmatpush1.bf16.msra.mxu0 0
        %1086 = vmatprep.subr.bf16.mxu0 0
        %1087 = vmatpush1.bf16.msra.mxu0 0
        %1088 = vmatprep.subr.bf16.mxu0 0
        %1089 = vmatpush1.bf16.msra.mxu0 0
        %1090 = vmatprep.subr.bf16.mxu0 0
        %1091 = vmatpush1.bf16.msra.mxu0 0
        %1092 = vmatprep.subr.bf16.mxu0 0
        %1093 = vmatpush1.bf16.msra.mxu0 0
        %1094 = vmatprep.subr.bf16.mxu0 0
        %1095 = vmatpush1.bf16.msra.mxu0 %v1031
        %1096 = vmatprep.subr.bf16.mxu0 0
        %1097 = vmatpush1.bf16.msra.mxu0 %v1030
        %1098 = vmatprep.subr.bf16.mxu0 0
        %1099 = vmatpush2.bf16.msra.mxu0 0
        %1100 = vmatprep.subr.bf16.mxu0 0
        %1101 = vmatpush2.bf16.msra.mxu0 0
        %1102 = vmatprep.subr.bf16.mxu0 0
        %1103 = vmatpush2.bf16.msra.mxu0 0
        %1104 = vmatprep.subr.bf16.mxu0 0
        %1105 = vmatpush2.bf16.msra.mxu0 0
        %1106 = vmatprep.subr.bf16.mxu0 0
        %1107 = vmatpush2.bf16.msra.mxu0 0
        %1108 = vmatprep.subr.bf16.mxu0 0
        %1109 = vmatpush2.bf16.msra.mxu0 0
        %1110 = vmatprep.subr.bf16.mxu0 0
        %1111 = vmatpush2.bf16.msra.mxu0 0
        %1112 = vmatprep.subr.bf16.mxu0 0
        %1113 = vmatpush2.bf16.msra.mxu0 0
        %1114 = vmatprep.mubr.bf16.mxu0 0
        %1115 = vmatmul.mubr.bf16.gmra.mxu0 %v1035
        %v1116 = vpop.f32.mrf.mxu0
        %v1117 = vadd.f32 %v896, %v1116
        %v1118 = vpop.f32.mrf.mxu0
        %v1119 = vpop.f32.mrf.mxu0
        %v1120 = vadd.f32 %v899, %v1119
        %v1121 = vpop.f32.mrf.mxu0
        %1122 = vmatprep.mubr.bf16.mxu0 0
        %1123 = vmatmul.mubr.bf16.gmra.mxu0 %v1038
        %v1124 = vpop.f32.mrf.mxu0
        %v1125 = vadd.f32 %v904, %v1124
        %v1126 = vpop.f32.mrf.mxu0
        %v1127 = vpop.f32.mrf.mxu0
        %v1128 = vadd.f32 %v907, %v1127
        %v1129 = vpop.f32.mrf.mxu0
        %1130 = vmatprep.mubr.bf16.mxu0 0
        %1131 = vmatmul.mubr.bf16.gmra.mxu0 %v1041
        %v1132 = vpop.f32.mrf.mxu0
        %v1133 = vadd.f32 %v912, %v1132
        %v1134 = vpop.f32.mrf.mxu0
        %v1135 = vpop.f32.mrf.mxu0
        %v1136 = vadd.f32 %v915, %v1135
        %v1137 = vpop.f32.mrf.mxu0
        %1138 = vmatprep.mubr.bf16.mxu0 0
        %1139 = vmatmul.mubr.bf16.gmra.mxu0 %v1044
        %v1140 = vpop.f32.mrf.mxu0
        %v1141 = vadd.f32 %v920, %v1140
        %v1142 = vpop.f32.mrf.mxu0
        %v1143 = vpop.f32.mrf.mxu0
        %v1144 = vadd.f32 %v923, %v1143
        %v1145 = vpop.f32.mrf.mxu0
        %1146 = vmatprep.mubr.bf16.mxu0 0
        %1147 = vmatmul.mubr.bf16.gmra.mxu0 %v1047
        %v1148 = vpop.f32.mrf.mxu0
        %v1149 = vadd.f32 %v928, %v1148
        %v1150 = vpop.f32.mrf.mxu0
        %v1151 = vpop.f32.mrf.mxu0
        %v1152 = vadd.f32 %v931, %v1151
        %v1153 = vpop.f32.mrf.mxu0
        %1154 = vmatprep.mubr.bf16.mxu0 0
        %1155 = vmatmul.mubr.bf16.gmra.mxu0 %v1050
        %v1156 = vpop.f32.mrf.mxu0
        %v1157 = vadd.f32 %v936, %v1156
        %v1158 = vpop.f32.mrf.mxu0
        %v1159 = vpop.f32.mrf.mxu0
        %v1160 = vadd.f32 %v939, %v1159
        %v1161 = vpop.f32.mrf.mxu0
        %1162 = vmatprep.mubr.bf16.mxu0 0
        %1163 = vmatmul.mubr.bf16.gmra.mxu0 %v1053
        %v1164 = vpop.f32.mrf.mxu0
        %v1165 = vadd.f32 %v944, %v1164
        %v1166 = vpop.f32.mrf.mxu0
        %v1167 = vpop.f32.mrf.mxu0
        %v1168 = vadd.f32 %v947, %v1167
        %v1169 = vpop.f32.mrf.mxu0
        %1170 = vmatprep.mubr.bf16.mxu0 0
        %1171 = vmatmul.mubr.bf16.gmra.mxu0 %v1056
        %v1172 = vpop.f32.mrf.mxu0
        %v1173 = vadd.f32 %v952, %v1172
        %v1174 = vpop.f32.mrf.mxu0
        %v1175 = vpop.f32.mrf.mxu0
        %v1176 = vadd.f32 %v955, %v1175
        %v1177 = vpop.f32.mrf.mxu0
        %1178 = vmatprep.mubr.bf16.mxu0 0
        %1179 = vmatmul.mubr.bf16.gmra.mxu0 %v1059
        %v1180 = vpop.f32.mrf.mxu0
        %v1181 = vadd.f32 %v960, %v1180
        %v1182 = vpop.f32.mrf.mxu0
        %v1183 = vpop.f32.mrf.mxu0
        %v1184 = vadd.f32 %v963, %v1183
        %v1185 = vpop.f32.mrf.mxu0
        %1186 = vmatprep.mubr.bf16.mxu0 0
        %1187 = vmatmul.mubr.bf16.gmra.mxu0 %v1062
        %v1188 = vpop.f32.mrf.mxu0
        %v1189 = vadd.f32 %v968, %v1188
        %v1190 = vpop.f32.mrf.mxu0
        %v1191 = vpop.f32.mrf.mxu0
        %v1192 = vadd.f32 %v971, %v1191
        %v1193 = vpop.f32.mrf.mxu0
        %1194 = vmatprep.mubr.bf16.mxu0 0
        %1195 = vmatmul.mubr.bf16.gmra.mxu0 %v1065
        %v1196 = vpop.f32.mrf.mxu0
        %v1197 = vadd.f32 %v976, %v1196
        %v1198 = vpop.f32.mrf.mxu0
        %v1199 = vpop.f32.mrf.mxu0
        %v1200 = vadd.f32 %v979, %v1199
        %v1201 = vpop.f32.mrf.mxu0
        %1202 = vmatprep.mubr.bf16.mxu0 0
        %1203 = vmatmul.mubr.bf16.gmra.mxu0 %v1068
        %v1204 = vpop.f32.mrf.mxu0
        %v1205 = vadd.f32 %v984, %v1204
        %v1206 = vpop.f32.mrf.mxu0
        %v1207 = vpop.f32.mrf.mxu0
        %v1208 = vadd.f32 %v987, %v1207
        %v1209 = vpop.f32.mrf.mxu0
        %1210 = vmatprep.mubr.bf16.mxu0 0
        %1211 = vmatmul.mubr.bf16.gmra.mxu0 %v1071
        %v1212 = vpop.f32.mrf.mxu0
        %v1213 = vadd.f32 %v992, %v1212
        %v1214 = vpop.f32.mrf.mxu0
        %v1215 = vpop.f32.mrf.mxu0
        %v1216 = vadd.f32 %v995, %v1215
        %v1217 = vpop.f32.mrf.mxu0
        %1218 = vmatprep.mubr.bf16.mxu0 0
        %1219 = vmatmul.mubr.bf16.gmra.mxu0 %v1074
        %v1220 = vpop.f32.mrf.mxu0
        %v1221 = vadd.f32 %v1000, %v1220
        %v1222 = vpop.f32.mrf.mxu0
        %v1223 = vpop.f32.mrf.mxu0
        %v1224 = vadd.f32 %v1003, %v1223
        %v1225 = vpop.f32.mrf.mxu0
        %1226 = vmatprep.mubr.bf16.mxu0 0
        %1227 = vmatmul.mubr.bf16.gmra.mxu0 %v1077
        %v1228 = vpop.f32.mrf.mxu0
        %v1229 = vadd.f32 %v1008, %v1228
        %v1230 = vpop.f32.mrf.mxu0
        %v1231 = vpop.f32.mrf.mxu0
        %v1232 = vadd.f32 %v1011, %v1231
        %v1233 = vpop.f32.mrf.mxu0
        %1234 = vmatprep.mubr.bf16.mxu0 0
        %1235 = vmatmul.mubr.bf16.gmra.mxu0 %v1080
        %v1236 = vpop.f32.mrf.mxu0
        %v1237 = vadd.f32 %v1016, %v1236
        %v1238 = vpop.f32.mrf.mxu0
        %v1239 = vpop.f32.mrf.mxu0
        %v1240 = vadd.f32 %v1019, %v1239
        %v1241 = vpop.f32.mrf.mxu0
        %1242 = vdwg.mxu0
        %v1243 = vld [vmem:[#allocation2 + $0x9] sm:$0xff]
        %v1244 = vld [vmem:[#allocation2 + $0x11] sm:$0xff]
        %v1245 = vld [vmem:[#allocation2 + $0x29] sm:$0xff]
        %v1246 = vld [vmem:[#allocation2 + $0x31] sm:$0xff]
        %v1247 = vld [vmem:[#allocation2 + $0x49] sm:$0xff]
        %v1248 = vld [vmem:[#allocation2 + $0x51] sm:$0xff]
        %v1249 = vld [vmem:[#allocation2 + $0x69] sm:$0xff]
        %v1250 = vld [vmem:[#allocation2 + $0x71] sm:$0xff]
        %v1251 = vld [vmem:[#allocation2 + $0x89] sm:$0xff]
        %v1252 = vld [vmem:[#allocation2 + $0x91] sm:$0xff]
        %v1253 = vld [vmem:[#allocation2 + $0xa9] sm:$0xff]
        %v1254 = vld [vmem:[#allocation2 + $0xb1] sm:$0xff]
        %v1255 = vld [vmem:[#allocation2 + $0xc9] sm:$0xff]
        %v1256 = vld [vmem:[#allocation2 + $0xd1] sm:$0xff]
        %v1257 = vld [vmem:[#allocation2 + $0xe9] sm:$0xff]
        %v1258 = vld [vmem:[#allocation2 + $0xf1] sm:$0xff]
        %v1259 = vld [vmem:[#allocation2 + $0x109] sm:$0xff]
        %v1260 = vld [vmem:[#allocation2 + $0x111] sm:$0xff]
        %v1261 = vld [vmem:[#allocation2 + $0x129] sm:$0xff]
        %v1262 = vld [vmem:[#allocation2 + $0x131] sm:$0xff]
        %v1263 = vld [vmem:[#allocation2 + $0x149] sm:$0xff]
        %v1264 = vld [vmem:[#allocation2 + $0x151] sm:$0xff]
        %v1265 = vld [vmem:[#allocation2 + $0x169] sm:$0xff]
        %v1266 = vld [vmem:[#allocation2 + $0x171] sm:$0xff]
        %v1267 = vld [vmem:[#allocation2 + $0x189] sm:$0xff]
        %v1268 = vld [vmem:[#allocation2 + $0x191] sm:$0xff]
        %v1269 = vld [vmem:[#allocation2 + $0x1a9] sm:$0xff]
        %v1270 = vld [vmem:[#allocation2 + $0x1b1] sm:$0xff]
        %v1271 = vld [vmem:[#allocation2 + $0x1c9] sm:$0xff]
        %v1272 = vld [vmem:[#allocation2 + $0x1d1] sm:$0xff]
        %v1273 = vld [vmem:[#allocation2 + $0x1e9] sm:$0xff]
        %v1274 = vld [vmem:[#allocation2 + $0x1f1] sm:$0xff]
        %v1275 = vpack.c.bf16 %v1244, %v1243
        %v1276 = vpack.c.bf16 %v1246, %v1245
        %v1277 = vpack.c.bf16 %v1248, %v1247
        %v1278 = vpack.c.bf16 %v1250, %v1249
        %v1279 = vpack.c.bf16 %v1252, %v1251
        %v1280 = vpack.c.bf16 %v1254, %v1253
        %v1281 = vpack.c.bf16 %v1256, %v1255
        %v1282 = vpack.c.bf16 %v1258, %v1257
        %v1283 = vpack.c.bf16 %v1260, %v1259
        %v1284 = vpack.c.bf16 %v1262, %v1261
        %v1285 = vpack.c.bf16 %v1264, %v1263
        %v1286 = vpack.c.bf16 %v1266, %v1265
        %v1287 = vpack.c.bf16 %v1268, %v1267
        %v1288 = vpack.c.bf16 %v1270, %v1269
        %v1289 = vpack.c.bf16 %v1272, %v1271
        %v1290 = vpack.c.bf16 %v1274, %v1273
        %s1291 = scalar_lea.vmem %s3, 32
        %v1292 = vld [vmem:[%s1291] sm:$0xf]
        %v1293 = vld [vmem:[%s1291 + $0x4] sm:$0xf]
        %v1294 = vld [vmem:[%s1291 + $0x8] sm:$0xf]
        %v1295 = vld [vmem:[%s1291 + $0xc] sm:$0xf]
        %v1300 = vunpack.c.l.b16 %v1292
        %v1301 = vunpack.c.l.b16 %v1293
        %v1302 = vunpack.c.l.b16 %v1294
        %v1303 = vunpack.c.l.b16 %v1295
        %v1304 = vpack.c.b16 %v1301, %v1300
        %v1305 = vpack.c.b16 %v1303, %v1302
        %v1309 = vsel %vm590, %v1275, 0
        %v1312 = vsel %vm590, %v1276, 0
        %v1315 = vsel %vm590, %v1277, 0
        %v1318 = vsel %vm590, %v1278, 0
        %v1321 = vsel %vm590, %v1279, 0
        %v1324 = vsel %vm590, %v1280, 0
        %v1327 = vsel %vm590, %v1281, 0
        %v1330 = vsel %vm590, %v1282, 0
        %v1333 = vsel %vm590, %v1283, 0
        %v1336 = vsel %vm590, %v1284, 0
        %v1339 = vsel %vm590, %v1285, 0
        %v1342 = vsel %vm590, %v1286, 0
        %v1345 = vsel %vm590, %v1287, 0
        %v1348 = vsel %vm590, %v1288, 0
        %v1351 = vsel %vm590, %v1289, 0
        %v1354 = vsel %vm590, %v1290, 0
        %1356 = vmatprep.subr.bf16.mxu0 0
        %1357 = vmatpush1.bf16.msra.mxu0 0
        %1358 = vmatprep.subr.bf16.mxu0 0
        %1359 = vmatpush1.bf16.msra.mxu0 0
        %1360 = vmatprep.subr.bf16.mxu0 0
        %1361 = vmatpush1.bf16.msra.mxu0 0
        %1362 = vmatprep.subr.bf16.mxu0 0
        %1363 = vmatpush1.bf16.msra.mxu0 0
        %1364 = vmatprep.subr.bf16.mxu0 0
        %1365 = vmatpush1.bf16.msra.mxu0 0
        %1366 = vmatprep.subr.bf16.mxu0 0
        %1367 = vmatpush1.bf16.msra.mxu0 0
        %1368 = vmatprep.subr.bf16.mxu0 0
        %1369 = vmatpush1.bf16.msra.mxu0 %v1305
        %1370 = vmatprep.subr.bf16.mxu0 0
        %1371 = vmatpush1.bf16.msra.mxu0 %v1304
        %1372 = vmatprep.subr.bf16.mxu0 0
        %1373 = vmatpush2.bf16.msra.mxu0 0
        %1374 = vmatprep.subr.bf16.mxu0 0
        %1375 = vmatpush2.bf16.msra.mxu0 0
        %1376 = vmatprep.subr.bf16.mxu0 0
        %1377 = vmatpush2.bf16.msra.mxu0 0
        %1378 = vmatprep.subr.bf16.mxu0 0
        %1379 = vmatpush2.bf16.msra.mxu0 0
        %1380 = vmatprep.subr.bf16.mxu0 0
        %1381 = vmatpush2.bf16.msra.mxu0 0
        %1382 = vmatprep.subr.bf16.mxu0 0
        %1383 = vmatpush2.bf16.msra.mxu0 0
        %1384 = vmatprep.subr.bf16.mxu0 0
        %1385 = vmatpush2.bf16.msra.mxu0 0
        %1386 = vmatprep.subr.bf16.mxu0 0
        %1387 = vmatpush2.bf16.msra.mxu0 0
        %1388 = vmatprep.mubr.bf16.mxu0 0
        %1389 = vmatmul.mubr.bf16.gmra.mxu0 %v1309
        %v1390 = vpop.f32.mrf.mxu0
        %v1391 = vadd.f32 0.0, %v1390
        %v1392 = vpop.f32.mrf.mxu0
        %v1393 = vpop.f32.mrf.mxu0
        %v1394 = vadd.f32 0.0, %v1393
        %v1395 = vpop.f32.mrf.mxu0
        %1396 = vmatprep.mubr.bf16.mxu0 0
        %1397 = vmatmul.mubr.bf16.gmra.mxu0 %v1312
        %v1398 = vpop.f32.mrf.mxu0
        %v1399 = vadd.f32 0.0, %v1398
        %v1400 = vpop.f32.mrf.mxu0
        %v1401 = vpop.f32.mrf.mxu0
        %v1402 = vadd.f32 0.0, %v1401
        %v1403 = vpop.f32.mrf.mxu0
        %1404 = vmatprep.mubr.bf16.mxu0 0
        %1405 = vmatmul.mubr.bf16.gmra.mxu0 %v1315
        %v1406 = vpop.f32.mrf.mxu0
        %v1407 = vadd.f32 0.0, %v1406
        %v1408 = vpop.f32.mrf.mxu0
        %v1409 = vpop.f32.mrf.mxu0
        %v1410 = vadd.f32 0.0, %v1409
        %v1411 = vpop.f32.mrf.mxu0
        %1412 = vmatprep.mubr.bf16.mxu0 0
        %1413 = vmatmul.mubr.bf16.gmra.mxu0 %v1318
        %v1414 = vpop.f32.mrf.mxu0
        %v1415 = vadd.f32 0.0, %v1414
        %v1416 = vpop.f32.mrf.mxu0
        %v1417 = vpop.f32.mrf.mxu0
        %v1418 = vadd.f32 0.0, %v1417
        %v1419 = vpop.f32.mrf.mxu0
        %1420 = vmatprep.mubr.bf16.mxu0 0
        %1421 = vmatmul.mubr.bf16.gmra.mxu0 %v1321
        %v1422 = vpop.f32.mrf.mxu0
        %v1423 = vadd.f32 0.0, %v1422
        %v1424 = vpop.f32.mrf.mxu0
        %v1425 = vpop.f32.mrf.mxu0
        %v1426 = vadd.f32 0.0, %v1425
        %v1427 = vpop.f32.mrf.mxu0
        %1428 = vmatprep.mubr.bf16.mxu0 0
        %1429 = vmatmul.mubr.bf16.gmra.mxu0 %v1324
        %v1430 = vpop.f32.mrf.mxu0
        %v1431 = vadd.f32 0.0, %v1430
        %v1432 = vpop.f32.mrf.mxu0
        %v1433 = vpop.f32.mrf.mxu0
        %v1434 = vadd.f32 0.0, %v1433
        %v1435 = vpop.f32.mrf.mxu0
        %1436 = vmatprep.mubr.bf16.mxu0 0
        %1437 = vmatmul.mubr.bf16.gmra.mxu0 %v1327
        %v1438 = vpop.f32.mrf.mxu0
        %v1439 = vadd.f32 0.0, %v1438
        %v1440 = vpop.f32.mrf.mxu0
        %v1441 = vpop.f32.mrf.mxu0
        %v1442 = vadd.f32 0.0, %v1441
        %v1443 = vpop.f32.mrf.mxu0
        %1444 = vmatprep.mubr.bf16.mxu0 0
        %1445 = vmatmul.mubr.bf16.gmra.mxu0 %v1330
        %v1446 = vpop.f32.mrf.mxu0
        %v1447 = vadd.f32 0.0, %v1446
        %v1448 = vpop.f32.mrf.mxu0
        %v1449 = vpop.f32.mrf.mxu0
        %v1450 = vadd.f32 0.0, %v1449
        %v1451 = vpop.f32.mrf.mxu0
        %1452 = vmatprep.mubr.bf16.mxu0 0
        %1453 = vmatmul.mubr.bf16.gmra.mxu0 %v1333
        %v1454 = vpop.f32.mrf.mxu0
        %v1455 = vadd.f32 0.0, %v1454
        %v1456 = vpop.f32.mrf.mxu0
        %v1457 = vpop.f32.mrf.mxu0
        %v1458 = vadd.f32 0.0, %v1457
        %v1459 = vpop.f32.mrf.mxu0
        %1460 = vmatprep.mubr.bf16.mxu0 0
        %1461 = vmatmul.mubr.bf16.gmra.mxu0 %v1336
        %v1462 = vpop.f32.mrf.mxu0
        %v1463 = vadd.f32 0.0, %v1462
        %v1464 = vpop.f32.mrf.mxu0
        %v1465 = vpop.f32.mrf.mxu0
        %v1466 = vadd.f32 0.0, %v1465
        %v1467 = vpop.f32.mrf.mxu0
        %1468 = vmatprep.mubr.bf16.mxu0 0
        %1469 = vmatmul.mubr.bf16.gmra.mxu0 %v1339
        %v1470 = vpop.f32.mrf.mxu0
        %v1471 = vadd.f32 0.0, %v1470
        %v1472 = vpop.f32.mrf.mxu0
        %v1473 = vpop.f32.mrf.mxu0
        %v1474 = vadd.f32 0.0, %v1473
        %v1475 = vpop.f32.mrf.mxu0
        %1476 = vmatprep.mubr.bf16.mxu0 0
        %1477 = vmatmul.mubr.bf16.gmra.mxu0 %v1342
        %v1478 = vpop.f32.mrf.mxu0
        %v1479 = vadd.f32 0.0, %v1478
        %v1480 = vpop.f32.mrf.mxu0
        %v1481 = vpop.f32.mrf.mxu0
        %v1482 = vadd.f32 0.0, %v1481
        %v1483 = vpop.f32.mrf.mxu0
        %1484 = vmatprep.mubr.bf16.mxu0 0
        %1485 = vmatmul.mubr.bf16.gmra.mxu0 %v1345
        %v1486 = vpop.f32.mrf.mxu0
        %v1487 = vadd.f32 0.0, %v1486
        %v1488 = vpop.f32.mrf.mxu0
        %v1489 = vpop.f32.mrf.mxu0
        %v1490 = vadd.f32 0.0, %v1489
        %v1491 = vpop.f32.mrf.mxu0
        %1492 = vmatprep.mubr.bf16.mxu0 0
        %1493 = vmatmul.mubr.bf16.gmra.mxu0 %v1348
        %v1494 = vpop.f32.mrf.mxu0
        %v1495 = vadd.f32 0.0, %v1494
        %v1496 = vpop.f32.mrf.mxu0
        %v1497 = vpop.f32.mrf.mxu0
        %v1498 = vadd.f32 0.0, %v1497
        %v1499 = vpop.f32.mrf.mxu0
        %1500 = vmatprep.mubr.bf16.mxu0 0
        %1501 = vmatmul.mubr.bf16.gmra.mxu0 %v1351
        %v1502 = vpop.f32.mrf.mxu0
        %v1503 = vadd.f32 0.0, %v1502
        %v1504 = vpop.f32.mrf.mxu0
        %v1505 = vpop.f32.mrf.mxu0
        %v1506 = vadd.f32 0.0, %v1505
        %v1507 = vpop.f32.mrf.mxu0
        %1508 = vmatprep.mubr.bf16.mxu0 0
        %1509 = vmatmul.mubr.bf16.gmra.mxu0 %v1354
        %v1510 = vpop.f32.mrf.mxu0
        %v1511 = vadd.f32 0.0, %v1510
        %v1512 = vpop.f32.mrf.mxu0
        %v1513 = vpop.f32.mrf.mxu0
        %v1514 = vadd.f32 0.0, %v1513
        %v1515 = vpop.f32.mrf.mxu0
        %1516 = vdwg.mxu0
        %v1517 = vadd.f32 %v1117, %v1391
        %v1518 = vadd.f32 %v1120, %v1394
        %v1519 = vadd.f32 %v1125, %v1399
        %v1520 = vadd.f32 %v1128, %v1402
        %v1521 = vadd.f32 %v1133, %v1407
        %v1522 = vadd.f32 %v1136, %v1410
        %v1523 = vadd.f32 %v1141, %v1415
        %v1524 = vadd.f32 %v1144, %v1418
        %v1525 = vadd.f32 %v1149, %v1423
        %v1526 = vadd.f32 %v1152, %v1426
        %v1527 = vadd.f32 %v1157, %v1431
        %v1528 = vadd.f32 %v1160, %v1434
        %v1529 = vadd.f32 %v1165, %v1439
        %v1530 = vadd.f32 %v1168, %v1442
        %v1531 = vadd.f32 %v1173, %v1447
        %v1532 = vadd.f32 %v1176, %v1450
        %v1533 = vadd.f32 %v1181, %v1455
        %v1534 = vadd.f32 %v1184, %v1458
        %v1535 = vadd.f32 %v1189, %v1463
        %v1536 = vadd.f32 %v1192, %v1466
        %v1537 = vadd.f32 %v1197, %v1471
        %v1538 = vadd.f32 %v1200, %v1474
        %v1539 = vadd.f32 %v1205, %v1479
        %v1540 = vadd.f32 %v1208, %v1482
        %v1541 = vadd.f32 %v1213, %v1487
        %v1542 = vadd.f32 %v1216, %v1490
        %v1543 = vadd.f32 %v1221, %v1495
        %v1544 = vadd.f32 %v1224, %v1498
        %v1545 = vadd.f32 %v1229, %v1503
        %v1546 = vadd.f32 %v1232, %v1506
        %v1547 = vadd.f32 %v1237, %v1511
        %v1548 = vadd.f32 %v1240, %v1514
        %v1549 = vld [vmem:[%s663 + $0x7] sm:$0xff]
        %v1550 = vld [vmem:[%s663 + $0xf] sm:$0xff]
        %v1551 = vld [vmem:[%s663 + $0x27] sm:$0xff]
        %v1552 = vld [vmem:[%s663 + $0x2f] sm:$0xff]
        %v1553 = vld [vmem:[%s663 + $0x47] sm:$0xff]
        %v1554 = vld [vmem:[%s663 + $0x4f] sm:$0xff]
        %v1555 = vld [vmem:[%s663 + $0x67] sm:$0xff]
        %v1556 = vld [vmem:[%s663 + $0x6f] sm:$0xff]
        %v1557 = vld [vmem:[%s663 + $0x87] sm:$0xff]
        %v1558 = vld [vmem:[%s663 + $0x8f] sm:$0xff]
        %v1559 = vld [vmem:[%s663 + $0xa7] sm:$0xff]
        %v1560 = vld [vmem:[%s663 + $0xaf] sm:$0xff]
        %v1561 = vld [vmem:[%s663 + $0xc7] sm:$0xff]
        %v1562 = vld [vmem:[%s663 + $0xcf] sm:$0xff]
        %v1563 = vld [vmem:[%s663 + $0xe7] sm:$0xff]
        %v1564 = vld [vmem:[%s663 + $0xef] sm:$0xff]
        %v1565 = vld [vmem:[%s663 + $0x107] sm:$0xff]
        %v1566 = vld [vmem:[%s663 + $0x10f] sm:$0xff]
        %v1567 = vld [vmem:[%s663 + $0x127] sm:$0xff]
        %v1568 = vld [vmem:[%s663 + $0x12f] sm:$0xff]
        %v1569 = vld [vmem:[%s663 + $0x147] sm:$0xff]
        %v1570 = vld [vmem:[%s663 + $0x14f] sm:$0xff]
        %v1571 = vld [vmem:[%s663 + $0x167] sm:$0xff]
        %v1572 = vld [vmem:[%s663 + $0x16f] sm:$0xff]
        %v1573 = vld [vmem:[%s663 + $0x187] sm:$0xff]
        %v1574 = vld [vmem:[%s663 + $0x18f] sm:$0xff]
        %v1575 = vld [vmem:[%s663 + $0x1a7] sm:$0xff]
        %v1576 = vld [vmem:[%s663 + $0x1af] sm:$0xff]
        %v1577 = vld [vmem:[%s663 + $0x1c7] sm:$0xff]
        %v1578 = vld [vmem:[%s663 + $0x1cf] sm:$0xff]
        %v1579 = vld [vmem:[%s663 + $0x1e7] sm:$0xff]
        %v1580 = vld [vmem:[%s663 + $0x1ef] sm:$0xff]
        %v1581 = vpack.c.bf16 %v1550, %v1549
        %v1582 = vpack.c.bf16 %v1552, %v1551
        %v1583 = vpack.c.bf16 %v1554, %v1553
        %v1584 = vpack.c.bf16 %v1556, %v1555
        %v1585 = vpack.c.bf16 %v1558, %v1557
        %v1586 = vpack.c.bf16 %v1560, %v1559
        %v1587 = vpack.c.bf16 %v1562, %v1561
        %v1588 = vpack.c.bf16 %v1564, %v1563
        %v1589 = vpack.c.bf16 %v1566, %v1565
        %v1590 = vpack.c.bf16 %v1568, %v1567
        %v1591 = vpack.c.bf16 %v1570, %v1569
        %v1592 = vpack.c.bf16 %v1572, %v1571
        %v1593 = vpack.c.bf16 %v1574, %v1573
        %v1594 = vpack.c.bf16 %v1576, %v1575
        %v1595 = vpack.c.bf16 %v1578, %v1577
        %v1596 = vpack.c.bf16 %v1580, %v1579
        %s1597 = scalar_lea.vmem %s3, 48
        %v1598 = vld [vmem:[%s1597] sm:$0xf]
        %v1599 = vld [vmem:[%s1597 + $0x4] sm:$0xf]
        %v1600 = vld [vmem:[%s1597 + $0x8] sm:$0xf]
        %v1601 = vld [vmem:[%s1597 + $0xc] sm:$0xf]
        %v1606 = vunpack.c.l.b16 %v1598
        %v1607 = vunpack.c.l.b16 %v1599
        %v1608 = vunpack.c.l.b16 %v1600
        %v1609 = vunpack.c.l.b16 %v1601
        %v1610 = vpack.c.b16 %v1607, %v1606
        %v1611 = vpack.c.b16 %v1609, %v1608
        %v1615 = vsel %vm590, %v1581, 0
        %v1618 = vsel %vm590, %v1582, 0
        %v1621 = vsel %vm590, %v1583, 0
        %v1624 = vsel %vm590, %v1584, 0
        %v1627 = vsel %vm590, %v1585, 0
        %v1630 = vsel %vm590, %v1586, 0
        %v1633 = vsel %vm590, %v1587, 0
        %v1636 = vsel %vm590, %v1588, 0
        %v1639 = vsel %vm590, %v1589, 0
        %v1642 = vsel %vm590, %v1590, 0
        %v1645 = vsel %vm590, %v1591, 0
        %v1648 = vsel %vm590, %v1592, 0
        %v1651 = vsel %vm590, %v1593, 0
        %v1654 = vsel %vm590, %v1594, 0
        %v1657 = vsel %vm590, %v1595, 0
        %v1660 = vsel %vm590, %v1596, 0
        %1662 = vmatprep.subr.bf16.mxu0 0
        %1663 = vmatpush1.bf16.msra.mxu0 0
        %1664 = vmatprep.subr.bf16.mxu0 0
        %1665 = vmatpush1.bf16.msra.mxu0 0
        %1666 = vmatprep.subr.bf16.mxu0 0
        %1667 = vmatpush1.bf16.msra.mxu0 0
        %1668 = vmatprep.subr.bf16.mxu0 0
        %1669 = vmatpush1.bf16.msra.mxu0 0
        %1670 = vmatprep.subr.bf16.mxu0 0
        %1671 = vmatpush1.bf16.msra.mxu0 0
        %1672 = vmatprep.subr.bf16.mxu0 0
        %1673 = vmatpush1.bf16.msra.mxu0 0
        %1674 = vmatprep.subr.bf16.mxu0 0
        %1675 = vmatpush1.bf16.msra.mxu0 %v1611
        %1676 = vmatprep.subr.bf16.mxu0 0
        %1677 = vmatpush1.bf16.msra.mxu0 %v1610
        %1678 = vmatprep.subr.bf16.mxu0 0
        %1679 = vmatpush2.bf16.msra.mxu0 0
        %1680 = vmatprep.subr.bf16.mxu0 0
        %1681 = vmatpush2.bf16.msra.mxu0 0
        %1682 = vmatprep.subr.bf16.mxu0 0
        %1683 = vmatpush2.bf16.msra.mxu0 0
        %1684 = vmatprep.subr.bf16.mxu0 0
        %1685 = vmatpush2.bf16.msra.mxu0 0
        %1686 = vmatprep.subr.bf16.mxu0 0
        %1687 = vmatpush2.bf16.msra.mxu0 0
        %1688 = vmatprep.subr.bf16.mxu0 0
        %1689 = vmatpush2.bf16.msra.mxu0 0
        %1690 = vmatprep.subr.bf16.mxu0 0
        %1691 = vmatpush2.bf16.msra.mxu0 0
        %1692 = vmatprep.subr.bf16.mxu0 0
        %1693 = vmatpush2.bf16.msra.mxu0 0
        %1694 = vmatprep.mubr.bf16.mxu0 0
        %1695 = vmatmul.mubr.bf16.gmra.mxu0 %v1615
        %v1696 = vpop.f32.mrf.mxu0
        %v1697 = vadd.f32 0.0, %v1696
        %v1698 = vpop.f32.mrf.mxu0
        %v1699 = vpop.f32.mrf.mxu0
        %v1700 = vadd.f32 0.0, %v1699
        %v1701 = vpop.f32.mrf.mxu0
        %1702 = vmatprep.mubr.bf16.mxu0 0
        %1703 = vmatmul.mubr.bf16.gmra.mxu0 %v1618
        %v1704 = vpop.f32.mrf.mxu0
        %v1705 = vadd.f32 0.0, %v1704
        %v1706 = vpop.f32.mrf.mxu0
        %v1707 = vpop.f32.mrf.mxu0
        %v1708 = vadd.f32 0.0, %v1707
        %v1709 = vpop.f32.mrf.mxu0
        %1710 = vmatprep.mubr.bf16.mxu0 0
        %1711 = vmatmul.mubr.bf16.gmra.mxu0 %v1621
        %v1712 = vpop.f32.mrf.mxu0
        %v1713 = vadd.f32 0.0, %v1712
        %v1714 = vpop.f32.mrf.mxu0
        %v1715 = vpop.f32.mrf.mxu0
        %v1716 = vadd.f32 0.0, %v1715
        %v1717 = vpop.f32.mrf.mxu0
        %1718 = vmatprep.mubr.bf16.mxu0 0
        %1719 = vmatmul.mubr.bf16.gmra.mxu0 %v1624
        %v1720 = vpop.f32.mrf.mxu0
        %v1721 = vadd.f32 0.0, %v1720
        %v1722 = vpop.f32.mrf.mxu0
        %v1723 = vpop.f32.mrf.mxu0
        %v1724 = vadd.f32 0.0, %v1723
        %v1725 = vpop.f32.mrf.mxu0
        %1726 = vmatprep.mubr.bf16.mxu0 0
        %1727 = vmatmul.mubr.bf16.gmra.mxu0 %v1627
        %v1728 = vpop.f32.mrf.mxu0
        %v1729 = vadd.f32 0.0, %v1728
        %v1730 = vpop.f32.mrf.mxu0
        %v1731 = vpop.f32.mrf.mxu0
        %v1732 = vadd.f32 0.0, %v1731
        %v1733 = vpop.f32.mrf.mxu0
        %1734 = vmatprep.mubr.bf16.mxu0 0
        %1735 = vmatmul.mubr.bf16.gmra.mxu0 %v1630
        %v1736 = vpop.f32.mrf.mxu0
        %v1737 = vadd.f32 0.0, %v1736
        %v1738 = vpop.f32.mrf.mxu0
        %v1739 = vpop.f32.mrf.mxu0
        %v1740 = vadd.f32 0.0, %v1739
        %v1741 = vpop.f32.mrf.mxu0
        %1742 = vmatprep.mubr.bf16.mxu0 0
        %1743 = vmatmul.mubr.bf16.gmra.mxu0 %v1633
        %v1744 = vpop.f32.mrf.mxu0
        %v1745 = vadd.f32 0.0, %v1744
        %v1746 = vpop.f32.mrf.mxu0
        %v1747 = vpop.f32.mrf.mxu0
        %v1748 = vadd.f32 0.0, %v1747
        %v1749 = vpop.f32.mrf.mxu0
        %1750 = vmatprep.mubr.bf16.mxu0 0
        %1751 = vmatmul.mubr.bf16.gmra.mxu0 %v1636
        %v1752 = vpop.f32.mrf.mxu0
        %v1753 = vadd.f32 0.0, %v1752
        %v1754 = vpop.f32.mrf.mxu0
        %v1755 = vpop.f32.mrf.mxu0
        %v1756 = vadd.f32 0.0, %v1755
        %v1757 = vpop.f32.mrf.mxu0
        %1758 = vmatprep.mubr.bf16.mxu0 0
        %1759 = vmatmul.mubr.bf16.gmra.mxu0 %v1639
        %v1760 = vpop.f32.mrf.mxu0
        %v1761 = vadd.f32 0.0, %v1760
        %v1762 = vpop.f32.mrf.mxu0
        %v1763 = vpop.f32.mrf.mxu0
        %v1764 = vadd.f32 0.0, %v1763
        %v1765 = vpop.f32.mrf.mxu0
        %1766 = vmatprep.mubr.bf16.mxu0 0
        %1767 = vmatmul.mubr.bf16.gmra.mxu0 %v1642
        %v1768 = vpop.f32.mrf.mxu0
        %v1769 = vadd.f32 0.0, %v1768
        %v1770 = vpop.f32.mrf.mxu0
        %v1771 = vpop.f32.mrf.mxu0
        %v1772 = vadd.f32 0.0, %v1771
        %v1773 = vpop.f32.mrf.mxu0
        %1774 = vmatprep.mubr.bf16.mxu0 0
        %1775 = vmatmul.mubr.bf16.gmra.mxu0 %v1645
        %v1776 = vpop.f32.mrf.mxu0
        %v1777 = vadd.f32 0.0, %v1776
        %v1778 = vpop.f32.mrf.mxu0
        %v1779 = vpop.f32.mrf.mxu0
        %v1780 = vadd.f32 0.0, %v1779
        %v1781 = vpop.f32.mrf.mxu0
        %1782 = vmatprep.mubr.bf16.mxu0 0
        %1783 = vmatmul.mubr.bf16.gmra.mxu0 %v1648
        %v1784 = vpop.f32.mrf.mxu0
        %v1785 = vadd.f32 0.0, %v1784
        %v1786 = vpop.f32.mrf.mxu0
        %v1787 = vpop.f32.mrf.mxu0
        %v1788 = vadd.f32 0.0, %v1787
        %v1789 = vpop.f32.mrf.mxu0
        %1790 = vmatprep.mubr.bf16.mxu0 0
        %1791 = vmatmul.mubr.bf16.gmra.mxu0 %v1651
        %v1792 = vpop.f32.mrf.mxu0
        %v1793 = vadd.f32 0.0, %v1792
        %v1794 = vpop.f32.mrf.mxu0
        %v1795 = vpop.f32.mrf.mxu0
        %v1796 = vadd.f32 0.0, %v1795
        %v1797 = vpop.f32.mrf.mxu0
        %1798 = vmatprep.mubr.bf16.mxu0 0
        %1799 = vmatmul.mubr.bf16.gmra.mxu0 %v1654
        %v1800 = vpop.f32.mrf.mxu0
        %v1801 = vadd.f32 0.0, %v1800
        %v1802 = vpop.f32.mrf.mxu0
        %v1803 = vpop.f32.mrf.mxu0
        %v1804 = vadd.f32 0.0, %v1803
        %v1805 = vpop.f32.mrf.mxu0
        %1806 = vmatprep.mubr.bf16.mxu0 0
        %1807 = vmatmul.mubr.bf16.gmra.mxu0 %v1657
        %v1808 = vpop.f32.mrf.mxu0
        %v1809 = vadd.f32 0.0, %v1808
        %v1810 = vpop.f32.mrf.mxu0
        %v1811 = vpop.f32.mrf.mxu0
        %v1812 = vadd.f32 0.0, %v1811
        %v1813 = vpop.f32.mrf.mxu0
        %1814 = vmatprep.mubr.bf16.mxu0 0
        %1815 = vmatmul.mubr.bf16.gmra.mxu0 %v1660
        %v1816 = vpop.f32.mrf.mxu0
        %v1817 = vadd.f32 0.0, %v1816
        %v1818 = vpop.f32.mrf.mxu0
        %v1819 = vpop.f32.mrf.mxu0
        %v1820 = vadd.f32 0.0, %v1819
        %v1821 = vpop.f32.mrf.mxu0
        %1822 = vdwg.mxu0
        %v1823 = vadd.f32 %v1517, %v1697
        %v1824 = vadd.f32 %v1518, %v1700
        %v1825 = vadd.f32 %v1519, %v1705
        %v1826 = vadd.f32 %v1520, %v1708
        %v1827 = vadd.f32 %v1521, %v1713
        %v1828 = vadd.f32 %v1522, %v1716
        %v1829 = vadd.f32 %v1523, %v1721
        %v1830 = vadd.f32 %v1524, %v1724
        %v1831 = vadd.f32 %v1525, %v1729
        %v1832 = vadd.f32 %v1526, %v1732
        %v1833 = vadd.f32 %v1527, %v1737
        %v1834 = vadd.f32 %v1528, %v1740
        %v1835 = vadd.f32 %v1529, %v1745
        %v1836 = vadd.f32 %v1530, %v1748
        %v1837 = vadd.f32 %v1531, %v1753
        %v1838 = vadd.f32 %v1532, %v1756
        %v1839 = vadd.f32 %v1533, %v1761
        %v1840 = vadd.f32 %v1534, %v1764
        %v1841 = vadd.f32 %v1535, %v1769
        %v1842 = vadd.f32 %v1536, %v1772
        %v1843 = vadd.f32 %v1537, %v1777
        %v1844 = vadd.f32 %v1538, %v1780
        %v1845 = vadd.f32 %v1539, %v1785
        %v1846 = vadd.f32 %v1540, %v1788
        %v1847 = vadd.f32 %v1541, %v1793
        %v1848 = vadd.f32 %v1542, %v1796
        %v1849 = vadd.f32 %v1543, %v1801
        %v1850 = vadd.f32 %v1544, %v1804
        %v1851 = vadd.f32 %v1545, %v1809
        %v1852 = vadd.f32 %v1546, %v1812
        %v1853 = vadd.f32 %v1547, %v1817
        %v1854 = vadd.f32 %v1548, %v1820
        %v1855 = vld [vmem:[%s663 + $0x8] sm:$0xff]
        %v1856 = vld [vmem:[%s663 + $0x10] sm:$0xff]
        %v1857 = vld [vmem:[%s663 + $0x28] sm:$0xff]
        %v1858 = vld [vmem:[%s663 + $0x30] sm:$0xff]
        %v1859 = vld [vmem:[%s663 + $0x48] sm:$0xff]
        %v1860 = vld [vmem:[%s663 + $0x50] sm:$0xff]
        %v1861 = vld [vmem:[%s663 + $0x68] sm:$0xff]
        %v1862 = vld [vmem:[%s663 + $0x70] sm:$0xff]
        %v1863 = vld [vmem:[%s663 + $0x88] sm:$0xff]
        %v1864 = vld [vmem:[%s663 + $0x90] sm:$0xff]
        %v1865 = vld [vmem:[%s663 + $0xa8] sm:$0xff]
        %v1866 = vld [vmem:[%s663 + $0xb0] sm:$0xff]
        %v1867 = vld [vmem:[%s663 + $0xc8] sm:$0xff]
        %v1868 = vld [vmem:[%s663 + $0xd0] sm:$0xff]
        %v1869 = vld [vmem:[%s663 + $0xe8] sm:$0xff]
        %v1870 = vld [vmem:[%s663 + $0xf0] sm:$0xff]
        %v1871 = vld [vmem:[%s663 + $0x108] sm:$0xff]
        %v1872 = vld [vmem:[%s663 + $0x110] sm:$0xff]
        %v1873 = vld [vmem:[%s663 + $0x128] sm:$0xff]
        %v1874 = vld [vmem:[%s663 + $0x130] sm:$0xff]
        %v1875 = vld [vmem:[%s663 + $0x148] sm:$0xff]
        %v1876 = vld [vmem:[%s663 + $0x150] sm:$0xff]
        %v1877 = vld [vmem:[%s663 + $0x168] sm:$0xff]
        %v1878 = vld [vmem:[%s663 + $0x170] sm:$0xff]
        %v1879 = vld [vmem:[%s663 + $0x188] sm:$0xff]
        %v1880 = vld [vmem:[%s663 + $0x190] sm:$0xff]
        %v1881 = vld [vmem:[%s663 + $0x1a8] sm:$0xff]
        %v1882 = vld [vmem:[%s663 + $0x1b0] sm:$0xff]
        %v1883 = vld [vmem:[%s663 + $0x1c8] sm:$0xff]
        %v1884 = vld [vmem:[%s663 + $0x1d0] sm:$0xff]
        %v1885 = vld [vmem:[%s663 + $0x1e8] sm:$0xff]
        %v1886 = vld [vmem:[%s663 + $0x1f0] sm:$0xff]
        %v1887 = vpack.c.bf16 %v1856, %v1855
        %v1888 = vpack.c.bf16 %v1858, %v1857
        %v1889 = vpack.c.bf16 %v1860, %v1859
        %v1890 = vpack.c.bf16 %v1862, %v1861
        %v1891 = vpack.c.bf16 %v1864, %v1863
        %v1892 = vpack.c.bf16 %v1866, %v1865
        %v1893 = vpack.c.bf16 %v1868, %v1867
        %v1894 = vpack.c.bf16 %v1870, %v1869
        %v1895 = vpack.c.bf16 %v1872, %v1871
        %v1896 = vpack.c.bf16 %v1874, %v1873
        %v1897 = vpack.c.bf16 %v1876, %v1875
        %v1898 = vpack.c.bf16 %v1878, %v1877
        %v1899 = vpack.c.bf16 %v1880, %v1879
        %v1900 = vpack.c.bf16 %v1882, %v1881
        %v1901 = vpack.c.bf16 %v1884, %v1883
        %v1902 = vpack.c.bf16 %v1886, %v1885
        %s1903 = scalar_lea.vmem %s3, 64
        %v1904 = vld [vmem:[%s1903] sm:$0xf]
        %v1905 = vld [vmem:[%s1903 + $0x4] sm:$0xf]
        %v1906 = vld [vmem:[%s1903 + $0x8] sm:$0xf]
        %v1907 = vld [vmem:[%s1903 + $0xc] sm:$0xf]
        %v1912 = vunpack.c.l.b16 %v1904
        %v1913 = vunpack.c.l.b16 %v1905
        %v1914 = vunpack.c.l.b16 %v1906
        %v1915 = vunpack.c.l.b16 %v1907
        %v1916 = vpack.c.b16 %v1913, %v1912
        %v1917 = vpack.c.b16 %v1915, %v1914
        %v1921 = vsel %vm590, %v1887, 0
        %v1924 = vsel %vm590, %v1888, 0
        %v1927 = vsel %vm590, %v1889, 0
        %v1930 = vsel %vm590, %v1890, 0
        %v1933 = vsel %vm590, %v1891, 0
        %v1936 = vsel %vm590, %v1892, 0
        %v1939 = vsel %vm590, %v1893, 0
        %v1942 = vsel %vm590, %v1894, 0
        %v1945 = vsel %vm590, %v1895, 0
        %v1948 = vsel %vm590, %v1896, 0
        %v1951 = vsel %vm590, %v1897, 0
        %v1954 = vsel %vm590, %v1898, 0
        %v1957 = vsel %vm590, %v1899, 0
        %v1960 = vsel %vm590, %v1900, 0
        %v1963 = vsel %vm590, %v1901, 0
        %v1966 = vsel %vm590, %v1902, 0
        %1968 = vmatprep.subr.bf16.mxu0 0
        %1969 = vmatpush1.bf16.msra.mxu0 0
        %1970 = vmatprep.subr.bf16.mxu0 0
        %1971 = vmatpush1.bf16.msra.mxu0 0
        %1972 = vmatprep.subr.bf16.mxu0 0
        %1973 = vmatpush1.bf16.msra.mxu0 0
        %1974 = vmatprep.subr.bf16.mxu0 0
        %1975 = vmatpush1.bf16.msra.mxu0 0
        %1976 = vmatprep.subr.bf16.mxu0 0
        %1977 = vmatpush1.bf16.msra.mxu0 0
        %1978 = vmatprep.subr.bf16.mxu0 0
        %1979 = vmatpush1.bf16.msra.mxu0 0
        %1980 = vmatprep.subr.bf16.mxu0 0
        %1981 = vmatpush1.bf16.msra.mxu0 %v1917
        %1982 = vmatprep.subr.bf16.mxu0 0
        %1983 = vmatpush1.bf16.msra.mxu0 %v1916
        %1984 = vmatprep.subr.bf16.mxu0 0
        %1985 = vmatpush2.bf16.msra.mxu0 0
        %1986 = vmatprep.subr.bf16.mxu0 0
        %1987 = vmatpush2.bf16.msra.mxu0 0
        %1988 = vmatprep.subr.bf16.mxu0 0
        %1989 = vmatpush2.bf16.msra.mxu0 0
        %1990 = vmatprep.subr.bf16.mxu0 0
        %1991 = vmatpush2.bf16.msra.mxu0 0
        %1992 = vmatprep.subr.bf16.mxu0 0
        %1993 = vmatpush2.bf16.msra.mxu0 0
        %1994 = vmatprep.subr.bf16.mxu0 0
        %1995 = vmatpush2.bf16.msra.mxu0 0
        %1996 = vmatprep.subr.bf16.mxu0 0
        %1997 = vmatpush2.bf16.msra.mxu0 0
        %1998 = vmatprep.subr.bf16.mxu0 0
        %1999 = vmatpush2.bf16.msra.mxu0 0
        %2000 = vmatprep.mubr.bf16.mxu0 0
        %2001 = vmatmul.mubr.bf16.gmra.mxu0 %v1921
        %v2002 = vpop.f32.mrf.mxu0
        %v2003 = vadd.f32 0.0, %v2002
        %v2004 = vpop.f32.mrf.mxu0
        %v2005 = vpop.f32.mrf.mxu0
        %v2006 = vadd.f32 0.0, %v2005
        %v2007 = vpop.f32.mrf.mxu0
        %2008 = vmatprep.mubr.bf16.mxu0 0
        %2009 = vmatmul.mubr.bf16.gmra.mxu0 %v1924
        %v2010 = vpop.f32.mrf.mxu0
        %v2011 = vadd.f32 0.0, %v2010
        %v2012 = vpop.f32.mrf.mxu0
        %v2013 = vpop.f32.mrf.mxu0
        %v2014 = vadd.f32 0.0, %v2013
        %v2015 = vpop.f32.mrf.mxu0
        %2016 = vmatprep.mubr.bf16.mxu0 0
        %2017 = vmatmul.mubr.bf16.gmra.mxu0 %v1927
        %v2018 = vpop.f32.mrf.mxu0
        %v2019 = vadd.f32 0.0, %v2018
        %v2020 = vpop.f32.mrf.mxu0
        %v2021 = vpop.f32.mrf.mxu0
        %v2022 = vadd.f32 0.0, %v2021
        %v2023 = vpop.f32.mrf.mxu0
        %2024 = vmatprep.mubr.bf16.mxu0 0
        %2025 = vmatmul.mubr.bf16.gmra.mxu0 %v1930
        %v2026 = vpop.f32.mrf.mxu0
        %v2027 = vadd.f32 0.0, %v2026
        %v2028 = vpop.f32.mrf.mxu0
        %v2029 = vpop.f32.mrf.mxu0
        %v2030 = vadd.f32 0.0, %v2029
        %v2031 = vpop.f32.mrf.mxu0
        %2032 = vmatprep.mubr.bf16.mxu0 0
        %2033 = vmatmul.mubr.bf16.gmra.mxu0 %v1933
        %v2034 = vpop.f32.mrf.mxu0
        %v2035 = vadd.f32 0.0, %v2034
        %v2036 = vpop.f32.mrf.mxu0
        %v2037 = vpop.f32.mrf.mxu0
        %v2038 = vadd.f32 0.0, %v2037
        %v2039 = vpop.f32.mrf.mxu0
        %2040 = vmatprep.mubr.bf16.mxu0 0
        %2041 = vmatmul.mubr.bf16.gmra.mxu0 %v1936
        %v2042 = vpop.f32.mrf.mxu0
        %v2043 = vadd.f32 0.0, %v2042
        %v2044 = vpop.f32.mrf.mxu0
        %v2045 = vpop.f32.mrf.mxu0
        %v2046 = vadd.f32 0.0, %v2045
        %v2047 = vpop.f32.mrf.mxu0
        %2048 = vmatprep.mubr.bf16.mxu0 0
        %2049 = vmatmul.mubr.bf16.gmra.mxu0 %v1939
        %v2050 = vpop.f32.mrf.mxu0
        %v2051 = vadd.f32 0.0, %v2050
        %v2052 = vpop.f32.mrf.mxu0
        %v2053 = vpop.f32.mrf.mxu0
        %v2054 = vadd.f32 0.0, %v2053
        %v2055 = vpop.f32.mrf.mxu0
        %2056 = vmatprep.mubr.bf16.mxu0 0
        %2057 = vmatmul.mubr.bf16.gmra.mxu0 %v1942
        %v2058 = vpop.f32.mrf.mxu0
        %v2059 = vadd.f32 0.0, %v2058
        %v2060 = vpop.f32.mrf.mxu0
        %v2061 = vpop.f32.mrf.mxu0
        %v2062 = vadd.f32 0.0, %v2061
        %v2063 = vpop.f32.mrf.mxu0
        %2064 = vmatprep.mubr.bf16.mxu0 0
        %2065 = vmatmul.mubr.bf16.gmra.mxu0 %v1945
        %v2066 = vpop.f32.mrf.mxu0
        %v2067 = vadd.f32 0.0, %v2066
        %v2068 = vpop.f32.mrf.mxu0
        %v2069 = vpop.f32.mrf.mxu0
        %v2070 = vadd.f32 0.0, %v2069
        %v2071 = vpop.f32.mrf.mxu0
        %2072 = vmatprep.mubr.bf16.mxu0 0
        %2073 = vmatmul.mubr.bf16.gmra.mxu0 %v1948
        %v2074 = vpop.f32.mrf.mxu0
        %v2075 = vadd.f32 0.0, %v2074
        %v2076 = vpop.f32.mrf.mxu0
        %v2077 = vpop.f32.mrf.mxu0
        %v2078 = vadd.f32 0.0, %v2077
        %v2079 = vpop.f32.mrf.mxu0
        %2080 = vmatprep.mubr.bf16.mxu0 0
        %2081 = vmatmul.mubr.bf16.gmra.mxu0 %v1951
        %v2082 = vpop.f32.mrf.mxu0
        %v2083 = vadd.f32 0.0, %v2082
        %v2084 = vpop.f32.mrf.mxu0
        %v2085 = vpop.f32.mrf.mxu0
        %v2086 = vadd.f32 0.0, %v2085
        %v2087 = vpop.f32.mrf.mxu0
        %2088 = vmatprep.mubr.bf16.mxu0 0
        %2089 = vmatmul.mubr.bf16.gmra.mxu0 %v1954
        %v2090 = vpop.f32.mrf.mxu0
        %v2091 = vadd.f32 0.0, %v2090
        %v2092 = vpop.f32.mrf.mxu0
        %v2093 = vpop.f32.mrf.mxu0
        %v2094 = vadd.f32 0.0, %v2093
        %v2095 = vpop.f32.mrf.mxu0
        %2096 = vmatprep.mubr.bf16.mxu0 0
        %2097 = vmatmul.mubr.bf16.gmra.mxu0 %v1957
        %v2098 = vpop.f32.mrf.mxu0
        %v2099 = vadd.f32 0.0, %v2098
        %v2100 = vpop.f32.mrf.mxu0
        %v2101 = vpop.f32.mrf.mxu0
        %v2102 = vadd.f32 0.0, %v2101
        %v2103 = vpop.f32.mrf.mxu0
        %2104 = vmatprep.mubr.bf16.mxu0 0
        %2105 = vmatmul.mubr.bf16.gmra.mxu0 %v1960
        %v2106 = vpop.f32.mrf.mxu0
        %v2107 = vadd.f32 0.0, %v2106
        %v2108 = vpop.f32.mrf.mxu0
        %v2109 = vpop.f32.mrf.mxu0
        %v2110 = vadd.f32 0.0, %v2109
        %v2111 = vpop.f32.mrf.mxu0
        %2112 = vmatprep.mubr.bf16.mxu0 0
        %2113 = vmatmul.mubr.bf16.gmra.mxu0 %v1963
        %v2114 = vpop.f32.mrf.mxu0
        %v2115 = vadd.f32 0.0, %v2114
        %v2116 = vpop.f32.mrf.mxu0
        %v2117 = vpop.f32.mrf.mxu0
        %v2118 = vadd.f32 0.0, %v2117
        %v2119 = vpop.f32.mrf.mxu0
        %2120 = vmatprep.mubr.bf16.mxu0 0
        %2121 = vmatmul.mubr.bf16.gmra.mxu0 %v1966
        %v2122 = vpop.f32.mrf.mxu0
        %v2123 = vadd.f32 0.0, %v2122
        %v2124 = vpop.f32.mrf.mxu0
        %v2125 = vpop.f32.mrf.mxu0
        %v2126 = vadd.f32 0.0, %v2125
        %v2127 = vpop.f32.mrf.mxu0
        %2128 = vdwg.mxu0
        %v2129 = vadd.f32 %v1823, %v2003
        %v2130 = vadd.f32 %v1824, %v2006
        %v2131 = vadd.f32 %v1825, %v2011
        %v2132 = vadd.f32 %v1826, %v2014
        %v2133 = vadd.f32 %v1827, %v2019
        %v2134 = vadd.f32 %v1828, %v2022
        %v2135 = vadd.f32 %v1829, %v2027
        %v2136 = vadd.f32 %v1830, %v2030
        %v2137 = vadd.f32 %v1831, %v2035
        %v2138 = vadd.f32 %v1832, %v2038
        %v2139 = vadd.f32 %v1833, %v2043
        %v2140 = vadd.f32 %v1834, %v2046
        %v2141 = vadd.f32 %v1835, %v2051
        %v2142 = vadd.f32 %v1836, %v2054
        %v2143 = vadd.f32 %v1837, %v2059
        %v2144 = vadd.f32 %v1838, %v2062
        %v2145 = vadd.f32 %v1839, %v2067
        %v2146 = vadd.f32 %v1840, %v2070
        %v2147 = vadd.f32 %v1841, %v2075
        %v2148 = vadd.f32 %v1842, %v2078
        %v2149 = vadd.f32 %v1843, %v2083
        %v2150 = vadd.f32 %v1844, %v2086
        %v2151 = vadd.f32 %v1845, %v2091
        %v2152 = vadd.f32 %v1846, %v2094
        %v2153 = vadd.f32 %v1847, %v2099
        %v2154 = vadd.f32 %v1848, %v2102
        %v2155 = vadd.f32 %v1849, %v2107
        %v2156 = vadd.f32 %v1850, %v2110
        %v2157 = vadd.f32 %v1851, %v2115
        %v2158 = vadd.f32 %v1852, %v2118
        %v2159 = vadd.f32 %v1853, %v2123
        %v2160 = vadd.f32 %v1854, %v2126
        %v2161 = vld [vmem:[%s663 + $0x9] sm:$0xff]
        %v2162 = vld [vmem:[%s663 + $0x11] sm:$0xff]
        %v2163 = vld [vmem:[%s663 + $0x29] sm:$0xff]
        %v2164 = vld [vmem:[%s663 + $0x31] sm:$0xff]
        %v2165 = vld [vmem:[%s663 + $0x49] sm:$0xff]
        %v2166 = vld [vmem:[%s663 + $0x51] sm:$0xff]
        %v2167 = vld [vmem:[%s663 + $0x69] sm:$0xff]
        %v2168 = vld [vmem:[%s663 + $0x71] sm:$0xff]
        %v2169 = vld [vmem:[%s663 + $0x89] sm:$0xff]
        %v2170 = vld [vmem:[%s663 + $0x91] sm:$0xff]
        %v2171 = vld [vmem:[%s663 + $0xa9] sm:$0xff]
        %v2172 = vld [vmem:[%s663 + $0xb1] sm:$0xff]
        %v2173 = vld [vmem:[%s663 + $0xc9] sm:$0xff]
        %v2174 = vld [vmem:[%s663 + $0xd1] sm:$0xff]
        %v2175 = vld [vmem:[%s663 + $0xe9] sm:$0xff]
        %v2176 = vld [vmem:[%s663 + $0xf1] sm:$0xff]
        %v2177 = vld [vmem:[%s663 + $0x109] sm:$0xff]
        %v2178 = vld [vmem:[%s663 + $0x111] sm:$0xff]
        %v2179 = vld [vmem:[%s663 + $0x129] sm:$0xff]
        %v2180 = vld [vmem:[%s663 + $0x131] sm:$0xff]
        %v2181 = vld [vmem:[%s663 + $0x149] sm:$0xff]
        %v2182 = vld [vmem:[%s663 + $0x151] sm:$0xff]
        %v2183 = vld [vmem:[%s663 + $0x169] sm:$0xff]
        %v2184 = vld [vmem:[%s663 + $0x171] sm:$0xff]
        %v2185 = vld [vmem:[%s663 + $0x189] sm:$0xff]
        %v2186 = vld [vmem:[%s663 + $0x191] sm:$0xff]
        %v2187 = vld [vmem:[%s663 + $0x1a9] sm:$0xff]
        %v2188 = vld [vmem:[%s663 + $0x1b1] sm:$0xff]
        %v2189 = vld [vmem:[%s663 + $0x1c9] sm:$0xff]
        %v2190 = vld [vmem:[%s663 + $0x1d1] sm:$0xff]
        %v2191 = vld [vmem:[%s663 + $0x1e9] sm:$0xff]
        %v2192 = vld [vmem:[%s663 + $0x1f1] sm:$0xff]
        %v2193 = vpack.c.bf16 %v2162, %v2161
        %v2194 = vpack.c.bf16 %v2164, %v2163
        %v2195 = vpack.c.bf16 %v2166, %v2165
        %v2196 = vpack.c.bf16 %v2168, %v2167
        %v2197 = vpack.c.bf16 %v2170, %v2169
        %v2198 = vpack.c.bf16 %v2172, %v2171
        %v2199 = vpack.c.bf16 %v2174, %v2173
        %v2200 = vpack.c.bf16 %v2176, %v2175
        %v2201 = vpack.c.bf16 %v2178, %v2177
        %v2202 = vpack.c.bf16 %v2180, %v2179
        %v2203 = vpack.c.bf16 %v2182, %v2181
        %v2204 = vpack.c.bf16 %v2184, %v2183
        %v2205 = vpack.c.bf16 %v2186, %v2185
        %v2206 = vpack.c.bf16 %v2188, %v2187
        %v2207 = vpack.c.bf16 %v2190, %v2189
        %v2208 = vpack.c.bf16 %v2192, %v2191
        %s2209 = scalar_lea.vmem %s3, 80
        %v2210 = vld [vmem:[%s2209] sm:$0xf]
        %v2211 = vld [vmem:[%s2209 + $0x4] sm:$0xf]
        %v2212 = vld [vmem:[%s2209 + $0x8] sm:$0xf]
        %v2213 = vld [vmem:[%s2209 + $0xc] sm:$0xf]
        %v2218 = vunpack.c.l.b16 %v2210
        %v2219 = vunpack.c.l.b16 %v2211
        %v2220 = vunpack.c.l.b16 %v2212
        %v2221 = vunpack.c.l.b16 %v2213
        %v2222 = vpack.c.b16 %v2219, %v2218
        %v2223 = vpack.c.b16 %v2221, %v2220
        %v2227 = vsel %vm590, %v2193, 0
        %v2230 = vsel %vm590, %v2194, 0
        %v2233 = vsel %vm590, %v2195, 0
        %v2236 = vsel %vm590, %v2196, 0
        %v2239 = vsel %vm590, %v2197, 0
        %v2242 = vsel %vm590, %v2198, 0
        %v2245 = vsel %vm590, %v2199, 0
        %v2248 = vsel %vm590, %v2200, 0
        %v2251 = vsel %vm590, %v2201, 0
        %v2254 = vsel %vm590, %v2202, 0
        %v2257 = vsel %vm590, %v2203, 0
        %v2260 = vsel %vm590, %v2204, 0
        %v2263 = vsel %vm590, %v2205, 0
        %v2266 = vsel %vm590, %v2206, 0
        %v2269 = vsel %vm590, %v2207, 0
        %v2272 = vsel %vm590, %v2208, 0
        %2274 = vmatprep.subr.bf16.mxu0 0
        %2275 = vmatpush1.bf16.msra.mxu0 0
        %2276 = vmatprep.subr.bf16.mxu0 0
        %2277 = vmatpush1.bf16.msra.mxu0 0
        %2278 = vmatprep.subr.bf16.mxu0 0
        %2279 = vmatpush1.bf16.msra.mxu0 0
        %2280 = vmatprep.subr.bf16.mxu0 0
        %2281 = vmatpush1.bf16.msra.mxu0 0
        %2282 = vmatprep.subr.bf16.mxu0 0
        %2283 = vmatpush1.bf16.msra.mxu0 0
        %2284 = vmatprep.subr.bf16.mxu0 0
        %2285 = vmatpush1.bf16.msra.mxu0 0
        %2286 = vmatprep.subr.bf16.mxu0 0
        %2287 = vmatpush1.bf16.msra.mxu0 %v2223
        %2288 = vmatprep.subr.bf16.mxu0 0
        %2289 = vmatpush1.bf16.msra.mxu0 %v2222
        %2290 = vmatprep.subr.bf16.mxu0 0
        %2291 = vmatpush2.bf16.msra.mxu0 0
        %2292 = vmatprep.subr.bf16.mxu0 0
        %2293 = vmatpush2.bf16.msra.mxu0 0
        %2294 = vmatprep.subr.bf16.mxu0 0
        %2295 = vmatpush2.bf16.msra.mxu0 0
        %2296 = vmatprep.subr.bf16.mxu0 0
        %2297 = vmatpush2.bf16.msra.mxu0 0
        %2298 = vmatprep.subr.bf16.mxu0 0
        %2299 = vmatpush2.bf16.msra.mxu0 0
        %2300 = vmatprep.subr.bf16.mxu0 0
        %2301 = vmatpush2.bf16.msra.mxu0 0
        %2302 = vmatprep.subr.bf16.mxu0 0
        %2303 = vmatpush2.bf16.msra.mxu0 0
        %2304 = vmatprep.subr.bf16.mxu0 0
        %2305 = vmatpush2.bf16.msra.mxu0 0
        %2306 = vmatprep.mubr.bf16.mxu0 0
        %2307 = vmatmul.mubr.bf16.gmra.mxu0 %v2227
        %v2308 = vpop.f32.mrf.mxu0
        %v2309 = vadd.f32 0.0, %v2308
        %v2310 = vpop.f32.mrf.mxu0
        %v2311 = vpop.f32.mrf.mxu0
        %v2312 = vadd.f32 0.0, %v2311
        %v2313 = vpop.f32.mrf.mxu0
        %2314 = vmatprep.mubr.bf16.mxu0 0
        %2315 = vmatmul.mubr.bf16.gmra.mxu0 %v2230
        %v2316 = vpop.f32.mrf.mxu0
        %v2317 = vadd.f32 0.0, %v2316
        %v2318 = vpop.f32.mrf.mxu0
        %v2319 = vpop.f32.mrf.mxu0
        %v2320 = vadd.f32 0.0, %v2319
        %v2321 = vpop.f32.mrf.mxu0
        %2322 = vmatprep.mubr.bf16.mxu0 0
        %2323 = vmatmul.mubr.bf16.gmra.mxu0 %v2233
        %v2324 = vpop.f32.mrf.mxu0
        %v2325 = vadd.f32 0.0, %v2324
        %v2326 = vpop.f32.mrf.mxu0
        %v2327 = vpop.f32.mrf.mxu0
        %v2328 = vadd.f32 0.0, %v2327
        %v2329 = vpop.f32.mrf.mxu0
        %2330 = vmatprep.mubr.bf16.mxu0 0
        %2331 = vmatmul.mubr.bf16.gmra.mxu0 %v2236
        %v2332 = vpop.f32.mrf.mxu0
        %v2333 = vadd.f32 0.0, %v2332
        %v2334 = vpop.f32.mrf.mxu0
        %v2335 = vpop.f32.mrf.mxu0
        %v2336 = vadd.f32 0.0, %v2335
        %v2337 = vpop.f32.mrf.mxu0
        %2338 = vmatprep.mubr.bf16.mxu0 0
        %2339 = vmatmul.mubr.bf16.gmra.mxu0 %v2239
        %v2340 = vpop.f32.mrf.mxu0
        %v2341 = vadd.f32 0.0, %v2340
        %v2342 = vpop.f32.mrf.mxu0
        %v2343 = vpop.f32.mrf.mxu0
        %v2344 = vadd.f32 0.0, %v2343
        %v2345 = vpop.f32.mrf.mxu0
        %2346 = vmatprep.mubr.bf16.mxu0 0
        %2347 = vmatmul.mubr.bf16.gmra.mxu0 %v2242
        %v2348 = vpop.f32.mrf.mxu0
        %v2349 = vadd.f32 0.0, %v2348
        %v2350 = vpop.f32.mrf.mxu0
        %v2351 = vpop.f32.mrf.mxu0
        %v2352 = vadd.f32 0.0, %v2351
        %v2353 = vpop.f32.mrf.mxu0
        %2354 = vmatprep.mubr.bf16.mxu0 0
        %2355 = vmatmul.mubr.bf16.gmra.mxu0 %v2245
        %v2356 = vpop.f32.mrf.mxu0
        %v2357 = vadd.f32 0.0, %v2356
        %v2358 = vpop.f32.mrf.mxu0
        %v2359 = vpop.f32.mrf.mxu0
        %v2360 = vadd.f32 0.0, %v2359
        %v2361 = vpop.f32.mrf.mxu0
        %2362 = vmatprep.mubr.bf16.mxu0 0
        %2363 = vmatmul.mubr.bf16.gmra.mxu0 %v2248
        %v2364 = vpop.f32.mrf.mxu0
        %v2365 = vadd.f32 0.0, %v2364
        %v2366 = vpop.f32.mrf.mxu0
        %v2367 = vpop.f32.mrf.mxu0
        %v2368 = vadd.f32 0.0, %v2367
        %v2369 = vpop.f32.mrf.mxu0
        %2370 = vmatprep.mubr.bf16.mxu0 0
        %2371 = vmatmul.mubr.bf16.gmra.mxu0 %v2251
        %v2372 = vpop.f32.mrf.mxu0
        %v2373 = vadd.f32 0.0, %v2372
        %v2374 = vpop.f32.mrf.mxu0
        %v2375 = vpop.f32.mrf.mxu0
        %v2376 = vadd.f32 0.0, %v2375
        %v2377 = vpop.f32.mrf.mxu0
        %2378 = vmatprep.mubr.bf16.mxu0 0
        %2379 = vmatmul.mubr.bf16.gmra.mxu0 %v2254
        %v2380 = vpop.f32.mrf.mxu0
        %v2381 = vadd.f32 0.0, %v2380
        %v2382 = vpop.f32.mrf.mxu0
        %v2383 = vpop.f32.mrf.mxu0
        %v2384 = vadd.f32 0.0, %v2383
        %v2385 = vpop.f32.mrf.mxu0
        %2386 = vmatprep.mubr.bf16.mxu0 0
        %2387 = vmatmul.mubr.bf16.gmra.mxu0 %v2257
        %v2388 = vpop.f32.mrf.mxu0
        %v2389 = vadd.f32 0.0, %v2388
        %v2390 = vpop.f32.mrf.mxu0
        %v2391 = vpop.f32.mrf.mxu0
        %v2392 = vadd.f32 0.0, %v2391
        %v2393 = vpop.f32.mrf.mxu0
        %2394 = vmatprep.mubr.bf16.mxu0 0
        %2395 = vmatmul.mubr.bf16.gmra.mxu0 %v2260
        %v2396 = vpop.f32.mrf.mxu0
        %v2397 = vadd.f32 0.0, %v2396
        %v2398 = vpop.f32.mrf.mxu0
        %v2399 = vpop.f32.mrf.mxu0
        %v2400 = vadd.f32 0.0, %v2399
        %v2401 = vpop.f32.mrf.mxu0
        %2402 = vmatprep.mubr.bf16.mxu0 0
        %2403 = vmatmul.mubr.bf16.gmra.mxu0 %v2263
        %v2404 = vpop.f32.mrf.mxu0
        %v2405 = vadd.f32 0.0, %v2404
        %v2406 = vpop.f32.mrf.mxu0
        %v2407 = vpop.f32.mrf.mxu0
        %v2408 = vadd.f32 0.0, %v2407
        %v2409 = vpop.f32.mrf.mxu0
        %2410 = vmatprep.mubr.bf16.mxu0 0
        %2411 = vmatmul.mubr.bf16.gmra.mxu0 %v2266
        %v2412 = vpop.f32.mrf.mxu0
        %v2413 = vadd.f32 0.0, %v2412
        %v2414 = vpop.f32.mrf.mxu0
        %v2415 = vpop.f32.mrf.mxu0
        %v2416 = vadd.f32 0.0, %v2415
        %v2417 = vpop.f32.mrf.mxu0
        %2418 = vmatprep.mubr.bf16.mxu0 0
        %2419 = vmatmul.mubr.bf16.gmra.mxu0 %v2269
        %v2420 = vpop.f32.mrf.mxu0
        %v2421 = vadd.f32 0.0, %v2420
        %v2422 = vpop.f32.mrf.mxu0
        %v2423 = vpop.f32.mrf.mxu0
        %v2424 = vadd.f32 0.0, %v2423
        %v2425 = vpop.f32.mrf.mxu0
        %2426 = vmatprep.mubr.bf16.mxu0 0
        %2427 = vmatmul.mubr.bf16.gmra.mxu0 %v2272
        %v2428 = vpop.f32.mrf.mxu0
        %v2429 = vadd.f32 0.0, %v2428
        %v2430 = vpop.f32.mrf.mxu0
        %v2431 = vpop.f32.mrf.mxu0
        %v2432 = vadd.f32 0.0, %v2431
        %v2433 = vpop.f32.mrf.mxu0
        %2434 = vdwg.mxu0
        %v2435 = vadd.f32 %v2129, %v2309
        %v2436 = vadd.f32 %v2130, %v2312
        %v2437 = vadd.f32 %v2131, %v2317
        %v2438 = vadd.f32 %v2132, %v2320
        %v2439 = vadd.f32 %v2133, %v2325
        %v2440 = vadd.f32 %v2134, %v2328
        %v2441 = vadd.f32 %v2135, %v2333
        %v2442 = vadd.f32 %v2136, %v2336
        %v2443 = vadd.f32 %v2137, %v2341
        %v2444 = vadd.f32 %v2138, %v2344
        %v2445 = vadd.f32 %v2139, %v2349
        %v2446 = vadd.f32 %v2140, %v2352
        %v2447 = vadd.f32 %v2141, %v2357
        %v2448 = vadd.f32 %v2142, %v2360
        %v2449 = vadd.f32 %v2143, %v2365
        %v2450 = vadd.f32 %v2144, %v2368
        %v2451 = vadd.f32 %v2145, %v2373
        %v2452 = vadd.f32 %v2146, %v2376
        %v2453 = vadd.f32 %v2147, %v2381
        %v2454 = vadd.f32 %v2148, %v2384
        %v2455 = vadd.f32 %v2149, %v2389
        %v2456 = vadd.f32 %v2150, %v2392
        %v2457 = vadd.f32 %v2151, %v2397
        %v2458 = vadd.f32 %v2152, %v2400
        %v2459 = vadd.f32 %v2153, %v2405
        %v2460 = vadd.f32 %v2154, %v2408
        %v2461 = vadd.f32 %v2155, %v2413
        %v2462 = vadd.f32 %v2156, %v2416
        %v2463 = vadd.f32 %v2157, %v2421
        %v2464 = vadd.f32 %v2158, %v2424
        %v2465 = vadd.f32 %v2159, %v2429
        %v2466 = vadd.f32 %v2160, %v2432
        %s2467 = scalar_lea.vmem [#allocation2], 64
        %v2468 = vld [vmem:[%s2467 + $0x7] sm:$0xff]
        %v2469 = vld [vmem:[%s2467 + $0xf] sm:$0xff]
        %v2470 = vld [vmem:[%s2467 + $0x27] sm:$0xff]
        %v2471 = vld [vmem:[%s2467 + $0x2f] sm:$0xff]
        %v2472 = vld [vmem:[%s2467 + $0x47] sm:$0xff]
        %v2473 = vld [vmem:[%s2467 + $0x4f] sm:$0xff]
        %v2474 = vld [vmem:[%s2467 + $0x67] sm:$0xff]
        %v2475 = vld [vmem:[%s2467 + $0x6f] sm:$0xff]
        %v2476 = vld [vmem:[%s2467 + $0x87] sm:$0xff]
        %v2477 = vld [vmem:[%s2467 + $0x8f] sm:$0xff]
        %v2478 = vld [vmem:[%s2467 + $0xa7] sm:$0xff]
        %v2479 = vld [vmem:[%s2467 + $0xaf] sm:$0xff]
        %v2480 = vld [vmem:[%s2467 + $0xc7] sm:$0xff]
        %v2481 = vld [vmem:[%s2467 + $0xcf] sm:$0xff]
        %v2482 = vld [vmem:[%s2467 + $0xe7] sm:$0xff]
        %v2483 = vld [vmem:[%s2467 + $0xef] sm:$0xff]
        %v2484 = vld [vmem:[%s2467 + $0x107] sm:$0xff]
        %v2485 = vld [vmem:[%s2467 + $0x10f] sm:$0xff]
        %v2486 = vld [vmem:[%s2467 + $0x127] sm:$0xff]
        %v2487 = vld [vmem:[%s2467 + $0x12f] sm:$0xff]
        %v2488 = vld [vmem:[%s2467 + $0x147] sm:$0xff]
        %v2489 = vld [vmem:[%s2467 + $0x14f] sm:$0xff]
        %v2490 = vld [vmem:[%s2467 + $0x167] sm:$0xff]
        %v2491 = vld [vmem:[%s2467 + $0x16f] sm:$0xff]
        %v2492 = vld [vmem:[%s2467 + $0x187] sm:$0xff]
        %v2493 = vld [vmem:[%s2467 + $0x18f] sm:$0xff]
        %v2494 = vld [vmem:[%s2467 + $0x1a7] sm:$0xff]
        %v2495 = vld [vmem:[%s2467 + $0x1af] sm:$0xff]
        %v2496 = vld [vmem:[%s2467 + $0x1c7] sm:$0xff]
        %v2497 = vld [vmem:[%s2467 + $0x1cf] sm:$0xff]
        %v2498 = vld [vmem:[%s2467 + $0x1e7] sm:$0xff]
        %v2499 = vld [vmem:[%s2467 + $0x1ef] sm:$0xff]
        %v2500 = vpack.c.bf16 %v2469, %v2468
        %v2501 = vpack.c.bf16 %v2471, %v2470
        %v2502 = vpack.c.bf16 %v2473, %v2472
        %v2503 = vpack.c.bf16 %v2475, %v2474
        %v2504 = vpack.c.bf16 %v2477, %v2476
        %v2505 = vpack.c.bf16 %v2479, %v2478
        %v2506 = vpack.c.bf16 %v2481, %v2480
        %v2507 = vpack.c.bf16 %v2483, %v2482
        %v2508 = vpack.c.bf16 %v2485, %v2484
        %v2509 = vpack.c.bf16 %v2487, %v2486
        %v2510 = vpack.c.bf16 %v2489, %v2488
        %v2511 = vpack.c.bf16 %v2491, %v2490
        %v2512 = vpack.c.bf16 %v2493, %v2492
        %v2513 = vpack.c.bf16 %v2495, %v2494
        %v2514 = vpack.c.bf16 %v2497, %v2496
        %v2515 = vpack.c.bf16 %v2499, %v2498
        %s2516 = scalar_lea.vmem %s3, 96
        %v2517 = vld [vmem:[%s2516] sm:$0xf]
        %v2518 = vld [vmem:[%s2516 + $0x4] sm:$0xf]
        %v2519 = vld [vmem:[%s2516 + $0x8] sm:$0xf]
        %v2520 = vld [vmem:[%s2516 + $0xc] sm:$0xf]
        %v2525 = vunpack.c.l.b16 %v2517
        %v2526 = vunpack.c.l.b16 %v2518
        %v2527 = vunpack.c.l.b16 %v2519
        %v2528 = vunpack.c.l.b16 %v2520
        %v2529 = vpack.c.b16 %v2526, %v2525
        %v2530 = vpack.c.b16 %v2528, %v2527
        %v2534 = vsel %vm590, %v2500, 0
        %v2537 = vsel %vm590, %v2501, 0
        %v2540 = vsel %vm590, %v2502, 0
        %v2543 = vsel %vm590, %v2503, 0
        %v2546 = vsel %vm590, %v2504, 0
        %v2549 = vsel %vm590, %v2505, 0
        %v2552 = vsel %vm590, %v2506, 0
        %v2555 = vsel %vm590, %v2507, 0
        %v2558 = vsel %vm590, %v2508, 0
        %v2561 = vsel %vm590, %v2509, 0
        %v2564 = vsel %vm590, %v2510, 0
        %v2567 = vsel %vm590, %v2511, 0
        %v2570 = vsel %vm590, %v2512, 0
        %v2573 = vsel %vm590, %v2513, 0
        %v2576 = vsel %vm590, %v2514, 0
        %v2579 = vsel %vm590, %v2515, 0
        %2581 = vmatprep.subr.bf16.mxu0 0
        %2582 = vmatpush1.bf16.msra.mxu0 0
        %2583 = vmatprep.subr.bf16.mxu0 0
        %2584 = vmatpush1.bf16.msra.mxu0 0
        %2585 = vmatprep.subr.bf16.mxu0 0
        %2586 = vmatpush1.bf16.msra.mxu0 0
        %2587 = vmatprep.subr.bf16.mxu0 0
        %2588 = vmatpush1.bf16.msra.mxu0 0
        %2589 = vmatprep.subr.bf16.mxu0 0
        %2590 = vmatpush1.bf16.msra.mxu0 0
        %2591 = vmatprep.subr.bf16.mxu0 0
        %2592 = vmatpush1.bf16.msra.mxu0 0
        %2593 = vmatprep.subr.bf16.mxu0 0
        %2594 = vmatpush1.bf16.msra.mxu0 %v2530
        %2595 = vmatprep.subr.bf16.mxu0 0
        %2596 = vmatpush1.bf16.msra.mxu0 %v2529
        %2597 = vmatprep.subr.bf16.mxu0 0
        %2598 = vmatpush2.bf16.msra.mxu0 0
        %2599 = vmatprep.subr.bf16.mxu0 0
        %2600 = vmatpush2.bf16.msra.mxu0 0
        %2601 = vmatprep.subr.bf16.mxu0 0
        %2602 = vmatpush2.bf16.msra.mxu0 0
        %2603 = vmatprep.subr.bf16.mxu0 0
        %2604 = vmatpush2.bf16.msra.mxu0 0
        %2605 = vmatprep.subr.bf16.mxu0 0
        %2606 = vmatpush2.bf16.msra.mxu0 0
        %2607 = vmatprep.subr.bf16.mxu0 0
        %2608 = vmatpush2.bf16.msra.mxu0 0
        %2609 = vmatprep.subr.bf16.mxu0 0
        %2610 = vmatpush2.bf16.msra.mxu0 0
        %2611 = vmatprep.subr.bf16.mxu0 0
        %2612 = vmatpush2.bf16.msra.mxu0 0
        %2613 = vmatprep.mubr.bf16.mxu0 0
        %2614 = vmatmul.mubr.bf16.gmra.mxu0 %v2534
        %v2615 = vpop.f32.mrf.mxu0
        %v2616 = vadd.f32 0.0, %v2615
        %v2617 = vpop.f32.mrf.mxu0
        %v2618 = vpop.f32.mrf.mxu0
        %v2619 = vadd.f32 0.0, %v2618
        %v2620 = vpop.f32.mrf.mxu0
        %2621 = vmatprep.mubr.bf16.mxu0 0
        %2622 = vmatmul.mubr.bf16.gmra.mxu0 %v2537
        %v2623 = vpop.f32.mrf.mxu0
        %v2624 = vadd.f32 0.0, %v2623
        %v2625 = vpop.f32.mrf.mxu0
        %v2626 = vpop.f32.mrf.mxu0
        %v2627 = vadd.f32 0.0, %v2626
        %v2628 = vpop.f32.mrf.mxu0
        %2629 = vmatprep.mubr.bf16.mxu0 0
        %2630 = vmatmul.mubr.bf16.gmra.mxu0 %v2540
        %v2631 = vpop.f32.mrf.mxu0
        %v2632 = vadd.f32 0.0, %v2631
        %v2633 = vpop.f32.mrf.mxu0
        %v2634 = vpop.f32.mrf.mxu0
        %v2635 = vadd.f32 0.0, %v2634
        %v2636 = vpop.f32.mrf.mxu0
        %2637 = vmatprep.mubr.bf16.mxu0 0
        %2638 = vmatmul.mubr.bf16.gmra.mxu0 %v2543
        %v2639 = vpop.f32.mrf.mxu0
        %v2640 = vadd.f32 0.0, %v2639
        %v2641 = vpop.f32.mrf.mxu0
        %v2642 = vpop.f32.mrf.mxu0
        %v2643 = vadd.f32 0.0, %v2642
        %v2644 = vpop.f32.mrf.mxu0
        %2645 = vmatprep.mubr.bf16.mxu0 0
        %2646 = vmatmul.mubr.bf16.gmra.mxu0 %v2546
        %v2647 = vpop.f32.mrf.mxu0
        %v2648 = vadd.f32 0.0, %v2647
        %v2649 = vpop.f32.mrf.mxu0
        %v2650 = vpop.f32.mrf.mxu0
        %v2651 = vadd.f32 0.0, %v2650
        %v2652 = vpop.f32.mrf.mxu0
        %2653 = vmatprep.mubr.bf16.mxu0 0
        %2654 = vmatmul.mubr.bf16.gmra.mxu0 %v2549
        %v2655 = vpop.f32.mrf.mxu0
        %v2656 = vadd.f32 0.0, %v2655
        %v2657 = vpop.f32.mrf.mxu0
        %v2658 = vpop.f32.mrf.mxu0
        %v2659 = vadd.f32 0.0, %v2658
        %v2660 = vpop.f32.mrf.mxu0
        %2661 = vmatprep.mubr.bf16.mxu0 0
        %2662 = vmatmul.mubr.bf16.gmra.mxu0 %v2552
        %v2663 = vpop.f32.mrf.mxu0
        %v2664 = vadd.f32 0.0, %v2663
        %v2665 = vpop.f32.mrf.mxu0
        %v2666 = vpop.f32.mrf.mxu0
        %v2667 = vadd.f32 0.0, %v2666
        %v2668 = vpop.f32.mrf.mxu0
        %2669 = vmatprep.mubr.bf16.mxu0 0
        %2670 = vmatmul.mubr.bf16.gmra.mxu0 %v2555
        %v2671 = vpop.f32.mrf.mxu0
        %v2672 = vadd.f32 0.0, %v2671
        %v2673 = vpop.f32.mrf.mxu0
        %v2674 = vpop.f32.mrf.mxu0
        %v2675 = vadd.f32 0.0, %v2674
        %v2676 = vpop.f32.mrf.mxu0
        %2677 = vmatprep.mubr.bf16.mxu0 0
        %2678 = vmatmul.mubr.bf16.gmra.mxu0 %v2558
        %v2679 = vpop.f32.mrf.mxu0
        %v2680 = vadd.f32 0.0, %v2679
        %v2681 = vpop.f32.mrf.mxu0
        %v2682 = vpop.f32.mrf.mxu0
        %v2683 = vadd.f32 0.0, %v2682
        %v2684 = vpop.f32.mrf.mxu0
        %2685 = vmatprep.mubr.bf16.mxu0 0
        %2686 = vmatmul.mubr.bf16.gmra.mxu0 %v2561
        %v2687 = vpop.f32.mrf.mxu0
        %v2688 = vadd.f32 0.0, %v2687
        %v2689 = vpop.f32.mrf.mxu0
        %v2690 = vpop.f32.mrf.mxu0
        %v2691 = vadd.f32 0.0, %v2690
        %v2692 = vpop.f32.mrf.mxu0
        %2693 = vmatprep.mubr.bf16.mxu0 0
        %2694 = vmatmul.mubr.bf16.gmra.mxu0 %v2564
        %v2695 = vpop.f32.mrf.mxu0
        %v2696 = vadd.f32 0.0, %v2695
        %v2697 = vpop.f32.mrf.mxu0
        %v2698 = vpop.f32.mrf.mxu0
        %v2699 = vadd.f32 0.0, %v2698
        %v2700 = vpop.f32.mrf.mxu0
        %2701 = vmatprep.mubr.bf16.mxu0 0
        %2702 = vmatmul.mubr.bf16.gmra.mxu0 %v2567
        %v2703 = vpop.f32.mrf.mxu0
        %v2704 = vadd.f32 0.0, %v2703
        %v2705 = vpop.f32.mrf.mxu0
        %v2706 = vpop.f32.mrf.mxu0
        %v2707 = vadd.f32 0.0, %v2706
        %v2708 = vpop.f32.mrf.mxu0
        %2709 = vmatprep.mubr.bf16.mxu0 0
        %2710 = vmatmul.mubr.bf16.gmra.mxu0 %v2570
        %v2711 = vpop.f32.mrf.mxu0
        %v2712 = vadd.f32 0.0, %v2711
        %v2713 = vpop.f32.mrf.mxu0
        %v2714 = vpop.f32.mrf.mxu0
        %v2715 = vadd.f32 0.0, %v2714
        %v2716 = vpop.f32.mrf.mxu0
        %2717 = vmatprep.mubr.bf16.mxu0 0
        %2718 = vmatmul.mubr.bf16.gmra.mxu0 %v2573
        %v2719 = vpop.f32.mrf.mxu0
        %v2720 = vadd.f32 0.0, %v2719
        %v2721 = vpop.f32.mrf.mxu0
        %v2722 = vpop.f32.mrf.mxu0
        %v2723 = vadd.f32 0.0, %v2722
        %v2724 = vpop.f32.mrf.mxu0
        %2725 = vmatprep.mubr.bf16.mxu0 0
        %2726 = vmatmul.mubr.bf16.gmra.mxu0 %v2576
        %v2727 = vpop.f32.mrf.mxu0
        %v2728 = vadd.f32 0.0, %v2727
        %v2729 = vpop.f32.mrf.mxu0
        %v2730 = vpop.f32.mrf.mxu0
        %v2731 = vadd.f32 0.0, %v2730
        %v2732 = vpop.f32.mrf.mxu0
        %2733 = vmatprep.mubr.bf16.mxu0 0
        %2734 = vmatmul.mubr.bf16.gmra.mxu0 %v2579
        %v2735 = vpop.f32.mrf.mxu0
        %v2736 = vadd.f32 0.0, %v2735
        %v2737 = vpop.f32.mrf.mxu0
        %v2738 = vpop.f32.mrf.mxu0
        %v2739 = vadd.f32 0.0, %v2738
        %v2740 = vpop.f32.mrf.mxu0
        %2741 = vdwg.mxu0
        %v2742 = vadd.f32 %v2435, %v2616
        %v2743 = vadd.f32 %v2436, %v2619
        %v2744 = vadd.f32 %v2437, %v2624
        %v2745 = vadd.f32 %v2438, %v2627
        %v2746 = vadd.f32 %v2439, %v2632
        %v2747 = vadd.f32 %v2440, %v2635
        %v2748 = vadd.f32 %v2441, %v2640
        %v2749 = vadd.f32 %v2442, %v2643
        %v2750 = vadd.f32 %v2443, %v2648
        %v2751 = vadd.f32 %v2444, %v2651
        %v2752 = vadd.f32 %v2445, %v2656
        %v2753 = vadd.f32 %v2446, %v2659
        %v2754 = vadd.f32 %v2447, %v2664
        %v2755 = vadd.f32 %v2448, %v2667
        %v2756 = vadd.f32 %v2449, %v2672
        %v2757 = vadd.f32 %v2450, %v2675
        %v2758 = vadd.f32 %v2451, %v2680
        %v2759 = vadd.f32 %v2452, %v2683
        %v2760 = vadd.f32 %v2453, %v2688
        %v2761 = vadd.f32 %v2454, %v2691
        %v2762 = vadd.f32 %v2455, %v2696
        %v2763 = vadd.f32 %v2456, %v2699
        %v2764 = vadd.f32 %v2457, %v2704
        %v2765 = vadd.f32 %v2458, %v2707
        %v2766 = vadd.f32 %v2459, %v2712
        %v2767 = vadd.f32 %v2460, %v2715
        %v2768 = vadd.f32 %v2461, %v2720
        %v2769 = vadd.f32 %v2462, %v2723
        %v2770 = vadd.f32 %v2463, %v2728
        %v2771 = vadd.f32 %v2464, %v2731
        %v2772 = vadd.f32 %v2465, %v2736
        %v2773 = vadd.f32 %v2466, %v2739
        %v2774 = vld [vmem:[%s2467 + $0x8] sm:$0xff]
        %v2775 = vld [vmem:[%s2467 + $0x10] sm:$0xff]
        %v2776 = vld [vmem:[%s2467 + $0x28] sm:$0xff]
        %v2777 = vld [vmem:[%s2467 + $0x30] sm:$0xff]
        %v2778 = vld [vmem:[%s2467 + $0x48] sm:$0xff]
        %v2779 = vld [vmem:[%s2467 + $0x50] sm:$0xff]
        %v2780 = vld [vmem:[%s2467 + $0x68] sm:$0xff]
        %v2781 = vld [vmem:[%s2467 + $0x70] sm:$0xff]
        %v2782 = vld [vmem:[%s2467 + $0x88] sm:$0xff]
        %v2783 = vld [vmem:[%s2467 + $0x90] sm:$0xff]
        %v2784 = vld [vmem:[%s2467 + $0xa8] sm:$0xff]
        %v2785 = vld [vmem:[%s2467 + $0xb0] sm:$0xff]
        %v2786 = vld [vmem:[%s2467 + $0xc8] sm:$0xff]
        %v2787 = vld [vmem:[%s2467 + $0xd0] sm:$0xff]
        %v2788 = vld [vmem:[%s2467 + $0xe8] sm:$0xff]
        %v2789 = vld [vmem:[%s2467 + $0xf0] sm:$0xff]
        %v2790 = vld [vmem:[%s2467 + $0x108] sm:$0xff]
        %v2791 = vld [vmem:[%s2467 + $0x110] sm:$0xff]
        %v2792 = vld [vmem:[%s2467 + $0x128] sm:$0xff]
        %v2793 = vld [vmem:[%s2467 + $0x130] sm:$0xff]
        %v2794 = vld [vmem:[%s2467 + $0x148] sm:$0xff]
        %v2795 = vld [vmem:[%s2467 + $0x150] sm:$0xff]
        %v2796 = vld [vmem:[%s2467 + $0x168] sm:$0xff]
        %v2797 = vld [vmem:[%s2467 + $0x170] sm:$0xff]
        %v2798 = vld [vmem:[%s2467 + $0x188] sm:$0xff]
        %v2799 = vld [vmem:[%s2467 + $0x190] sm:$0xff]
        %v2800 = vld [vmem:[%s2467 + $0x1a8] sm:$0xff]
        %v2801 = vld [vmem:[%s2467 + $0x1b0] sm:$0xff]
        %v2802 = vld [vmem:[%s2467 + $0x1c8] sm:$0xff]
        %v2803 = vld [vmem:[%s2467 + $0x1d0] sm:$0xff]
        %v2804 = vld [vmem:[%s2467 + $0x1e8] sm:$0xff]
        %v2805 = vld [vmem:[%s2467 + $0x1f0] sm:$0xff]
        %v2806 = vpack.c.bf16 %v2775, %v2774
        %v2807 = vpack.c.bf16 %v2777, %v2776
        %v2808 = vpack.c.bf16 %v2779, %v2778
        %v2809 = vpack.c.bf16 %v2781, %v2780
        %v2810 = vpack.c.bf16 %v2783, %v2782
        %v2811 = vpack.c.bf16 %v2785, %v2784
        %v2812 = vpack.c.bf16 %v2787, %v2786
        %v2813 = vpack.c.bf16 %v2789, %v2788
        %v2814 = vpack.c.bf16 %v2791, %v2790
        %v2815 = vpack.c.bf16 %v2793, %v2792
        %v2816 = vpack.c.bf16 %v2795, %v2794
        %v2817 = vpack.c.bf16 %v2797, %v2796
        %v2818 = vpack.c.bf16 %v2799, %v2798
        %v2819 = vpack.c.bf16 %v2801, %v2800
        %v2820 = vpack.c.bf16 %v2803, %v2802
        %v2821 = vpack.c.bf16 %v2805, %v2804
        %s2822 = scalar_lea.vmem %s3, 112
        %v2823 = vld [vmem:[%s2822] sm:$0xf]
        %v2824 = vld [vmem:[%s2822 + $0x4] sm:$0xf]
        %v2825 = vld [vmem:[%s2822 + $0x8] sm:$0xf]
        %v2826 = vld [vmem:[%s2822 + $0xc] sm:$0xf]
        %v2831 = vunpack.c.l.b16 %v2823
        %v2832 = vunpack.c.l.b16 %v2824
        %v2833 = vunpack.c.l.b16 %v2825
        %v2834 = vunpack.c.l.b16 %v2826
        %v2835 = vpack.c.b16 %v2832, %v2831
        %v2836 = vpack.c.b16 %v2834, %v2833
        %v2840 = vsel %vm590, %v2806, 0
        %v2843 = vsel %vm590, %v2807, 0
        %v2846 = vsel %vm590, %v2808, 0
        %v2849 = vsel %vm590, %v2809, 0
        %v2852 = vsel %vm590, %v2810, 0
        %v2855 = vsel %vm590, %v2811, 0
        %v2858 = vsel %vm590, %v2812, 0
        %v2861 = vsel %vm590, %v2813, 0
        %v2864 = vsel %vm590, %v2814, 0
        %v2867 = vsel %vm590, %v2815, 0
        %v2870 = vsel %vm590, %v2816, 0
        %v2873 = vsel %vm590, %v2817, 0
        %v2876 = vsel %vm590, %v2818, 0
        %v2879 = vsel %vm590, %v2819, 0
        %v2882 = vsel %vm590, %v2820, 0
        %v2885 = vsel %vm590, %v2821, 0
        %2887 = vmatprep.subr.bf16.mxu0 0
        %2888 = vmatpush1.bf16.msra.mxu0 0
        %2889 = vmatprep.subr.bf16.mxu0 0
        %2890 = vmatpush1.bf16.msra.mxu0 0
        %2891 = vmatprep.subr.bf16.mxu0 0
        %2892 = vmatpush1.bf16.msra.mxu0 0
        %2893 = vmatprep.subr.bf16.mxu0 0
        %2894 = vmatpush1.bf16.msra.mxu0 0
        %2895 = vmatprep.subr.bf16.mxu0 0
        %2896 = vmatpush1.bf16.msra.mxu0 0
        %2897 = vmatprep.subr.bf16.mxu0 0
        %2898 = vmatpush1.bf16.msra.mxu0 0
        %2899 = vmatprep.subr.bf16.mxu0 0
        %2900 = vmatpush1.bf16.msra.mxu0 %v2836
        %2901 = vmatprep.subr.bf16.mxu0 0
        %2902 = vmatpush1.bf16.msra.mxu0 %v2835
        %2903 = vmatprep.subr.bf16.mxu0 0
        %2904 = vmatpush2.bf16.msra.mxu0 0
        %2905 = vmatprep.subr.bf16.mxu0 0
        %2906 = vmatpush2.bf16.msra.mxu0 0
        %2907 = vmatprep.subr.bf16.mxu0 0
        %2908 = vmatpush2.bf16.msra.mxu0 0
        %2909 = vmatprep.subr.bf16.mxu0 0
        %2910 = vmatpush2.bf16.msra.mxu0 0
        %2911 = vmatprep.subr.bf16.mxu0 0
        %2912 = vmatpush2.bf16.msra.mxu0 0
        %2913 = vmatprep.subr.bf16.mxu0 0
        %2914 = vmatpush2.bf16.msra.mxu0 0
        %2915 = vmatprep.subr.bf16.mxu0 0
        %2916 = vmatpush2.bf16.msra.mxu0 0
        %2917 = vmatprep.subr.bf16.mxu0 0
        %2918 = vmatpush2.bf16.msra.mxu0 0
        %2919 = vmatprep.mubr.bf16.mxu0 0
        %2920 = vmatmul.mubr.bf16.gmra.mxu0 %v2840
        %v2921 = vpop.f32.mrf.mxu0
        %v2922 = vadd.f32 0.0, %v2921
        %v2923 = vpop.f32.mrf.mxu0
        %v2924 = vpop.f32.mrf.mxu0
        %v2925 = vadd.f32 0.0, %v2924
        %v2926 = vpop.f32.mrf.mxu0
        %2927 = vmatprep.mubr.bf16.mxu0 0
        %2928 = vmatmul.mubr.bf16.gmra.mxu0 %v2843
        %v2929 = vpop.f32.mrf.mxu0
        %v2930 = vadd.f32 0.0, %v2929
        %v2931 = vpop.f32.mrf.mxu0
        %v2932 = vpop.f32.mrf.mxu0
        %v2933 = vadd.f32 0.0, %v2932
        %v2934 = vpop.f32.mrf.mxu0
        %2935 = vmatprep.mubr.bf16.mxu0 0
        %2936 = vmatmul.mubr.bf16.gmra.mxu0 %v2846
        %v2937 = vpop.f32.mrf.mxu0
        %v2938 = vadd.f32 0.0, %v2937
        %v2939 = vpop.f32.mrf.mxu0
        %v2940 = vpop.f32.mrf.mxu0
        %v2941 = vadd.f32 0.0, %v2940
        %v2942 = vpop.f32.mrf.mxu0
        %2943 = vmatprep.mubr.bf16.mxu0 0
        %2944 = vmatmul.mubr.bf16.gmra.mxu0 %v2849
        %v2945 = vpop.f32.mrf.mxu0
        %v2946 = vadd.f32 0.0, %v2945
        %v2947 = vpop.f32.mrf.mxu0
        %v2948 = vpop.f32.mrf.mxu0
        %v2949 = vadd.f32 0.0, %v2948
        %v2950 = vpop.f32.mrf.mxu0
        %2951 = vmatprep.mubr.bf16.mxu0 0
        %2952 = vmatmul.mubr.bf16.gmra.mxu0 %v2852
        %v2953 = vpop.f32.mrf.mxu0
        %v2954 = vadd.f32 0.0, %v2953
        %v2955 = vpop.f32.mrf.mxu0
        %v2956 = vpop.f32.mrf.mxu0
        %v2957 = vadd.f32 0.0, %v2956
        %v2958 = vpop.f32.mrf.mxu0
        %2959 = vmatprep.mubr.bf16.mxu0 0
        %2960 = vmatmul.mubr.bf16.gmra.mxu0 %v2855
        %v2961 = vpop.f32.mrf.mxu0
        %v2962 = vadd.f32 0.0, %v2961
        %v2963 = vpop.f32.mrf.mxu0
        %v2964 = vpop.f32.mrf.mxu0
        %v2965 = vadd.f32 0.0, %v2964
        %v2966 = vpop.f32.mrf.mxu0
        %2967 = vmatprep.mubr.bf16.mxu0 0
        %2968 = vmatmul.mubr.bf16.gmra.mxu0 %v2858
        %v2969 = vpop.f32.mrf.mxu0
        %v2970 = vadd.f32 0.0, %v2969
        %v2971 = vpop.f32.mrf.mxu0
        %v2972 = vpop.f32.mrf.mxu0
        %v2973 = vadd.f32 0.0, %v2972
        %v2974 = vpop.f32.mrf.mxu0
        %2975 = vmatprep.mubr.bf16.mxu0 0
        %2976 = vmatmul.mubr.bf16.gmra.mxu0 %v2861
        %v2977 = vpop.f32.mrf.mxu0
        %v2978 = vadd.f32 0.0, %v2977
        %v2979 = vpop.f32.mrf.mxu0
        %v2980 = vpop.f32.mrf.mxu0
        %v2981 = vadd.f32 0.0, %v2980
        %v2982 = vpop.f32.mrf.mxu0
        %2983 = vmatprep.mubr.bf16.mxu0 0
        %2984 = vmatmul.mubr.bf16.gmra.mxu0 %v2864
        %v2985 = vpop.f32.mrf.mxu0
        %v2986 = vadd.f32 0.0, %v2985
        %v2987 = vpop.f32.mrf.mxu0
        %v2988 = vpop.f32.mrf.mxu0
        %v2989 = vadd.f32 0.0, %v2988
        %v2990 = vpop.f32.mrf.mxu0
        %2991 = vmatprep.mubr.bf16.mxu0 0
        %2992 = vmatmul.mubr.bf16.gmra.mxu0 %v2867
        %v2993 = vpop.f32.mrf.mxu0
        %v2994 = vadd.f32 0.0, %v2993
        %v2995 = vpop.f32.mrf.mxu0
        %v2996 = vpop.f32.mrf.mxu0
        %v2997 = vadd.f32 0.0, %v2996
        %v2998 = vpop.f32.mrf.mxu0
        %2999 = vmatprep.mubr.bf16.mxu0 0
        %3000 = vmatmul.mubr.bf16.gmra.mxu0 %v2870
        %v3001 = vpop.f32.mrf.mxu0
        %v3002 = vadd.f32 0.0, %v3001
        %v3003 = vpop.f32.mrf.mxu0
        %v3004 = vpop.f32.mrf.mxu0
        %v3005 = vadd.f32 0.0, %v3004
        %v3006 = vpop.f32.mrf.mxu0
        %3007 = vmatprep.mubr.bf16.mxu0 0
        %3008 = vmatmul.mubr.bf16.gmra.mxu0 %v2873
        %v3009 = vpop.f32.mrf.mxu0
        %v3010 = vadd.f32 0.0, %v3009
        %v3011 = vpop.f32.mrf.mxu0
        %v3012 = vpop.f32.mrf.mxu0
        %v3013 = vadd.f32 0.0, %v3012
        %v3014 = vpop.f32.mrf.mxu0
        %3015 = vmatprep.mubr.bf16.mxu0 0
        %3016 = vmatmul.mubr.bf16.gmra.mxu0 %v2876
        %v3017 = vpop.f32.mrf.mxu0
        %v3018 = vadd.f32 0.0, %v3017
        %v3019 = vpop.f32.mrf.mxu0
        %v3020 = vpop.f32.mrf.mxu0
        %v3021 = vadd.f32 0.0, %v3020
        %v3022 = vpop.f32.mrf.mxu0
        %3023 = vmatprep.mubr.bf16.mxu0 0
        %3024 = vmatmul.mubr.bf16.gmra.mxu0 %v2879
        %v3025 = vpop.f32.mrf.mxu0
        %v3026 = vadd.f32 0.0, %v3025
        %v3027 = vpop.f32.mrf.mxu0
        %v3028 = vpop.f32.mrf.mxu0
        %v3029 = vadd.f32 0.0, %v3028
        %v3030 = vpop.f32.mrf.mxu0
        %3031 = vmatprep.mubr.bf16.mxu0 0
        %3032 = vmatmul.mubr.bf16.gmra.mxu0 %v2882
        %v3033 = vpop.f32.mrf.mxu0
        %v3034 = vadd.f32 0.0, %v3033
        %v3035 = vpop.f32.mrf.mxu0
        %v3036 = vpop.f32.mrf.mxu0
        %v3037 = vadd.f32 0.0, %v3036
        %v3038 = vpop.f32.mrf.mxu0
        %3039 = vmatprep.mubr.bf16.mxu0 0
        %3040 = vmatmul.mubr.bf16.gmra.mxu0 %v2885
        %v3041 = vpop.f32.mrf.mxu0
        %v3042 = vadd.f32 0.0, %v3041
        %v3043 = vpop.f32.mrf.mxu0
        %v3044 = vpop.f32.mrf.mxu0
        %v3045 = vadd.f32 0.0, %v3044
        %v3046 = vpop.f32.mrf.mxu0
        %3047 = vdwg.mxu0
        %v3048 = vadd.f32 %v2742, %v2922
        %v3049 = vadd.f32 %v2743, %v2925
        %v3050 = vadd.f32 %v2744, %v2930
        %v3051 = vadd.f32 %v2745, %v2933
        %v3052 = vadd.f32 %v2746, %v2938
        %v3053 = vadd.f32 %v2747, %v2941
        %v3054 = vadd.f32 %v2748, %v2946
        %v3055 = vadd.f32 %v2749, %v2949
        %v3056 = vadd.f32 %v2750, %v2954
        %v3057 = vadd.f32 %v2751, %v2957
        %v3058 = vadd.f32 %v2752, %v2962
        %v3059 = vadd.f32 %v2753, %v2965
        %v3060 = vadd.f32 %v2754, %v2970
        %v3061 = vadd.f32 %v2755, %v2973
        %v3062 = vadd.f32 %v2756, %v2978
        %v3063 = vadd.f32 %v2757, %v2981
        %v3064 = vadd.f32 %v2758, %v2986
        %v3065 = vadd.f32 %v2759, %v2989
        %v3066 = vadd.f32 %v2760, %v2994
        %v3067 = vadd.f32 %v2761, %v2997
        %v3068 = vadd.f32 %v2762, %v3002
        %v3069 = vadd.f32 %v2763, %v3005
        %v3070 = vadd.f32 %v2764, %v3010
        %v3071 = vadd.f32 %v2765, %v3013
        %v3072 = vadd.f32 %v2766, %v3018
        %v3073 = vadd.f32 %v2767, %v3021
        %v3074 = vadd.f32 %v2768, %v3026
        %v3075 = vadd.f32 %v2769, %v3029
        %v3076 = vadd.f32 %v2770, %v3034
        %v3077 = vadd.f32 %v2771, %v3037
        %v3078 = vadd.f32 %v2772, %v3042
        %v3079 = vadd.f32 %v2773, %v3045
        %v3080 = vld [vmem:[%s2467 + $0x9] sm:$0xff]
        %v3081 = vld [vmem:[%s2467 + $0x11] sm:$0xff]
        %v3082 = vld [vmem:[%s2467 + $0x29] sm:$0xff]
        %v3083 = vld [vmem:[%s2467 + $0x31] sm:$0xff]
        %v3084 = vld [vmem:[%s2467 + $0x49] sm:$0xff]
        %v3085 = vld [vmem:[%s2467 + $0x51] sm:$0xff]
        %v3086 = vld [vmem:[%s2467 + $0x69] sm:$0xff]
        %v3087 = vld [vmem:[%s2467 + $0x71] sm:$0xff]
        %v3088 = vld [vmem:[%s2467 + $0x89] sm:$0xff]
        %v3089 = vld [vmem:[%s2467 + $0x91] sm:$0xff]
        %v3090 = vld [vmem:[%s2467 + $0xa9] sm:$0xff]
        %v3091 = vld [vmem:[%s2467 + $0xb1] sm:$0xff]
        %v3092 = vld [vmem:[%s2467 + $0xc9] sm:$0xff]
        %v3093 = vld [vmem:[%s2467 + $0xd1] sm:$0xff]
        %v3094 = vld [vmem:[%s2467 + $0xe9] sm:$0xff]
        %v3095 = vld [vmem:[%s2467 + $0xf1] sm:$0xff]
        %v3096 = vld [vmem:[%s2467 + $0x109] sm:$0xff]
        %v3097 = vld [vmem:[%s2467 + $0x111] sm:$0xff]
        %v3098 = vld [vmem:[%s2467 + $0x129] sm:$0xff]
        %v3099 = vld [vmem:[%s2467 + $0x131] sm:$0xff]
        %v3100 = vld [vmem:[%s2467 + $0x149] sm:$0xff]
        %v3101 = vld [vmem:[%s2467 + $0x151] sm:$0xff]
        %v3102 = vld [vmem:[%s2467 + $0x169] sm:$0xff]
        %v3103 = vld [vmem:[%s2467 + $0x171] sm:$0xff]
        %v3104 = vld [vmem:[%s2467 + $0x189] sm:$0xff]
        %v3105 = vld [vmem:[%s2467 + $0x191] sm:$0xff]
        %v3106 = vld [vmem:[%s2467 + $0x1a9] sm:$0xff]
        %v3107 = vld [vmem:[%s2467 + $0x1b1] sm:$0xff]
        %v3108 = vld [vmem:[%s2467 + $0x1c9] sm:$0xff]
        %v3109 = vld [vmem:[%s2467 + $0x1d1] sm:$0xff]
        %v3110 = vld [vmem:[%s2467 + $0x1e9] sm:$0xff]
        %v3111 = vld [vmem:[%s2467 + $0x1f1] sm:$0xff]
        %v3112 = vpack.c.bf16 %v3081, %v3080
        %v3113 = vpack.c.bf16 %v3083, %v3082
        %v3114 = vpack.c.bf16 %v3085, %v3084
        %v3115 = vpack.c.bf16 %v3087, %v3086
        %v3116 = vpack.c.bf16 %v3089, %v3088
        %v3117 = vpack.c.bf16 %v3091, %v3090
        %v3118 = vpack.c.bf16 %v3093, %v3092
        %v3119 = vpack.c.bf16 %v3095, %v3094
        %v3120 = vpack.c.bf16 %v3097, %v3096
        %v3121 = vpack.c.bf16 %v3099, %v3098
        %v3122 = vpack.c.bf16 %v3101, %v3100
        %v3123 = vpack.c.bf16 %v3103, %v3102
        %v3124 = vpack.c.bf16 %v3105, %v3104
        %v3125 = vpack.c.bf16 %v3107, %v3106
        %v3126 = vpack.c.bf16 %v3109, %v3108
        %v3127 = vpack.c.bf16 %v3111, %v3110
        %s3128 = scalar_lea.vmem %s3, 128
        %v3129 = vld [vmem:[%s3128] sm:$0xf]
        %v3130 = vld [vmem:[%s3128 + $0x4] sm:$0xf]
        %v3131 = vld [vmem:[%s3128 + $0x8] sm:$0xf]
        %v3132 = vld [vmem:[%s3128 + $0xc] sm:$0xf]
        %v3137 = vunpack.c.l.b16 %v3129
        %v3138 = vunpack.c.l.b16 %v3130
        %v3139 = vunpack.c.l.b16 %v3131
        %v3140 = vunpack.c.l.b16 %v3132
        %v3141 = vpack.c.b16 %v3138, %v3137
        %v3142 = vpack.c.b16 %v3140, %v3139
        %v3146 = vsel %vm590, %v3112, 0
        %v3149 = vsel %vm590, %v3113, 0
        %v3152 = vsel %vm590, %v3114, 0
        %v3155 = vsel %vm590, %v3115, 0
        %v3158 = vsel %vm590, %v3116, 0
        %v3161 = vsel %vm590, %v3117, 0
        %v3164 = vsel %vm590, %v3118, 0
        %v3167 = vsel %vm590, %v3119, 0
        %v3170 = vsel %vm590, %v3120, 0
        %v3173 = vsel %vm590, %v3121, 0
        %v3176 = vsel %vm590, %v3122, 0
        %v3179 = vsel %vm590, %v3123, 0
        %v3182 = vsel %vm590, %v3124, 0
        %v3185 = vsel %vm590, %v3125, 0
        %v3188 = vsel %vm590, %v3126, 0
        %v3191 = vsel %vm590, %v3127, 0
        %3193 = vmatprep.subr.bf16.mxu0 0
        %3194 = vmatpush1.bf16.msra.mxu0 0
        %3195 = vmatprep.subr.bf16.mxu0 0
        %3196 = vmatpush1.bf16.msra.mxu0 0
        %3197 = vmatprep.subr.bf16.mxu0 0
        %3198 = vmatpush1.bf16.msra.mxu0 0
        %3199 = vmatprep.subr.bf16.mxu0 0
        %3200 = vmatpush1.bf16.msra.mxu0 0
        %3201 = vmatprep.subr.bf16.mxu0 0
        %3202 = vmatpush1.bf16.msra.mxu0 0
        %3203 = vmatprep.subr.bf16.mxu0 0
        %3204 = vmatpush1.bf16.msra.mxu0 0
        %3205 = vmatprep.subr.bf16.mxu0 0
        %3206 = vmatpush1.bf16.msra.mxu0 %v3142
        %3207 = vmatprep.subr.bf16.mxu0 0
        %3208 = vmatpush1.bf16.msra.mxu0 %v3141
        %3209 = vmatprep.subr.bf16.mxu0 0
        %3210 = vmatpush2.bf16.msra.mxu0 0
        %3211 = vmatprep.subr.bf16.mxu0 0
        %3212 = vmatpush2.bf16.msra.mxu0 0
        %3213 = vmatprep.subr.bf16.mxu0 0
        %3214 = vmatpush2.bf16.msra.mxu0 0
        %3215 = vmatprep.subr.bf16.mxu0 0
        %3216 = vmatpush2.bf16.msra.mxu0 0
        %3217 = vmatprep.subr.bf16.mxu0 0
        %3218 = vmatpush2.bf16.msra.mxu0 0
        %3219 = vmatprep.subr.bf16.mxu0 0
        %3220 = vmatpush2.bf16.msra.mxu0 0
        %3221 = vmatprep.subr.bf16.mxu0 0
        %3222 = vmatpush2.bf16.msra.mxu0 0
        %3223 = vmatprep.subr.bf16.mxu0 0
        %3224 = vmatpush2.bf16.msra.mxu0 0
        %3225 = vmatprep.mubr.bf16.mxu0 0
        %3226 = vmatmul.mubr.bf16.gmra.mxu0 %v3146
        %v3227 = vpop.f32.mrf.mxu0
        %v3228 = vadd.f32 0.0, %v3227
        %v3229 = vpop.f32.mrf.mxu0
        %v3230 = vpop.f32.mrf.mxu0
        %v3231 = vadd.f32 0.0, %v3230
        %v3232 = vpop.f32.mrf.mxu0
        %3233 = vmatprep.mubr.bf16.mxu0 0
        %3234 = vmatmul.mubr.bf16.gmra.mxu0 %v3149
        %v3235 = vpop.f32.mrf.mxu0
        %v3236 = vadd.f32 0.0, %v3235
        %v3237 = vpop.f32.mrf.mxu0
        %v3238 = vpop.f32.mrf.mxu0
        %v3239 = vadd.f32 0.0, %v3238
        %v3240 = vpop.f32.mrf.mxu0
        %3241 = vmatprep.mubr.bf16.mxu0 0
        %3242 = vmatmul.mubr.bf16.gmra.mxu0 %v3152
        %v3243 = vpop.f32.mrf.mxu0
        %v3244 = vadd.f32 0.0, %v3243
        %v3245 = vpop.f32.mrf.mxu0
        %v3246 = vpop.f32.mrf.mxu0
        %v3247 = vadd.f32 0.0, %v3246
        %v3248 = vpop.f32.mrf.mxu0
        %3249 = vmatprep.mubr.bf16.mxu0 0
        %3250 = vmatmul.mubr.bf16.gmra.mxu0 %v3155
        %v3251 = vpop.f32.mrf.mxu0
        %v3252 = vadd.f32 0.0, %v3251
        %v3253 = vpop.f32.mrf.mxu0
        %v3254 = vpop.f32.mrf.mxu0
        %v3255 = vadd.f32 0.0, %v3254
        %v3256 = vpop.f32.mrf.mxu0
        %3257 = vmatprep.mubr.bf16.mxu0 0
        %3258 = vmatmul.mubr.bf16.gmra.mxu0 %v3158
        %v3259 = vpop.f32.mrf.mxu0
        %v3260 = vadd.f32 0.0, %v3259
        %v3261 = vpop.f32.mrf.mxu0
        %v3262 = vpop.f32.mrf.mxu0
        %v3263 = vadd.f32 0.0, %v3262
        %v3264 = vpop.f32.mrf.mxu0
        %3265 = vmatprep.mubr.bf16.mxu0 0
        %3266 = vmatmul.mubr.bf16.gmra.mxu0 %v3161
        %v3267 = vpop.f32.mrf.mxu0
        %v3268 = vadd.f32 0.0, %v3267
        %v3269 = vpop.f32.mrf.mxu0
        %v3270 = vpop.f32.mrf.mxu0
        %v3271 = vadd.f32 0.0, %v3270
        %v3272 = vpop.f32.mrf.mxu0
        %3273 = vmatprep.mubr.bf16.mxu0 0
        %3274 = vmatmul.mubr.bf16.gmra.mxu0 %v3164
        %v3275 = vpop.f32.mrf.mxu0
        %v3276 = vadd.f32 0.0, %v3275
        %v3277 = vpop.f32.mrf.mxu0
        %v3278 = vpop.f32.mrf.mxu0
        %v3279 = vadd.f32 0.0, %v3278
        %v3280 = vpop.f32.mrf.mxu0
        %3281 = vmatprep.mubr.bf16.mxu0 0
        %3282 = vmatmul.mubr.bf16.gmra.mxu0 %v3167
        %v3283 = vpop.f32.mrf.mxu0
        %v3284 = vadd.f32 0.0, %v3283
        %v3285 = vpop.f32.mrf.mxu0
        %v3286 = vpop.f32.mrf.mxu0
        %v3287 = vadd.f32 0.0, %v3286
        %v3288 = vpop.f32.mrf.mxu0
        %3289 = vmatprep.mubr.bf16.mxu0 0
        %3290 = vmatmul.mubr.bf16.gmra.mxu0 %v3170
        %v3291 = vpop.f32.mrf.mxu0
        %v3292 = vadd.f32 0.0, %v3291
        %v3293 = vpop.f32.mrf.mxu0
        %v3294 = vpop.f32.mrf.mxu0
        %v3295 = vadd.f32 0.0, %v3294
        %v3296 = vpop.f32.mrf.mxu0
        %3297 = vmatprep.mubr.bf16.mxu0 0
        %3298 = vmatmul.mubr.bf16.gmra.mxu0 %v3173
        %v3299 = vpop.f32.mrf.mxu0
        %v3300 = vadd.f32 0.0, %v3299
        %v3301 = vpop.f32.mrf.mxu0
        %v3302 = vpop.f32.mrf.mxu0
        %v3303 = vadd.f32 0.0, %v3302
        %v3304 = vpop.f32.mrf.mxu0
        %3305 = vmatprep.mubr.bf16.mxu0 0
        %3306 = vmatmul.mubr.bf16.gmra.mxu0 %v3176
        %v3307 = vpop.f32.mrf.mxu0
        %v3308 = vadd.f32 0.0, %v3307
        %v3309 = vpop.f32.mrf.mxu0
        %v3310 = vpop.f32.mrf.mxu0
        %v3311 = vadd.f32 0.0, %v3310
        %v3312 = vpop.f32.mrf.mxu0
        %3313 = vmatprep.mubr.bf16.mxu0 0
        %3314 = vmatmul.mubr.bf16.gmra.mxu0 %v3179
        %v3315 = vpop.f32.mrf.mxu0
        %v3316 = vadd.f32 0.0, %v3315
        %v3317 = vpop.f32.mrf.mxu0
        %v3318 = vpop.f32.mrf.mxu0
        %v3319 = vadd.f32 0.0, %v3318
        %v3320 = vpop.f32.mrf.mxu0
        %3321 = vmatprep.mubr.bf16.mxu0 0
        %3322 = vmatmul.mubr.bf16.gmra.mxu0 %v3182
        %v3323 = vpop.f32.mrf.mxu0
        %v3324 = vadd.f32 0.0, %v3323
        %v3325 = vpop.f32.mrf.mxu0
        %v3326 = vpop.f32.mrf.mxu0
        %v3327 = vadd.f32 0.0, %v3326
        %v3328 = vpop.f32.mrf.mxu0
        %3329 = vmatprep.mubr.bf16.mxu0 0
        %3330 = vmatmul.mubr.bf16.gmra.mxu0 %v3185
        %v3331 = vpop.f32.mrf.mxu0
        %v3332 = vadd.f32 0.0, %v3331
        %v3333 = vpop.f32.mrf.mxu0
        %v3334 = vpop.f32.mrf.mxu0
        %v3335 = vadd.f32 0.0, %v3334
        %v3336 = vpop.f32.mrf.mxu0
        %3337 = vmatprep.mubr.bf16.mxu0 0
        %3338 = vmatmul.mubr.bf16.gmra.mxu0 %v3188
        %v3339 = vpop.f32.mrf.mxu0
        %v3340 = vadd.f32 0.0, %v3339
        %v3341 = vpop.f32.mrf.mxu0
        %v3342 = vpop.f32.mrf.mxu0
        %v3343 = vadd.f32 0.0, %v3342
        %v3344 = vpop.f32.mrf.mxu0
        %3345 = vmatprep.mubr.bf16.mxu0 0
        %3346 = vmatmul.mubr.bf16.gmra.mxu0 %v3191
        %v3347 = vpop.f32.mrf.mxu0
        %v3348 = vadd.f32 0.0, %v3347
        %v3349 = vpop.f32.mrf.mxu0
        %v3350 = vpop.f32.mrf.mxu0
        %v3351 = vadd.f32 0.0, %v3350
        %v3352 = vpop.f32.mrf.mxu0
        %3353 = vdwg.mxu0
        %v3354 = vadd.f32 %v3048, %v3228
        %v3355 = vadd.f32 %v3049, %v3231
        %v3356 = vadd.f32 %v3050, %v3236
        %v3357 = vadd.f32 %v3051, %v3239
        %v3358 = vadd.f32 %v3052, %v3244
        %v3359 = vadd.f32 %v3053, %v3247
        %v3360 = vadd.f32 %v3054, %v3252
        %v3361 = vadd.f32 %v3055, %v3255
        %v3362 = vadd.f32 %v3056, %v3260
        %v3363 = vadd.f32 %v3057, %v3263
        %v3364 = vadd.f32 %v3058, %v3268
        %v3365 = vadd.f32 %v3059, %v3271
        %v3366 = vadd.f32 %v3060, %v3276
        %v3367 = vadd.f32 %v3061, %v3279
        %v3368 = vadd.f32 %v3062, %v3284
        %v3369 = vadd.f32 %v3063, %v3287
        %v3370 = vadd.f32 %v3064, %v3292
        %v3371 = vadd.f32 %v3065, %v3295
        %v3372 = vadd.f32 %v3066, %v3300
        %v3373 = vadd.f32 %v3067, %v3303
        %v3374 = vadd.f32 %v3068, %v3308
        %v3375 = vadd.f32 %v3069, %v3311
        %v3376 = vadd.f32 %v3070, %v3316
        %v3377 = vadd.f32 %v3071, %v3319
        %v3378 = vadd.f32 %v3072, %v3324
        %v3379 = vadd.f32 %v3073, %v3327
        %v3380 = vadd.f32 %v3074, %v3332
        %v3381 = vadd.f32 %v3075, %v3335
        %v3382 = vadd.f32 %v3076, %v3340
        %v3383 = vadd.f32 %v3077, %v3343
        %v3384 = vadd.f32 %v3078, %v3348
        %v3385 = vadd.f32 %v3079, %v3351
        %v3386 = vld [vmem:[%s4] sm:$0x1]
        %v3388 = vlaneseq
        %v3389 = vshrl.u32 %v3388, 7
        %v3390 = vsub.s32 0, %v3389
        %v3391 = vrot.slane %v3386, %v3390
        %v3393 = vadd.f32 %v3354, %v3391
        %v3394 = vadd.f32 %v3355, %v3391
        %v3395 = vadd.f32 %v3356, %v3391
        %v3396 = vadd.f32 %v3357, %v3391
        %v3397 = vadd.f32 %v3358, %v3391
        %v3398 = vadd.f32 %v3359, %v3391
        %v3399 = vadd.f32 %v3360, %v3391
        %v3400 = vadd.f32 %v3361, %v3391
        %v3401 = vadd.f32 %v3362, %v3391
        %v3402 = vadd.f32 %v3363, %v3391
        %v3403 = vadd.f32 %v3364, %v3391
        %v3404 = vadd.f32 %v3365, %v3391
        %v3405 = vadd.f32 %v3366, %v3391
        %v3406 = vadd.f32 %v3367, %v3391
        %v3407 = vadd.f32 %v3368, %v3391
        %v3408 = vadd.f32 %v3369, %v3391
        %v3409 = vadd.f32 %v3370, %v3391
        %v3410 = vadd.f32 %v3371, %v3391
        %v3411 = vadd.f32 %v3372, %v3391
        %v3412 = vadd.f32 %v3373, %v3391
        %v3413 = vadd.f32 %v3374, %v3391
        %v3414 = vadd.f32 %v3375, %v3391
        %v3415 = vadd.f32 %v3376, %v3391
        %v3416 = vadd.f32 %v3377, %v3391
        %v3417 = vadd.f32 %v3378, %v3391
        %v3418 = vadd.f32 %v3379, %v3391
        %v3419 = vadd.f32 %v3380, %v3391
        %v3420 = vadd.f32 %v3381, %v3391
        %v3421 = vadd.f32 %v3382, %v3391
        %v3422 = vadd.f32 %v3383, %v3391
        %v3423 = vadd.f32 %v3384, %v3391
        %v3424 = vadd.f32 %v3385, %v3391
        %v3425 = vmax.f32 %v3393, 0.0
        %v3426 = vmax.f32 %v3394, 0.0
        %v3427 = vmax.f32 %v3395, 0.0
        %v3428 = vmax.f32 %v3396, 0.0
        %v3429 = vmax.f32 %v3397, 0.0
        %v3430 = vmax.f32 %v3398, 0.0
        %v3431 = vmax.f32 %v3399, 0.0
        %v3432 = vmax.f32 %v3400, 0.0
        %v3433 = vmax.f32 %v3401, 0.0
        %v3434 = vmax.f32 %v3402, 0.0
        %v3435 = vmax.f32 %v3403, 0.0
        %v3436 = vmax.f32 %v3404, 0.0
        %v3437 = vmax.f32 %v3405, 0.0
        %v3438 = vmax.f32 %v3406, 0.0
        %v3439 = vmax.f32 %v3407, 0.0
        %v3440 = vmax.f32 %v3408, 0.0
        %v3441 = vmax.f32 %v3409, 0.0
        %v3442 = vmax.f32 %v3410, 0.0
        %v3443 = vmax.f32 %v3411, 0.0
        %v3444 = vmax.f32 %v3412, 0.0
        %v3445 = vmax.f32 %v3413, 0.0
        %v3446 = vmax.f32 %v3414, 0.0
        %v3447 = vmax.f32 %v3415, 0.0
        %v3448 = vmax.f32 %v3416, 0.0
        %v3449 = vmax.f32 %v3417, 0.0
        %v3450 = vmax.f32 %v3418, 0.0
        %v3451 = vmax.f32 %v3419, 0.0
        %v3452 = vmax.f32 %v3420, 0.0
        %v3453 = vmax.f32 %v3421, 0.0
        %v3454 = vmax.f32 %v3422, 0.0
        %v3455 = vmax.f32 %v3423, 0.0
        %v3456 = vmax.f32 %v3424, 0.0
        %v3457 = vpack.c.bf16 %v3426, %v3425
        %v3458 = vpack.c.bf16 %v3428, %v3427
        %v3459 = vpack.c.bf16 %v3430, %v3429
        %v3460 = vpack.c.bf16 %v3432, %v3431
        %v3461 = vpack.c.bf16 %v3434, %v3433
        %v3462 = vpack.c.bf16 %v3436, %v3435
        %v3463 = vpack.c.bf16 %v3438, %v3437
        %v3464 = vpack.c.bf16 %v3440, %v3439
        %v3465 = vpack.c.bf16 %v3442, %v3441
        %v3466 = vpack.c.bf16 %v3444, %v3443
        %v3467 = vpack.c.bf16 %v3446, %v3445
        %v3468 = vpack.c.bf16 %v3448, %v3447
        %v3469 = vpack.c.bf16 %v3450, %v3449
        %v3470 = vpack.c.bf16 %v3452, %v3451
        %v3471 = vpack.c.bf16 %v3454, %v3453
        %v3472 = vpack.c.bf16 %v3456, %v3455
        %v3473 = vld [vmem:[%s5] sm:$0xf]
        %v3474 = vld [vmem:[%s5 + $0x4] sm:$0xf]
        %v3475 = vld [vmem:[%s5 + $0x8] sm:$0xf]
        %v3476 = vld [vmem:[%s5 + $0xc] sm:$0xf]
        %v3477 = vld [vmem:[%s6] sm:$0x1]
        %v3479 = vlaneseq
        %v3480 = vshrl.u32 %v3479, 7
        %v3481 = vsub.s32 0, %v3480
        %v3482 = vrot.slane %v3477, %v3481
        %v3488 = vunpack.c.l.b16 %v3473
        %v3489 = vunpack.c.l.b16 %v3474
        %v3490 = vunpack.c.l.b16 %v3475
        %v3491 = vunpack.c.l.b16 %v3476
        %v3492 = vpack.c.b16 %v3489, %v3488
        %v3493 = vpack.c.b16 %v3491, %v3490
        %v3497 = vsel %vm590, %v3457, 0
        %v3500 = vsel %vm590, %v3458, 0
        %v3503 = vsel %vm590, %v3459, 0
        %v3506 = vsel %vm590, %v3460, 0
        %v3509 = vsel %vm590, %v3461, 0
        %v3512 = vsel %vm590, %v3462, 0
        %v3515 = vsel %vm590, %v3463, 0
        %v3518 = vsel %vm590, %v3464, 0
        %v3521 = vsel %vm590, %v3465, 0
        %v3524 = vsel %vm590, %v3466, 0
        %v3527 = vsel %vm590, %v3467, 0
        %v3530 = vsel %vm590, %v3468, 0
        %v3533 = vsel %vm590, %v3469, 0
        %v3536 = vsel %vm590, %v3470, 0
        %v3539 = vsel %vm590, %v3471, 0
        %v3542 = vsel %vm590, %v3472, 0
        %3544 = vmatprep.subr.bf16.mxu0 0
        %3545 = vmatpush1.bf16.msra.mxu0 0
        %3546 = vmatprep.subr.bf16.mxu0 0
        %3547 = vmatpush1.bf16.msra.mxu0 0
        %3548 = vmatprep.subr.bf16.mxu0 0
        %3549 = vmatpush1.bf16.msra.mxu0 0
        %3550 = vmatprep.subr.bf16.mxu0 0
        %3551 = vmatpush1.bf16.msra.mxu0 0
        %3552 = vmatprep.subr.bf16.mxu0 0
        %3553 = vmatpush1.bf16.msra.mxu0 0
        %3554 = vmatprep.subr.bf16.mxu0 0
        %3555 = vmatpush1.bf16.msra.mxu0 0
        %3556 = vmatprep.subr.bf16.mxu0 0
        %3557 = vmatpush1.bf16.msra.mxu0 %v3493
        %3558 = vmatprep.subr.bf16.mxu0 0
        %3559 = vmatpush1.bf16.msra.mxu0 %v3492
        %3560 = vmatprep.subr.bf16.mxu0 0
        %3561 = vmatpush2.bf16.msra.mxu0 0
        %3562 = vmatprep.subr.bf16.mxu0 0
        %3563 = vmatpush2.bf16.msra.mxu0 0
        %3564 = vmatprep.subr.bf16.mxu0 0
        %3565 = vmatpush2.bf16.msra.mxu0 0
        %3566 = vmatprep.subr.bf16.mxu0 0
        %3567 = vmatpush2.bf16.msra.mxu0 0
        %3568 = vmatprep.subr.bf16.mxu0 0
        %3569 = vmatpush2.bf16.msra.mxu0 0
        %3570 = vmatprep.subr.bf16.mxu0 0
        %3571 = vmatpush2.bf16.msra.mxu0 0
        %3572 = vmatprep.subr.bf16.mxu0 0
        %3573 = vmatpush2.bf16.msra.mxu0 0
        %3574 = vmatprep.subr.bf16.mxu0 0
        %3575 = vmatpush2.bf16.msra.mxu0 0
        %3576 = vmatprep.mubr.bf16.mxu0 0
        %3577 = vmatmul.mubr.bf16.gmra.mxu0 %v3497
        %v3578 = vpop.f32.mrf.mxu0
        %v3579 = vadd.f32 %v3482, %v3578
        %v3580 = vpop.f32.mrf.mxu0
        %v3581 = vpop.f32.mrf.mxu0
        %v3582 = vadd.f32 %v3482, %v3581
        %v3583 = vpop.f32.mrf.mxu0
        %3584 = vmatprep.mubr.bf16.mxu0 0
        %3585 = vmatmul.mubr.bf16.gmra.mxu0 %v3500
        %v3586 = vpop.f32.mrf.mxu0
        %v3587 = vadd.f32 %v3482, %v3586
        %v3588 = vpop.f32.mrf.mxu0
        %v3589 = vpop.f32.mrf.mxu0
        %v3590 = vadd.f32 %v3482, %v3589
        %v3591 = vpop.f32.mrf.mxu0
        %3592 = vmatprep.mubr.bf16.mxu0 0
        %3593 = vmatmul.mubr.bf16.gmra.mxu0 %v3503
        %v3594 = vpop.f32.mrf.mxu0
        %v3595 = vadd.f32 %v3482, %v3594
        %v3596 = vpop.f32.mrf.mxu0
        %v3597 = vpop.f32.mrf.mxu0
        %v3598 = vadd.f32 %v3482, %v3597
        %v3599 = vpop.f32.mrf.mxu0
        %3600 = vmatprep.mubr.bf16.mxu0 0
        %3601 = vmatmul.mubr.bf16.gmra.mxu0 %v3506
        %v3602 = vpop.f32.mrf.mxu0
        %v3603 = vadd.f32 %v3482, %v3602
        %v3604 = vpop.f32.mrf.mxu0
        %v3605 = vpop.f32.mrf.mxu0
        %v3606 = vadd.f32 %v3482, %v3605
        %v3607 = vpop.f32.mrf.mxu0
        %3608 = vmatprep.mubr.bf16.mxu0 0
        %3609 = vmatmul.mubr.bf16.gmra.mxu0 %v3509
        %v3610 = vpop.f32.mrf.mxu0
        %v3611 = vadd.f32 %v3482, %v3610
        %v3612 = vpop.f32.mrf.mxu0
        %v3613 = vpop.f32.mrf.mxu0
        %v3614 = vadd.f32 %v3482, %v3613
        %v3615 = vpop.f32.mrf.mxu0
        %3616 = vmatprep.mubr.bf16.mxu0 0
        %3617 = vmatmul.mubr.bf16.gmra.mxu0 %v3512
        %v3618 = vpop.f32.mrf.mxu0
        %v3619 = vadd.f32 %v3482, %v3618
        %v3620 = vpop.f32.mrf.mxu0
        %v3621 = vpop.f32.mrf.mxu0
        %v3622 = vadd.f32 %v3482, %v3621
        %v3623 = vpop.f32.mrf.mxu0
        %3624 = vmatprep.mubr.bf16.mxu0 0
        %3625 = vmatmul.mubr.bf16.gmra.mxu0 %v3515
        %v3626 = vpop.f32.mrf.mxu0
        %v3627 = vadd.f32 %v3482, %v3626
        %v3628 = vpop.f32.mrf.mxu0
        %v3629 = vpop.f32.mrf.mxu0
        %v3630 = vadd.f32 %v3482, %v3629
        %v3631 = vpop.f32.mrf.mxu0
        %3632 = vmatprep.mubr.bf16.mxu0 0
        %3633 = vmatmul.mubr.bf16.gmra.mxu0 %v3518
        %v3634 = vpop.f32.mrf.mxu0
        %v3635 = vadd.f32 %v3482, %v3634
        %v3636 = vpop.f32.mrf.mxu0
        %v3637 = vpop.f32.mrf.mxu0
        %v3638 = vadd.f32 %v3482, %v3637
        %v3639 = vpop.f32.mrf.mxu0
        %3640 = vmatprep.mubr.bf16.mxu0 0
        %3641 = vmatmul.mubr.bf16.gmra.mxu0 %v3521
        %v3642 = vpop.f32.mrf.mxu0
        %v3643 = vadd.f32 %v3482, %v3642
        %v3644 = vpop.f32.mrf.mxu0
        %v3645 = vpop.f32.mrf.mxu0
        %v3646 = vadd.f32 %v3482, %v3645
        %v3647 = vpop.f32.mrf.mxu0
        %3648 = vmatprep.mubr.bf16.mxu0 0
        %3649 = vmatmul.mubr.bf16.gmra.mxu0 %v3524
        %v3650 = vpop.f32.mrf.mxu0
        %v3651 = vadd.f32 %v3482, %v3650
        %v3652 = vpop.f32.mrf.mxu0
        %v3653 = vpop.f32.mrf.mxu0
        %v3654 = vadd.f32 %v3482, %v3653
        %v3655 = vpop.f32.mrf.mxu0
        %3656 = vmatprep.mubr.bf16.mxu0 0
        %3657 = vmatmul.mubr.bf16.gmra.mxu0 %v3527
        %v3658 = vpop.f32.mrf.mxu0
        %v3659 = vadd.f32 %v3482, %v3658
        %v3660 = vpop.f32.mrf.mxu0
        %v3661 = vpop.f32.mrf.mxu0
        %v3662 = vadd.f32 %v3482, %v3661
        %v3663 = vpop.f32.mrf.mxu0
        %3664 = vmatprep.mubr.bf16.mxu0 0
        %3665 = vmatmul.mubr.bf16.gmra.mxu0 %v3530
        %v3666 = vpop.f32.mrf.mxu0
        %v3667 = vadd.f32 %v3482, %v3666
        %v3668 = vpop.f32.mrf.mxu0
        %v3669 = vpop.f32.mrf.mxu0
        %v3670 = vadd.f32 %v3482, %v3669
        %v3671 = vpop.f32.mrf.mxu0
        %3672 = vmatprep.mubr.bf16.mxu0 0
        %3673 = vmatmul.mubr.bf16.gmra.mxu0 %v3533
        %v3674 = vpop.f32.mrf.mxu0
        %v3675 = vadd.f32 %v3482, %v3674
        %v3676 = vpop.f32.mrf.mxu0
        %v3677 = vpop.f32.mrf.mxu0
        %v3678 = vadd.f32 %v3482, %v3677
        %v3679 = vpop.f32.mrf.mxu0
        %3680 = vmatprep.mubr.bf16.mxu0 0
        %3681 = vmatmul.mubr.bf16.gmra.mxu0 %v3536
        %v3682 = vpop.f32.mrf.mxu0
        %v3683 = vadd.f32 %v3482, %v3682
        %v3684 = vpop.f32.mrf.mxu0
        %v3685 = vpop.f32.mrf.mxu0
        %v3686 = vadd.f32 %v3482, %v3685
        %v3687 = vpop.f32.mrf.mxu0
        %3688 = vmatprep.mubr.bf16.mxu0 0
        %3689 = vmatmul.mubr.bf16.gmra.mxu0 %v3539
        %v3690 = vpop.f32.mrf.mxu0
        %v3691 = vadd.f32 %v3482, %v3690
        %v3692 = vpop.f32.mrf.mxu0
        %v3693 = vpop.f32.mrf.mxu0
        %v3694 = vadd.f32 %v3482, %v3693
        %v3695 = vpop.f32.mrf.mxu0
        %3696 = vmatprep.mubr.bf16.mxu0 0
        %3697 = vmatmul.mubr.bf16.gmra.mxu0 %v3542
        %v3698 = vpop.f32.mrf.mxu0
        %v3699 = vadd.f32 %v3482, %v3698
        %v3700 = vpop.f32.mrf.mxu0
        %v3701 = vpop.f32.mrf.mxu0
        %v3702 = vadd.f32 %v3482, %v3701
        %v3703 = vpop.f32.mrf.mxu0
        %3704 = vdwg.mxu0
        %v3705 = vadd.f32 %v3579, %v278
        %v3706 = vadd.f32 %v3582, %v279
        %v3707 = vadd.f32 %v3587, %v280
        %v3708 = vadd.f32 %v3590, %v281
        %v3709 = vadd.f32 %v3595, %v282
        %v3710 = vadd.f32 %v3598, %v283
        %v3711 = vadd.f32 %v3603, %v284
        %v3712 = vadd.f32 %v3606, %v285
        %v3713 = vadd.f32 %v3611, %v286
        %v3714 = vadd.f32 %v3614, %v287
        %v3715 = vadd.f32 %v3619, %v288
        %v3716 = vadd.f32 %v3622, %v289
        %v3717 = vadd.f32 %v3627, %v290
        %v3718 = vadd.f32 %v3630, %v291
        %v3719 = vadd.f32 %v3635, %v292
        %v3720 = vadd.f32 %v3638, %v293
        %v3721 = vadd.f32 %v3643, %v294
        %v3722 = vadd.f32 %v3646, %v295
        %v3723 = vadd.f32 %v3651, %v296
        %v3724 = vadd.f32 %v3654, %v297
        %v3725 = vadd.f32 %v3659, %v298
        %v3726 = vadd.f32 %v3662, %v299
        %v3727 = vadd.f32 %v3667, %v300
        %v3728 = vadd.f32 %v3670, %v301
        %v3729 = vadd.f32 %v3675, %v302
        %v3730 = vadd.f32 %v3678, %v303
        %v3731 = vadd.f32 %v3683, %v304
        %v3732 = vadd.f32 %v3686, %v305
        %v3733 = vadd.f32 %v3691, %v306
        %v3734 = vadd.f32 %v3694, %v307
        %v3735 = vadd.f32 %v3699, %v308
        %v3736 = vadd.f32 %v3702, %v309
        %v3737 = vmax.f32 %v3705, 0.0
        %v3738 = vmax.f32 %v3706, 0.0
        %v3739 = vmax.f32 %v3707, 0.0
        %v3740 = vmax.f32 %v3708, 0.0
        %v3741 = vmax.f32 %v3709, 0.0
        %v3742 = vmax.f32 %v3710, 0.0
        %v3743 = vmax.f32 %v3711, 0.0
        %v3744 = vmax.f32 %v3712, 0.0
        %v3745 = vmax.f32 %v3713, 0.0
        %v3746 = vmax.f32 %v3714, 0.0
        %v3747 = vmax.f32 %v3715, 0.0
        %v3748 = vmax.f32 %v3716, 0.0
        %v3749 = vmax.f32 %v3717, 0.0
        %v3750 = vmax.f32 %v3718, 0.0
        %v3751 = vmax.f32 %v3719, 0.0
        %v3752 = vmax.f32 %v3720, 0.0
        %v3753 = vmax.f32 %v3721, 0.0
        %v3754 = vmax.f32 %v3722, 0.0
        %v3755 = vmax.f32 %v3723, 0.0
        %v3756 = vmax.f32 %v3724, 0.0
        %v3757 = vmax.f32 %v3725, 0.0
        %v3758 = vmax.f32 %v3726, 0.0
        %v3759 = vmax.f32 %v3727, 0.0
        %v3760 = vmax.f32 %v3728, 0.0
        %v3761 = vmax.f32 %v3729, 0.0
        %v3762 = vmax.f32 %v3730, 0.0
        %v3763 = vmax.f32 %v3731, 0.0
        %v3764 = vmax.f32 %v3732, 0.0
        %v3765 = vmax.f32 %v3733, 0.0
        %v3766 = vmax.f32 %v3734, 0.0
        %v3767 = vmax.f32 %v3735, 0.0
        %v3768 = vmax.f32 %v3736, 0.0
        %3769 = vst [vmem:[%s271] sm:$0xff] %v3737
        %3770 = vst [vmem:[%s271 + $0x8] sm:$0xff] %v3738
        %3771 = vst [vmem:[%s271 + $0x10] sm:$0xff] %v3739
        %3772 = vst [vmem:[%s271 + $0x18] sm:$0xff] %v3740
        %3773 = vst [vmem:[%s271 + $0x20] sm:$0xff] %v3741
        %3774 = vst [vmem:[%s271 + $0x28] sm:$0xff] %v3742
        %3775 = vst [vmem:[%s271 + $0x30] sm:$0xff] %v3743
        %3776 = vst [vmem:[%s271 + $0x38] sm:$0xff] %v3744
        %3777 = vst [vmem:[%s271 + $0x40] sm:$0xff] %v3745
        %3778 = vst [vmem:[%s271 + $0x48] sm:$0xff] %v3746
        %3779 = vst [vmem:[%s271 + $0x50] sm:$0xff] %v3747
        %3780 = vst [vmem:[%s271 + $0x58] sm:$0xff] %v3748
        %3781 = vst [vmem:[%s271 + $0x60] sm:$0xff] %v3749
        %3782 = vst [vmem:[%s271 + $0x68] sm:$0xff] %v3750
        %3783 = vst [vmem:[%s271 + $0x70] sm:$0xff] %v3751
        %3784 = vst [vmem:[%s271 + $0x78] sm:$0xff] %v3752
        %3785 = vst [vmem:[%s271 + $0x80] sm:$0xff] %v3753
        %3786 = vst [vmem:[%s271 + $0x88] sm:$0xff] %v3754
        %3787 = vst [vmem:[%s271 + $0x90] sm:$0xff] %v3755
        %3788 = vst [vmem:[%s271 + $0x98] sm:$0xff] %v3756
        %3789 = vst [vmem:[%s271 + $0xa0] sm:$0xff] %v3757
        %3790 = vst [vmem:[%s271 + $0xa8] sm:$0xff] %v3758
        %3791 = vst [vmem:[%s271 + $0xb0] sm:$0xff] %v3759
        %3792 = vst [vmem:[%s271 + $0xb8] sm:$0xff] %v3760
        %3793 = vst [vmem:[%s271 + $0xc0] sm:$0xff] %v3761
        %3794 = vst [vmem:[%s271 + $0xc8] sm:$0xff] %v3762
        %3795 = vst [vmem:[%s271 + $0xd0] sm:$0xff] %v3763
        %3796 = vst [vmem:[%s271 + $0xd8] sm:$0xff] %v3764
        %3797 = vst [vmem:[%s271 + $0xe0] sm:$0xff] %v3765
        %3798 = vst [vmem:[%s271 + $0xe8] sm:$0xff] %v3766
        %3799 = vst [vmem:[%s271 + $0xf0] sm:$0xff] %v3767
        %3800 = vst [vmem:[%s271 + $0xf8] sm:$0xff] %v3768
        %s3801 = sand.u32 %s181, 1
        %s3802 = scalar_lea.sflag [#allocation4], %s3801
        %s3803 = sand.u32 %s181, 1
        %s3804 = smul.addr %s3803, 256
        %s3805 = scalar_lea.vmem [#allocation3], %s3804
        // Predicated region
        $region49: #{bottleneck_pallas.1} parent=47 // pred_check
          %p3806 = pneg %p191
        $region50: #{bottleneck_pallas.1} parent=47 // pred_check_branch
          %3808 = sbr.rel (%p3806) target = $region52
        $region51: #{bottleneck_pallas.1} parent=47 // pred_region
          %s3810 = ssub.s32 4096, 4096
          %3811 = vsyncadd %s3802, %s3810
          %s3812 = smul.addr %s21, 32
          %s3813 = smul.addr %s3812, 128
          %s3814 = scalar_lea.hbm %s7, %s3813
          %s3815 = sshll.u32 %s3805, 4
          %s3816 = int_to_ptr.vmem [resolvable:$true] %s3815
          %3821 = dma.vmem_to_hbm [thread:$0]  %s3816, 4096, %s3814, %s3802, 128, 128, 8
        $region52: #{bottleneck_pallas.1} parent=47 // pred_fallthru
          _
      $region48: #{bottleneck_pallas.1} parent=5 // pred_fallthru
        _
      %p3822 = scmp.le.s32.totalorder 2, %s16
      // Predicated region
      $region53: #{bottleneck_pallas.1} parent=5 // pred_check
        %p3823 = pneg %p3822
      $region54: #{bottleneck_pallas.1} parent=5 // pred_check_branch
        %3825 = sbr.rel (%p3823) target = $region56
      $region55: #{bottleneck_pallas.1} parent=5 // pred_region
        %s3826 = ssub.s32 %s16, 2
        // Predicated region
        $region57: #{bottleneck_pallas.1} parent=55 // pred_check
          %p3827 = pneg %p197
        $region58: #{bottleneck_pallas.1} parent=55 // pred_check_branch
          %3829 = sbr.rel (%p3827) target = $region60
        $region59: #{bottleneck_pallas.1} parent=55 // pred_region
          %s3830 = sand.u32 %s182, 1
          %s3831 = scalar_lea.sflag [#allocation4], %s3830
          %s3832 = sand.u32 %s182, 1
          %s3833 = smul.addr %s3832, 256
          %s3834 = scalar_lea.vmem [#allocation3], %s3833
          %3835 = dma.done %s3831, 4096
        $region60: #{bottleneck_pallas.1} parent=55 // pred_fallthru
          _
      $region56: #{bottleneck_pallas.1} parent=5 // pred_fallthru
        _
    $region6: #{bottleneck_pallas.1} parent=1 // loop_footer
      %s20 = sadd.s32 1, %s16
    $region7: #{bottleneck_pallas.1} parent=1 // loop_footer_branch
      %15 = sbr.rel target = $region3
    $region8: #{bottleneck_pallas.1} parent=1 // loop_exit
      _
    %3836 = vsyncpa [#allocation4], 1
    %s3837 = scalar_lea.sflag [#allocation4], 1
    %3838 = vsyncpa %s3837, 1

</llo_original>
